<compile_context>
chip_gen: v7x
topology: tpu7x:2x2x1
jax: 0.10.0
libtpu: 0.0.40
codegen_flags: <defaults>
</compile_context>

<pallas_src>
import functools

import jax
import jax.numpy as jnp
from jax.experimental import pallas as pl
from jax.experimental.pallas import tpu as pltpu


# ----------------------------------------------------------------------------
# Small helpers
# ----------------------------------------------------------------------------

def _round_up(x, m):
    return (x + m - 1) // m * m


def _largest_divisor_leq(n, cap):
    for d in range(max(1, min(n, cap)), 0, -1):
        if n % d == 0:
            return d
    return 1


def _fold_bn(gamma, beta, mean, var, eps=1e-5):
    scale = gamma / jnp.sqrt(var + eps)
    return scale, beta - mean * scale


def _tap_plan(stride):
    """Static plan for the 9 depthwise taps.

    Returns [(plane, row_delta, col_start), ...] in (dy, dx) row-major order such that,
    with the strip-local scratch whose local row 0 holds plane row (out_r0 - 1) and whose
    interior columns start at col 8, tap (dy, dx) for local output rows [r0c, r0c+rc) is
    the dense read  h_scr[plane, r0c + row_delta : +rc, col_start : +wout, :].
    """
    taps = []
    for dy in range(3):
        for dx in range(3):
            if stride == 1:
                taps.append((0, dy, 7 + dx))
            else:  # stride == 2: space-to-depth planes, p = 2*row_parity + col_parity
                a, dr = (0, 1) if dy == 1 else (1, 0 if dy == 0 else 1)
                b, cs = (0, 8) if dx == 1 else (1, 7 if dx == 0 else 8)
                taps.append((2 * a + b, dr, cs))
    return taps


# ----------------------------------------------------------------------------
# Fused Pallas kernel
# ----------------------------------------------------------------------------

def _fused_inverted_residual_kernel(*refs, has_expand, use_shortcut, stride,
                                    n_planes, plane_h, plane_w, wout, tr, rc,
                                    hid_p, win_rows, scr_cols):
    if has_expand:
        (x_ref, we_ref, be_ref, wd_ref, bd_ref, wp_ref, bp_ref,
         o_ref, h_scr) = refs
    else:
        x_ref, wd_ref, bd_ref, wp_ref, bp_ref, o_ref, h_scr = refs
        we_ref = be_ref = None

    s = pl.program_id(1)
    out_r0 = s * tr
    if tr % 8 == 0:
        out_r0 = pl.multiple_of(out_r0, 8)

    # ---- Stage 1: 1x1 expand + BN + ReLU6, only for this strip's row window ---------
    # Window = plane rows [out_r0 - 1, out_r0 + tr (+1 if stride==1)).  The bf16 hidden
    # activation lives in the strip-local VMEM scratch (interior at row 1 / col 8) and
    # never touches HBM.
    def expand_store(p, src_row, nrows, dst_row):
        xs = x_ref[0, pl.ds(p * plane_h + src_row, nrows)]      # (nrows, plane_w, cin_p)
        if has_expand:
            h2 = jnp.dot(xs.reshape(nrows * plane_w, xs.shape[-1]), we_ref[...],
                         preferred_element_type=jnp.float32)
            h2 = jnp.clip(h2 + be_ref[...], 0.0, 6.0)
            ht = h2.reshape(nrows, plane_w, hid_p).astype(h_scr.dtype)
        else:
            ht = xs                                             # hidden == input (bf16)
        h_scr[p, dst_row:dst_row + nrows, 8:8 + plane_w, :] = ht

    for p in range(n_planes):
        # Bulk rows: plane rows [out_r0, out_r0 + tr) -> local rows [1, 1 + tr).
        expand_store(p, out_r0, tr, 1)
        # Bottom halo row (plane row out_r0 - 1); clamped read, zeroed below at s == 0.
        if stride == 1 or p >= 2:                # stride-2: only odd-row planes use it
            expand_store(p, jnp.maximum(out_r0 - 1, 0), 1, 0)
        # Top halo row (plane row out_r0 + tr), stride-1 only; zeroed at the last strip.
        if stride == 1:
            expand_store(p, jnp.minimum(out_r0 + tr, plane_h - 1), 1, tr + 1)

    # Zero only the halo regions (interior was fully overwritten above).
    z_pad = jnp.zeros((win_rows, 8, hid_p), h_scr.dtype)
    z_row = jnp.zeros((1, scr_cols, hid_p), h_scr.dtype)
    for p in range(n_planes):
        h_scr[p, :, 0:8, :] = z_pad                             # left pad (input col -1)
        if stride == 1:
            h_scr[p, :, 8 + plane_w:16 + plane_w, :] = z_pad    # right pad (input col w)

    @pl.when(s == 0)
    def _zero_bottom_row():
        for p in range(n_planes):
            h_scr[p, 0:1, :, :] = z_row

    if stride == 1:
        @pl.when(s == pl.num_programs(1) - 1)
        def _zero_top_row():
            for p in range(n_planes):
                h_scr[p, win_rows - 1:win_rows, :, :] = z_row

    # ---- Stage 2+3: depthwise 3x3 + BN + ReLU6, then 1x1 project + BN (+ residual) ----
    taps = _tap_plan(stride)
    wd_full = wd_ref[...]                                       # (9, hid_p) f32
    wtap = [wd_full[k, :][None, None, :] for k in range(9)]     # hoisted broadcasts
    bd_row = bd_ref[...]                                        # (1, hid_p) f32
    bp_row = bp_ref[...]                                        # (1, cout_p) f32

    for c in range(tr // rc):
        r0c = c * rc                                            # static chunk offset
        acc = None                                              # register-resident f32
        for k, (plane, drow, cstart) in enumerate(taps):
            tap = h_scr[plane, r0c + drow:r0c + drow + rc,
                        cstart:cstart + wout, :].astype(jnp.float32)
            term = tap * wtap[k]
            acc = term if acc is None else acc + term
        hdw = jnp.clip(acc + bd_row, 0.0, 6.0)                  # (rc, wout, hid_p) f32
        y = jnp.dot(hdw.reshape(rc * wout, hid_p).astype(jnp.bfloat16), wp_ref[...],
                    preferred_element_type=jnp.float32)
        y = y + bp_row
        if use_shortcut:
            # Residual comes from the input block already resident in VMEM.
            res = x_ref[0, pl.ds(out_r0 + r0c, rc)]             # (rc, wout, cin_p)
            y = y + res.astype(jnp.float32).reshape(rc * wout, -1)
        o_ref[0, r0c:r0c + rc] = y.reshape(rc, wout, -1).astype(o_ref.dtype)


# ----------------------------------------------------------------------------
# Wrapper
# ----------------------------------------------------------------------------

def inverted_residual_forward(x_nchw, params, *, in_channel, out_channel,
                              stride, expand_ratio):
    assert stride in (1, 2)
    n, cin, h, w = x_nchw.shape
    assert cin == in_channel
    hidden = in_channel * expand_ratio
    has_expand = expand_ratio != 1
    use_shortcut = (stride == 1) and (in_channel == out_channel)
    hout = (h - 1) // stride + 1
    wout = (w - 1) // stride + 1

    # Lane-dense channel padding (multiples of 128).
    cin_p = _round_up(in_channel, 128)
    hid_p = _round_up(hidden, 128)
    cout_p = _round_up(out_channel, 128)

    # NCHW -> NHWC, pad channels to the lane width, store in bf16.
    x = jnp.transpose(x_nchw, (0, 2, 3, 1)).astype(jnp.float32)
    x = jnp.pad(x, ((0, 0), (0, 0), (0, 0), (0, cin_p - in_channel))).astype(jnp.bfloat16)
    # TODO(synk): reading x / writing out at the natural (unpadded) channel count would
    # cut HBM bytes further for tiny channel counts; kept padded (lane-dense) here.

    if stride == 1:
        n_planes, plane_h, plane_w = 1, h, w
        x_in = x
    else:
        # Space-to-depth pre-split (XLA side, cheap) so every depthwise tap in the kernel
        # is a dense unstrided VMEM read.
        assert h % 2 == 0 and w % 2 == 0, "stride-2 path requires even H/W"
        n_planes, plane_h, plane_w = 4, h // 2, w // 2
        planes = [x[:, a::2, b::2, :] for a in (0, 1) for b in (0, 1)]
        x_in = jnp.concatenate(planes, axis=1)         # (n, 4*plane_h, plane_w, cin_p)

    # Fold BN (eval mode) into the convs; lane-pad; bf16 for the big MXU operands.
    args = [x_in]
    in_specs = [pl.BlockSpec((1, n_planes * plane_h, plane_w, cin_p),
                             lambda b, s: (b, 0, 0, 0))]
    if has_expand:
        sc, bi = _fold_bn(*params["expand_bn"])
        we = jnp.pad(params["expand_w"] * sc[None, :],
                     ((0, cin_p - in_channel), (0, hid_p - hidden))).astype(jnp.bfloat16)
        be = jnp.pad(bi, (0, hid_p - hidden)).reshape(1, hid_p)
        args += [we, be]
        in_specs += [pl.BlockSpec((cin_p, hid_p), lambda b, s: (0, 0)),
                     pl.BlockSpec((1, hid_p), lambda b, s: (0, 0))]
    sc, bi = _fold_bn(*params["dw_bn"])
    wd = jnp.pad(params["dw_w"] * sc[None, None, :],
                 ((0, 0), (0, 0), (0, hid_p - hidden))).reshape(9, hid_p)   # f32 (tiny)
    bd = jnp.pad(bi, (0, hid_p - hidden)).reshape(1, hid_p)
    sc, bi = _fold_bn(*params["proj_bn"])
    wp = jnp.pad(params["proj_w"] * sc[None, :],
                 ((0, hid_p - hidden), (0, cout_p - out_channel))).astype(jnp.bfloat16)
    bp = jnp.pad(bi, (0, cout_p - out_channel)).reshape(1, cout_p)
    args += [wd, bd, wp, bp]
    in_specs += [pl.BlockSpec((9, hid_p), lambda b, s: (0, 0)),
                 pl.BlockSpec((1, hid_p), lambda b, s: (0, 0)),
                 pl.BlockSpec((hid_p, cout_p), lambda b, s: (0, 0)),
                 pl.BlockSpec((1, cout_p), lambda b, s: (0, 0))]

    # Strip rows: project-matmul M = tr*wout targeted at <=1024, tr | hout (no fallback).
    tr = _largest_divisor_leq(hout, max(1, 1024 // max(wout, 1)))
    n_strips = hout // tr
    # Row chunk: 9-tap f32 accumulator stays <= ~32 vregs so it lives in registers.
    rc = _largest_divisor_leq(tr, max(1, (32 * 1024) // max(wout * hid_p, 1)))

    win_rows = tr + (2 if stride == 1 else 1)          # strip rows + row halo
    scr_cols = plane_w + (16 if stride == 1 else 8)    # interior at col 8, 8-wide pads
    scratch = pltpu.VMEM((n_planes, win_rows, scr_cols, hid_p), jnp.bfloat16)

    kernel = functools.partial(
        _fused_inverted_residual_kernel,
        has_expand=has_expand, use_shortcut=use_shortcut, stride=stride,
        n_planes=n_planes, plane_h=plane_h, plane_w=plane_w,
        wout=wout, tr=tr, rc=rc, hid_p=hid_p,
        win_rows=win_rows, scr_cols=scr_cols)

    # Generation-aware VMEM budget (~85% of physical) with ~1.3x headroom over estimate.
    bf16, f32 = 2, 4
    est = (2 * n_planes * plane_h * plane_w * cin_p * bf16           # x (double-buffered)
           + 2 * tr * wout * cout_p * f32                            # output blocks
           + 2 * ((cin_p * hid_p if has_expand else 0) + hid_p * cout_p) * bf16
           + 2 * (11 * hid_p + cout_p) * f32                         # small f32 consts
           + n_planes * win_rows * scr_cols * hid_p * bf16)          # hidden scratch
    try:
        vmem_cap = int(pltpu.get_tpu_info().vmem_capacity_bytes)
    except Exception:
        vmem_cap = 64 * 1024 * 1024
    vmem_limit = int(min(0.85 * vmem_cap, max(16 * 1024 * 1024, 1.3 * est)))

    flops = n * hout * wout * (18 * hid_p + 2 * hid_p * cout_p)
    if has_expand:
        flops += n * h * w * 2 * cin_p * hid_p
    bytes_accessed = int(x_in.size * bf16 + n * hout * wout * cout_p * f32
                         + (cin_p * hid_p + hid_p * cout_p) * bf16 + 12 * hid_p * f32)

    out_padded = pl.pallas_call(
        kernel,
        grid=(n, n_strips),
        in_specs=in_specs,
        out_specs=pl.BlockSpec((1, tr, wout, cout_p), lambda b, s: (b, s, 0, 0)),
        out_shape=jax.ShapeDtypeStruct((n, hout, wout, cout_p), jnp.float32),
        scratch_shapes=[scratch],
        compiler_params=pltpu.CompilerParams(
            dimension_semantics=("parallel", "parallel"),
            vmem_limit_bytes=vmem_limit),
        cost_estimate=pl.CostEstimate(flops=flops, transcendentals=0,
                                      bytes_accessed=bytes_accessed),
    )(*args)

    out = out_padded[:, :, :, :out_channel]
    return jnp.transpose(out, (0, 3, 1, 2))            # back to NCHW


# ----------------------------------------------------------------------------
# Deterministic parameters (BN in eval mode) and a pure-JAX (f32) reference
# ----------------------------------------------------------------------------

def init_params(key, in_channel, out_channel, expand_ratio):
    hidden = in_channel * expand_ratio
    keys = jax.random.split(key, 12)
    p = {}
    if expand_ratio != 1:
        p["expand_w"] = 0.1 * jax.random.normal(keys[0], (in_channel, hidden), jnp.float32)
        p["expand_bn"] = (
            1.0 + 0.1 * jax.random.normal(keys[1], (hidden,), jnp.float32),
            0.1 * jax.random.normal(keys[2], (hidden,), jnp.float32),
            0.1 * jax.random.normal(keys[3], (hidden,), jnp.float32),
            1.0 + 0.1 * jax.random.uniform(keys[4], (hidden,), jnp.float32),
        )
    p["dw_w"] = 0.1 * jax.random.normal(keys[5], (3, 3, hidden), jnp.float32)
    p["dw_bn"] = (
        1.0 + 0.1 * jax.random.normal(keys[6], (hidden,), jnp.float32),
        0.1 * jax.random.normal(keys[7], (hidden,), jnp.float32),
        0.1 * jax.random.normal(keys[8], (hidden,), jnp.float32),
        1.0 + 0.1 * jax.random.uniform(keys[9], (hidden,), jnp.float32),
    )
    p["proj_w"] = 0.1 * jax.random.normal(keys[10], (hidden, out_channel), jnp.float32)
    p["proj_bn"] = (
        1.0 + 0.1 * jax.random.normal(keys[11], (out_channel,), jnp.float32),
        0.05 * jnp.ones((out_channel,), jnp.float32),
        0.02 * jnp.ones((out_channel,), jnp.float32),
        1.0 + 0.1 * jnp.ones((out_channel,), jnp.float32),
    )
    return p


def reference_forward(x_nchw, params, *, in_channel, out_channel, stride, expand_ratio):
    """Plain-JAX (XLA, f32) re-implementation of the PyTorch module, eval mode."""
    x = jnp.transpose(x_nchw, (0, 2, 3, 1)).astype(jnp.float32)
    act = x
    if expand_ratio != 1:
        sc, bi = _fold_bn(*params["expand_bn"])
        act = jnp.clip(jnp.einsum("nhwc,cd->nhwd", act,
                                  params["expand_w"] * sc[None, :]) + bi, 0.0, 6.0)
    sc, bi = _fold_bn(*params["dw_bn"])
    wd = params["dw_w"] * sc[None, None, :]
    ap = jnp.pad(act, ((0, 0), (1, 1), (1, 1), (0, 0)))
    hout = (x.shape[1] - 1) // stride + 1
    wout = (x.shape[2] - 1) // stride + 1
    acc = jnp.zeros((x.shape[0], hout, wout, act.shape[-1]), jnp.float32)
    for dy in range(3):
        for dx in range(3):
            patch = ap[:, dy:dy + (hout - 1) * stride + 1:stride,
                       dx:dx + (wout - 1) * stride + 1:stride, :]
            acc = acc + patch * wd[dy, dx][None, None, None, :]
    act = jnp.clip(acc + bi, 0.0, 6.0)
    sc, bi = _fold_bn(*params["proj_bn"])
    out = jnp.einsum("nhwc,cd->nhwd", act, params["proj_w"] * sc[None, :]) + bi
    if stride == 1 and in_channel == out_channel:
        out = out + x
    return jnp.transpose(out, (0, 3, 1, 2))


if __name__ == "__main__":
    key = jax.random.PRNGKey(0)
    configs = [
        dict(batch=2, in_c=4, out_c=4, spatial=16, stride=1, expand_ratio=2),   # expand + shortcut
        dict(batch=2, in_c=4, out_c=8, spatial=16, stride=2, expand_ratio=2),   # stride-2 path
        dict(batch=2, in_c=8, out_c=8, spatial=16, stride=1, expand_ratio=1),   # no expand + shortcut
        dict(batch=1, in_c=24, out_c=24, spatial=14, stride=1, expand_ratio=6), # 14x14, hidden>128
    ]
    for i, c in enumerate(configs):
        k_x, k_p, key = jax.random.split(key, 3)
        x = jax.random.normal(
            k_x, (c["batch"], c["in_c"], c["spatial"], c["spatial"]), jnp.float32)
        params = init_params(k_p, c["in_c"], c["out_c"], c["expand_ratio"])

        fwd = jax.jit(functools.partial(
            inverted_residual_forward,
            in_channel=c["in_c"], out_channel=c["out_c"],
            stride=c["stride"], expand_ratio=c["expand_ratio"]))
        out = jax.block_until_ready(fwd(x, params))
        ref = jax.block_until_ready(reference_forward(
            x, params, in_channel=c["in_c"], out_channel=c["out_c"],
            stride=c["stride"], expand_ratio=c["expand_ratio"]))

        hw = (c["spatial"] - 1) // c["stride"] + 1
        assert out.shape == (c["batch"], c["out_c"], hw, hw), out.shape
        # Tolerance reflects bf16 storage / MXU inputs vs. the f32 reference.
        assert jnp.allclose(out, ref, atol=5e-2, rtol=5e-2), (
            f"config {i}: max abs err {jnp.max(jnp.abs(out - ref))}")
    print("KERNEL_OK")
</pallas_src>

<mosaic_0001>
module attributes {stable_mosaic.version = 11 : i64} {
  func.func @_fused_inverted_residual_kernel(%arg0: i32, %arg1: i32, %arg2: memref<1x16x16x128xbf16, #tpu.memory_space<vmem>>, %arg3: memref<128x128xbf16, #tpu.memory_space<vmem>>, %arg4: memref<1x128xf32, #tpu.memory_space<vmem>>, %arg5: memref<9x128xf32, #tpu.memory_space<vmem>>, %arg6: memref<1x128xf32, #tpu.memory_space<vmem>>, %arg7: memref<128x128xbf16, #tpu.memory_space<vmem>>, %arg8: memref<1x128xf32, #tpu.memory_space<vmem>>, %arg9: memref<1x16x16x128xf32, #tpu.memory_space<vmem>>, %arg10: memref<1x18x32x128xbf16, #tpu.memory_space<vmem>>) attributes {dimension_semantics = [#tpu.dimension_semantics<parallel>, #tpu.dimension_semantics<parallel>], iteration_bounds = array<i64: 2, 1>, scalar_prefetch = 0 : i64, scratch_operands = 1 : i64, tpu.core_type = #tpu.core_type<tc>, window_params = [{transform_indices = @transform_0, window_bounds = array<i64: 1, 16, 16, 128>}, {pipeline_mode = #tpu.pipeline_mode<synchronous>, transform_indices = @transform_1, window_bounds = array<i64: 128, 128>}, {pipeline_mode = #tpu.pipeline_mode<synchronous>, transform_indices = @transform_2, window_bounds = array<i64: 1, 128>}, {pipeline_mode = #tpu.pipeline_mode<synchronous>, transform_indices = @transform_3, window_bounds = array<i64: 9, 128>}, {pipeline_mode = #tpu.pipeline_mode<synchronous>, transform_indices = @transform_4, window_bounds = array<i64: 1, 128>}, {pipeline_mode = #tpu.pipeline_mode<synchronous>, transform_indices = @transform_5, window_bounds = array<i64: 128, 128>}, {pipeline_mode = #tpu.pipeline_mode<synchronous>, transform_indices = @transform_6, window_bounds = array<i64: 1, 128>}, {transform_indices = @transform_7, window_bounds = array<i64: 1, 16, 16, 128>}]} {
    %c16_i32 = arith.constant 16 : i32
    %0 = arith.muli %arg1, %c16_i32 : i32
    %1 = tpu.assume_multiple %0, 8 : i32
    %c0_i32 = arith.constant 0 : i32
    %2 = arith.addi %c0_i32, %1 : i32
    %c0 = arith.constant 0 : index
    %3 = arith.index_cast %2 : i32 to index
    %c0_0 = arith.constant 0 : index
    %c0_1 = arith.constant 0 : index
    %4 = vector.load %arg2[%c0, %3, %c0_0, %c0_1] : memref<1x16x16x128xbf16, #tpu.memory_space<vmem>>, vector<1x16x16x128xbf16>
    %5 = vector.shape_cast %4 : vector<1x16x16x128xbf16> to vector<16x16x128xbf16>
    %6 = vector.shape_cast %5 : vector<16x16x128xbf16> to vector<256x128xbf16>
    %c0_2 = arith.constant 0 : index
    %c0_3 = arith.constant 0 : index
    %7 = vector.load %arg3[%c0_2, %c0_3] : memref<128x128xbf16, #tpu.memory_space<vmem>>, vector<128x128xbf16>
    %cst = arith.constant dense<0.000000e+00> : vector<256x128xf32>
    %8 = tpu.matmul %6, %7, %cst {dimension_numbers = #tpu.dot_dimension_numbers<[1], [0], [0], [1], [0, 0, 1, 1], [], []>} : vector<256x128xbf16>, vector<128x128xbf16>, vector<256x128xf32> -> vector<256x128xf32>
    %c0_4 = arith.constant 0 : index
    %c0_5 = arith.constant 0 : index
    %9 = vector.load %arg4[%c0_4, %c0_5] : memref<1x128xf32, #tpu.memory_space<vmem>>, vector<1x128xf32>
    %10 = vector.broadcast %9 : vector<1x128xf32> to vector<256x128xf32>
    %11 = arith.addf %8, %10 : vector<256x128xf32>
    %cst_6 = arith.constant 0.000000e+00 : f32
    %cst_7 = arith.constant 6.000000e+00 : f32
    %12 = vector.broadcast %cst_6 : f32 to vector<256x128xf32>
    %13 = arith.maximumf %12, %11 : vector<256x128xf32>
    %14 = vector.broadcast %cst_7 : f32 to vector<256x128xf32>
    %15 = arith.minimumf %14, %13 : vector<256x128xf32>
    %16 = vector.shape_cast %15 : vector<256x128xf32> to vector<16x16x128xf32>
    %17 = arith.truncf %16 : vector<16x16x128xf32> to vector<16x16x128xbf16>
    %c0_8 = arith.constant 0 : index
    %c1 = arith.constant 1 : index
    %c8 = arith.constant 8 : index
    %c0_9 = arith.constant 0 : index
    %18 = vector.load %arg10[%c0_8, %c1, %c8, %c0_9] : memref<1x18x32x128xbf16, #tpu.memory_space<vmem>>, vector<1x16x16x128xbf16>
    %19 = vector.shape_cast %18 : vector<1x16x16x128xbf16> to vector<16x16x128xbf16>
    %20 = vector.shape_cast %17 : vector<16x16x128xbf16> to vector<1x16x16x128xbf16>
    tpu.vector_store %arg10[%c0_8, %c1, %c8, %c0_9], %20 {strides = array<i32>} : memref<1x18x32x128xbf16, #tpu.memory_space<vmem>>, vector<1x16x16x128xbf16>,
    %c1_i32 = arith.constant 1 : i32
    %21 = arith.subi %1, %c1_i32 : i32
    %c0_i32_10 = arith.constant 0 : i32
    %22 = arith.maxsi %21, %c0_i32_10 : i32
    %c0_i32_11 = arith.constant 0 : i32
    %23 = arith.addi %c0_i32_11, %22 : i32
    %c0_12 = arith.constant 0 : index
    %24 = arith.index_cast %23 : i32 to index
    %c0_13 = arith.constant 0 : index
    %c0_14 = arith.constant 0 : index
    %25 = vector.load %arg2[%c0_12, %24, %c0_13, %c0_14] : memref<1x16x16x128xbf16, #tpu.memory_space<vmem>>, vector<1x1x16x128xbf16>
    %26 = vector.shape_cast %25 : vector<1x1x16x128xbf16> to vector<1x16x128xbf16>
    %27 = vector.shape_cast %26 : vector<1x16x128xbf16> to vector<16x128xbf16>
    %c0_15 = arith.constant 0 : index
    %c0_16 = arith.constant 0 : index
    %28 = vector.load %arg3[%c0_15, %c0_16] : memref<128x128xbf16, #tpu.memory_space<vmem>>, vector<128x128xbf16>
    %cst_17 = arith.constant dense<0.000000e+00> : vector<16x128xf32>
    %29 = tpu.matmul %27, %28, %cst_17 {dimension_numbers = #tpu.dot_dimension_numbers<[1], [0], [0], [1], [0, 0, 1, 1], [], []>} : vector<16x128xbf16>, vector<128x128xbf16>, vector<16x128xf32> -> vector<16x128xf32>
    %c0_18 = arith.constant 0 : index
    %c0_19 = arith.constant 0 : index
    %30 = vector.load %arg4[%c0_18, %c0_19] : memref<1x128xf32, #tpu.memory_space<vmem>>, vector<1x128xf32>
    %31 = vector.broadcast %30 : vector<1x128xf32> to vector<16x128xf32>
    %32 = arith.addf %29, %31 : vector<16x128xf32>
    %cst_20 = arith.constant 0.000000e+00 : f32
    %cst_21 = arith.constant 6.000000e+00 : f32
    %33 = vector.broadcast %cst_20 : f32 to vector<16x128xf32>
    %34 = arith.maximumf %33, %32 : vector<16x128xf32>
    %35 = vector.broadcast %cst_21 : f32 to vector<16x128xf32>
    %36 = arith.minimumf %35, %34 : vector<16x128xf32>
    %37 = vector.shape_cast %36 : vector<16x128xf32> to vector<1x16x128xf32>
    %38 = arith.truncf %37 : vector<1x16x128xf32> to vector<1x16x128xbf16>
    %c0_22 = arith.constant 0 : index
    %c0_23 = arith.constant 0 : index
    %c8_24 = arith.constant 8 : index
    %c0_25 = arith.constant 0 : index
    %39 = vector.load %arg10[%c0_22, %c0_23, %c8_24, %c0_25] : memref<1x18x32x128xbf16, #tpu.memory_space<vmem>>, vector<1x1x16x128xbf16>
    %40 = vector.shape_cast %39 : vector<1x1x16x128xbf16> to vector<1x16x128xbf16>
    %41 = vector.shape_cast %38 : vector<1x16x128xbf16> to vector<1x1x16x128xbf16>
    tpu.vector_store %arg10[%c0_22, %c0_23, %c8_24, %c0_25], %41 {strides = array<i32>} : memref<1x18x32x128xbf16, #tpu.memory_space<vmem>>, vector<1x1x16x128xbf16>,
    %c16_i32_26 = arith.constant 16 : i32
    %42 = arith.addi %1, %c16_i32_26 : i32
    %c15_i32 = arith.constant 15 : i32
    %43 = arith.minsi %42, %c15_i32 : i32
    %c0_i32_27 = arith.constant 0 : i32
    %44 = arith.addi %c0_i32_27, %43 : i32
    %c0_28 = arith.constant 0 : index
    %45 = arith.index_cast %44 : i32 to index
    %c0_29 = arith.constant 0 : index
    %c0_30 = arith.constant 0 : index
    %46 = vector.load %arg2[%c0_28, %45, %c0_29, %c0_30] : memref<1x16x16x128xbf16, #tpu.memory_space<vmem>>, vector<1x1x16x128xbf16>
    %47 = vector.shape_cast %46 : vector<1x1x16x128xbf16> to vector<1x16x128xbf16>
    %48 = vector.shape_cast %47 : vector<1x16x128xbf16> to vector<16x128xbf16>
    %c0_31 = arith.constant 0 : index
    %c0_32 = arith.constant 0 : index
    %49 = vector.load %arg3[%c0_31, %c0_32] : memref<128x128xbf16, #tpu.memory_space<vmem>>, vector<128x128xbf16>
    %cst_33 = arith.constant dense<0.000000e+00> : vector<16x128xf32>
    %50 = tpu.matmul %48, %49, %cst_33 {dimension_numbers = #tpu.dot_dimension_numbers<[1], [0], [0], [1], [0, 0, 1, 1], [], []>} : vector<16x128xbf16>, vector<128x128xbf16>, vector<16x128xf32> -> vector<16x128xf32>
    %c0_34 = arith.constant 0 : index
    %c0_35 = arith.constant 0 : index
    %51 = vector.load %arg4[%c0_34, %c0_35] : memref<1x128xf32, #tpu.memory_space<vmem>>, vector<1x128xf32>
    %52 = vector.broadcast %51 : vector<1x128xf32> to vector<16x128xf32>
    %53 = arith.addf %50, %52 : vector<16x128xf32>
    %cst_36 = arith.constant 0.000000e+00 : f32
    %cst_37 = arith.constant 6.000000e+00 : f32
    %54 = vector.broadcast %cst_36 : f32 to vector<16x128xf32>
    %55 = arith.maximumf %54, %53 : vector<16x128xf32>
    %56 = vector.broadcast %cst_37 : f32 to vector<16x128xf32>
    %57 = arith.minimumf %56, %55 : vector<16x128xf32>
    %58 = vector.shape_cast %57 : vector<16x128xf32> to vector<1x16x128xf32>
    %59 = arith.truncf %58 : vector<1x16x128xf32> to vector<1x16x128xbf16>
    %c0_38 = arith.constant 0 : index
    %c17 = arith.constant 17 : index
    %c8_39 = arith.constant 8 : index
    %c0_40 = arith.constant 0 : index
    %60 = vector.load %arg10[%c0_38, %c17, %c8_39, %c0_40] : memref<1x18x32x128xbf16, #tpu.memory_space<vmem>>, vector<1x1x16x128xbf16>
    %61 = vector.shape_cast %60 : vector<1x1x16x128xbf16> to vector<1x16x128xbf16>
    %62 = vector.shape_cast %59 : vector<1x16x128xbf16> to vector<1x1x16x128xbf16>
    tpu.vector_store %arg10[%c0_38, %c17, %c8_39, %c0_40], %62 {strides = array<i32>} : memref<1x18x32x128xbf16, #tpu.memory_space<vmem>>, vector<1x1x16x128xbf16>,
    %cst_41 = arith.constant 0.000000e+00 : bf16
    %63 = vector.broadcast %cst_41 : bf16 to vector<18x8x128xbf16>
    %cst_42 = arith.constant 0.000000e+00 : bf16
    %64 = vector.broadcast %cst_42 : bf16 to vector<1x32x128xbf16>
    %c0_43 = arith.constant 0 : index
    %c0_44 = arith.constant 0 : index
    %c0_45 = arith.constant 0 : index
    %c0_46 = arith.constant 0 : index
    %65 = vector.load %arg10[%c0_43, %c0_44, %c0_45, %c0_46] : memref<1x18x32x128xbf16, #tpu.memory_space<vmem>>, vector<1x18x8x128xbf16>
    %66 = vector.shape_cast %65 : vector<1x18x8x128xbf16> to vector<18x8x128xbf16>
    %67 = vector.shape_cast %63 : vector<18x8x128xbf16> to vector<1x18x8x128xbf16>
    tpu.vector_store %arg10[%c0_43, %c0_44, %c0_45, %c0_46], %67 {strides = array<i32>} : memref<1x18x32x128xbf16, #tpu.memory_space<vmem>>, vector<1x18x8x128xbf16>,
    %c0_47 = arith.constant 0 : index
    %c0_48 = arith.constant 0 : index
    %c24 = arith.constant 24 : index
    %c0_49 = arith.constant 0 : index
    %68 = vector.load %arg10[%c0_47, %c0_48, %c24, %c0_49] : memref<1x18x32x128xbf16, #tpu.memory_space<vmem>>, vector<1x18x8x128xbf16>
    %69 = vector.shape_cast %68 : vector<1x18x8x128xbf16> to vector<18x8x128xbf16>
    %70 = vector.shape_cast %63 : vector<18x8x128xbf16> to vector<1x18x8x128xbf16>
    tpu.vector_store %arg10[%c0_47, %c0_48, %c24, %c0_49], %70 {strides = array<i32>} : memref<1x18x32x128xbf16, #tpu.memory_space<vmem>>, vector<1x18x8x128xbf16>,
    %c0_i32_50 = arith.constant 0 : i32
    %71 = arith.cmpi eq, %arg1, %c0_i32_50 : i32
    %72 = arith.extui %71 : i1 to i32
    %c0_i32_51 = arith.constant 0 : i32
    %73 = arith.cmpi ne, %72, %c0_i32_51 : i32
    scf.if %73 {
      %c0_106 = arith.constant 0 : index
      %c0_107 = arith.constant 0 : index
      %c0_108 = arith.constant 0 : index
      %c0_109 = arith.constant 0 : index
      %184 = vector.load %arg10[%c0_106, %c0_107, %c0_108, %c0_109] : memref<1x18x32x128xbf16, #tpu.memory_space<vmem>>, vector<1x1x32x128xbf16>
      %185 = vector.shape_cast %184 : vector<1x1x32x128xbf16> to vector<1x32x128xbf16>
      %186 = vector.shape_cast %64 : vector<1x32x128xbf16> to vector<1x1x32x128xbf16>
      tpu.vector_store %arg10[%c0_106, %c0_107, %c0_108, %c0_109], %186 {strides = array<i32>} : memref<1x18x32x128xbf16, #tpu.memory_space<vmem>>, vector<1x1x32x128xbf16>,
    } else {
    }
    %c0_i32_52 = arith.constant 0 : i32
    %74 = arith.cmpi eq, %arg1, %c0_i32_52 : i32
    %75 = arith.extui %74 : i1 to i32
    %c0_i32_53 = arith.constant 0 : i32
    %76 = arith.cmpi ne, %75, %c0_i32_53 : i32
    scf.if %76 {
      %c0_106 = arith.constant 0 : index
      %c17_107 = arith.constant 17 : index
      %c0_108 = arith.constant 0 : index
      %c0_109 = arith.constant 0 : index
      %184 = vector.load %arg10[%c0_106, %c17_107, %c0_108, %c0_109] : memref<1x18x32x128xbf16, #tpu.memory_space<vmem>>, vector<1x1x32x128xbf16>
      %185 = vector.shape_cast %184 : vector<1x1x32x128xbf16> to vector<1x32x128xbf16>
      %186 = vector.shape_cast %64 : vector<1x32x128xbf16> to vector<1x1x32x128xbf16>
      tpu.vector_store %arg10[%c0_106, %c17_107, %c0_108, %c0_109], %186 {strides = array<i32>} : memref<1x18x32x128xbf16, #tpu.memory_space<vmem>>, vector<1x1x32x128xbf16>,
    } else {
    }
    %c0_54 = arith.constant 0 : index
    %c0_55 = arith.constant 0 : index
    %77 = vector.load %arg5[%c0_54, %c0_55] : memref<9x128xf32, #tpu.memory_space<vmem>>, vector<9x128xf32>
    %78 = vector.extract_strided_slice %77 {offsets = [0, 0], sizes = [1, 128], strides = [1, 1]} : vector<9x128xf32> to vector<1x128xf32>
    %79 = vector.shape_cast %78 : vector<1x128xf32> to vector<128xf32>
    %80 = vector.shape_cast %79 : vector<128xf32> to vector<1x1x128xf32>
    %81 = vector.extract_strided_slice %77 {offsets = [1, 0], sizes = [1, 128], strides = [1, 1]} : vector<9x128xf32> to vector<1x128xf32>
    %82 = vector.shape_cast %81 : vector<1x128xf32> to vector<128xf32>
    %83 = vector.shape_cast %82 : vector<128xf32> to vector<1x1x128xf32>
    %84 = vector.extract_strided_slice %77 {offsets = [2, 0], sizes = [1, 128], strides = [1, 1]} : vector<9x128xf32> to vector<1x128xf32>
    %85 = vector.shape_cast %84 : vector<1x128xf32> to vector<128xf32>
    %86 = vector.shape_cast %85 : vector<128xf32> to vector<1x1x128xf32>
    %87 = vector.extract_strided_slice %77 {offsets = [3, 0], sizes = [1, 128], strides = [1, 1]} : vector<9x128xf32> to vector<1x128xf32>
    %88 = vector.shape_cast %87 : vector<1x128xf32> to vector<128xf32>
    %89 = vector.shape_cast %88 : vector<128xf32> to vector<1x1x128xf32>
    %90 = vector.extract_strided_slice %77 {offsets = [4, 0], sizes = [1, 128], strides = [1, 1]} : vector<9x128xf32> to vector<1x128xf32>
    %91 = vector.shape_cast %90 : vector<1x128xf32> to vector<128xf32>
    %92 = vector.shape_cast %91 : vector<128xf32> to vector<1x1x128xf32>
    %93 = vector.extract_strided_slice %77 {offsets = [5, 0], sizes = [1, 128], strides = [1, 1]} : vector<9x128xf32> to vector<1x128xf32>
    %94 = vector.shape_cast %93 : vector<1x128xf32> to vector<128xf32>
    %95 = vector.shape_cast %94 : vector<128xf32> to vector<1x1x128xf32>
    %96 = vector.extract_strided_slice %77 {offsets = [6, 0], sizes = [1, 128], strides = [1, 1]} : vector<9x128xf32> to vector<1x128xf32>
    %97 = vector.shape_cast %96 : vector<1x128xf32> to vector<128xf32>
    %98 = vector.shape_cast %97 : vector<128xf32> to vector<1x1x128xf32>
    %99 = vector.extract_strided_slice %77 {offsets = [7, 0], sizes = [1, 128], strides = [1, 1]} : vector<9x128xf32> to vector<1x128xf32>
    %100 = vector.shape_cast %99 : vector<1x128xf32> to vector<128xf32>
    %101 = vector.shape_cast %100 : vector<128xf32> to vector<1x1x128xf32>
    %102 = vector.extract_strided_slice %77 {offsets = [8, 0], sizes = [1, 128], strides = [1, 1]} : vector<9x128xf32> to vector<1x128xf32>
    %103 = vector.shape_cast %102 : vector<1x128xf32> to vector<128xf32>
    %104 = vector.shape_cast %103 : vector<128xf32> to vector<1x1x128xf32>
    %c0_56 = arith.constant 0 : index
    %c0_57 = arith.constant 0 : index
    %105 = vector.load %arg6[%c0_56, %c0_57] : memref<1x128xf32, #tpu.memory_space<vmem>>, vector<1x128xf32>
    %c0_58 = arith.constant 0 : index
    %c0_59 = arith.constant 0 : index
    %106 = vector.load %arg8[%c0_58, %c0_59] : memref<1x128xf32, #tpu.memory_space<vmem>>, vector<1x128xf32>
    %c0_60 = arith.constant 0 : index
    %c0_61 = arith.constant 0 : index
    %c7 = arith.constant 7 : index
    %c0_62 = arith.constant 0 : index
    %107 = vector.load %arg10[%c0_60, %c0_61, %c7, %c0_62] : memref<1x18x32x128xbf16, #tpu.memory_space<vmem>>, vector<1x16x16x128xbf16>
    %108 = vector.shape_cast %107 : vector<1x16x16x128xbf16> to vector<16x16x128xbf16>
    %109 = arith.extf %108 : vector<16x16x128xbf16> to vector<16x16x128xf32>
    %110 = vector.broadcast %80 : vector<1x1x128xf32> to vector<16x16x128xf32>
    %111 = arith.mulf %109, %110 : vector<16x16x128xf32>
    %c0_63 = arith.constant 0 : index
    %c0_64 = arith.constant 0 : index
    %c8_65 = arith.constant 8 : index
    %c0_66 = arith.constant 0 : index
    %112 = vector.load %arg10[%c0_63, %c0_64, %c8_65, %c0_66] : memref<1x18x32x128xbf16, #tpu.memory_space<vmem>>, vector<1x16x16x128xbf16>
    %113 = vector.shape_cast %112 : vector<1x16x16x128xbf16> to vector<16x16x128xbf16>
    %114 = arith.extf %113 : vector<16x16x128xbf16> to vector<16x16x128xf32>
    %115 = vector.broadcast %83 : vector<1x1x128xf32> to vector<16x16x128xf32>
    %116 = arith.mulf %114, %115 : vector<16x16x128xf32>
    %117 = arith.addf %111, %116 : vector<16x16x128xf32>
    %c0_67 = arith.constant 0 : index
    %c0_68 = arith.constant 0 : index
    %c9 = arith.constant 9 : index
    %c0_69 = arith.constant 0 : index
    %118 = vector.load %arg10[%c0_67, %c0_68, %c9, %c0_69] : memref<1x18x32x128xbf16, #tpu.memory_space<vmem>>, vector<1x16x16x128xbf16>
    %119 = vector.shape_cast %118 : vector<1x16x16x128xbf16> to vector<16x16x128xbf16>
    %120 = arith.extf %119 : vector<16x16x128xbf16> to vector<16x16x128xf32>
    %121 = vector.broadcast %86 : vector<1x1x128xf32> to vector<16x16x128xf32>
    %122 = arith.mulf %120, %121 : vector<16x16x128xf32>
    %123 = arith.addf %117, %122 : vector<16x16x128xf32>
    %c0_70 = arith.constant 0 : index
    %c1_71 = arith.constant 1 : index
    %c7_72 = arith.constant 7 : index
    %c0_73 = arith.constant 0 : index
    %124 = vector.load %arg10[%c0_70, %c1_71, %c7_72, %c0_73] : memref<1x18x32x128xbf16, #tpu.memory_space<vmem>>, vector<1x16x16x128xbf16>
    %125 = vector.shape_cast %124 : vector<1x16x16x128xbf16> to vector<16x16x128xbf16>
    %126 = arith.extf %125 : vector<16x16x128xbf16> to vector<16x16x128xf32>
    %127 = vector.broadcast %89 : vector<1x1x128xf32> to vector<16x16x128xf32>
    %128 = arith.mulf %126, %127 : vector<16x16x128xf32>
    %129 = arith.addf %123, %128 : vector<16x16x128xf32>
    %c0_74 = arith.constant 0 : index
    %c1_75 = arith.constant 1 : index
    %c8_76 = arith.constant 8 : index
    %c0_77 = arith.constant 0 : index
    %130 = vector.load %arg10[%c0_74, %c1_75, %c8_76, %c0_77] : memref<1x18x32x128xbf16, #tpu.memory_space<vmem>>, vector<1x16x16x128xbf16>
    %131 = vector.shape_cast %130 : vector<1x16x16x128xbf16> to vector<16x16x128xbf16>
    %132 = arith.extf %131 : vector<16x16x128xbf16> to vector<16x16x128xf32>
    %133 = vector.broadcast %92 : vector<1x1x128xf32> to vector<16x16x128xf32>
    %134 = arith.mulf %132, %133 : vector<16x16x128xf32>
    %135 = arith.addf %129, %134 : vector<16x16x128xf32>
    %c0_78 = arith.constant 0 : index
    %c1_79 = arith.constant 1 : index
    %c9_80 = arith.constant 9 : index
    %c0_81 = arith.constant 0 : index
    %136 = vector.load %arg10[%c0_78, %c1_79, %c9_80, %c0_81] : memref<1x18x32x128xbf16, #tpu.memory_space<vmem>>, vector<1x16x16x128xbf16>
    %137 = vector.shape_cast %136 : vector<1x16x16x128xbf16> to vector<16x16x128xbf16>
    %138 = arith.extf %137 : vector<16x16x128xbf16> to vector<16x16x128xf32>
    %139 = vector.broadcast %95 : vector<1x1x128xf32> to vector<16x16x128xf32>
    %140 = arith.mulf %138, %139 : vector<16x16x128xf32>
    %141 = arith.addf %135, %140 : vector<16x16x128xf32>
    %c0_82 = arith.constant 0 : index
    %c2 = arith.constant 2 : index
    %c7_83 = arith.constant 7 : index
    %c0_84 = arith.constant 0 : index
    %142 = vector.load %arg10[%c0_82, %c2, %c7_83, %c0_84] : memref<1x18x32x128xbf16, #tpu.memory_space<vmem>>, vector<1x16x16x128xbf16>
    %143 = vector.shape_cast %142 : vector<1x16x16x128xbf16> to vector<16x16x128xbf16>
    %144 = arith.extf %143 : vector<16x16x128xbf16> to vector<16x16x128xf32>
    %145 = vector.broadcast %98 : vector<1x1x128xf32> to vector<16x16x128xf32>
    %146 = arith.mulf %144, %145 : vector<16x16x128xf32>
    %147 = arith.addf %141, %146 : vector<16x16x128xf32>
    %c0_85 = arith.constant 0 : index
    %c2_86 = arith.constant 2 : index
    %c8_87 = arith.constant 8 : index
    %c0_88 = arith.constant 0 : index
    %148 = vector.load %arg10[%c0_85, %c2_86, %c8_87, %c0_88] : memref<1x18x32x128xbf16, #tpu.memory_space<vmem>>, vector<1x16x16x128xbf16>
    %149 = vector.shape_cast %148 : vector<1x16x16x128xbf16> to vector<16x16x128xbf16>
    %150 = arith.extf %149 : vector<16x16x128xbf16> to vector<16x16x128xf32>
    %151 = vector.broadcast %101 : vector<1x1x128xf32> to vector<16x16x128xf32>
    %152 = arith.mulf %150, %151 : vector<16x16x128xf32>
    %153 = arith.addf %147, %152 : vector<16x16x128xf32>
    %c0_89 = arith.constant 0 : index
    %c2_90 = arith.constant 2 : index
    %c9_91 = arith.constant 9 : index
    %c0_92 = arith.constant 0 : index
    %154 = vector.load %arg10[%c0_89, %c2_90, %c9_91, %c0_92] : memref<1x18x32x128xbf16, #tpu.memory_space<vmem>>, vector<1x16x16x128xbf16>
    %155 = vector.shape_cast %154 : vector<1x16x16x128xbf16> to vector<16x16x128xbf16>
    %156 = arith.extf %155 : vector<16x16x128xbf16> to vector<16x16x128xf32>
    %157 = vector.broadcast %104 : vector<1x1x128xf32> to vector<16x16x128xf32>
    %158 = arith.mulf %156, %157 : vector<16x16x128xf32>
    %159 = arith.addf %153, %158 : vector<16x16x128xf32>
    %160 = vector.shape_cast %105 : vector<1x128xf32> to vector<1x1x128xf32>
    %161 = vector.broadcast %160 : vector<1x1x128xf32> to vector<16x16x128xf32>
    %162 = arith.addf %159, %161 : vector<16x16x128xf32>
    %cst_93 = arith.constant 0.000000e+00 : f32
    %cst_94 = arith.constant 6.000000e+00 : f32
    %163 = vector.broadcast %cst_93 : f32 to vector<16x16x128xf32>
    %164 = arith.maximumf %163, %162 : vector<16x16x128xf32>
    %165 = vector.broadcast %cst_94 : f32 to vector<16x16x128xf32>
    %166 = arith.minimumf %165, %164 : vector<16x16x128xf32>
    %167 = vector.shape_cast %166 : vector<16x16x128xf32> to vector<256x128xf32>
    %168 = arith.truncf %167 : vector<256x128xf32> to vector<256x128xbf16>
    %c0_95 = arith.constant 0 : index
    %c0_96 = arith.constant 0 : index
    %169 = vector.load %arg7[%c0_95, %c0_96] : memref<128x128xbf16, #tpu.memory_space<vmem>>, vector<128x128xbf16>
    %cst_97 = arith.constant dense<0.000000e+00> : vector<256x128xf32>
    %170 = tpu.matmul %168, %169, %cst_97 {dimension_numbers = #tpu.dot_dimension_numbers<[1], [0], [0], [1], [0, 0, 1, 1], [], []>} : vector<256x128xbf16>, vector<128x128xbf16>, vector<256x128xf32> -> vector<256x128xf32>
    %171 = vector.broadcast %106 : vector<1x128xf32> to vector<256x128xf32>
    %172 = arith.addf %170, %171 : vector<256x128xf32>
    %c0_i32_98 = arith.constant 0 : i32
    %173 = arith.addi %1, %c0_i32_98 : i32
    %c0_99 = arith.constant 0 : index
    %174 = arith.index_cast %173 : i32 to index
    %c0_100 = arith.constant 0 : index
    %c0_101 = arith.constant 0 : index
    %175 = vector.load %arg2[%c0_99, %174, %c0_100, %c0_101] : memref<1x16x16x128xbf16, #tpu.memory_space<vmem>>, vector<1x16x16x128xbf16>
    %176 = vector.shape_cast %175 : vector<1x16x16x128xbf16> to vector<16x16x128xbf16>
    %177 = arith.extf %176 : vector<16x16x128xbf16> to vector<16x16x128xf32>
    %178 = vector.shape_cast %177 : vector<16x16x128xf32> to vector<256x128xf32>
    %179 = arith.addf %172, %178 : vector<256x128xf32>
    %180 = vector.shape_cast %179 : vector<256x128xf32> to vector<16x16x128xf32>
    %c0_102 = arith.constant 0 : index
    %c0_103 = arith.constant 0 : index
    %c0_104 = arith.constant 0 : index
    %c0_105 = arith.constant 0 : index
    %181 = vector.load %arg9[%c0_102, %c0_103, %c0_104, %c0_105] : memref<1x16x16x128xf32, #tpu.memory_space<vmem>>, vector<1x16x16x128xf32>
    %182 = vector.shape_cast %181 : vector<1x16x16x128xf32> to vector<16x16x128xf32>
    %183 = vector.shape_cast %180 : vector<16x16x128xf32> to vector<1x16x16x128xf32>
    tpu.vector_store %arg9[%c0_102, %c0_103, %c0_104, %c0_105], %183 {strides = array<i32>} : memref<1x16x16x128xf32, #tpu.memory_space<vmem>>, vector<1x16x16x128xf32>,
    return
  }
  func.func @transform_0(%arg0: i32, %arg1: i32) -> (i32, i32, i32, i32) {
    %c0_i32 = arith.constant 0 : i32
    %c0_i32_0 = arith.constant 0 : i32
    %c0_i32_1 = arith.constant 0 : i32
    %c0_i32_2 = arith.constant 0 : i32
    return %arg0, %c0_i32, %c0_i32_0, %c0_i32_1 : i32, i32, i32, i32
  }
  func.func @transform_1(%arg0: i32, %arg1: i32) -> (i32, i32) {
    %c0_i32 = arith.constant 0 : i32
    %c0_i32_0 = arith.constant 0 : i32
    %c0_i32_1 = arith.constant 0 : i32
    return %c0_i32, %c0_i32_0 : i32, i32
  }
  func.func @transform_2(%arg0: i32, %arg1: i32) -> (i32, i32) {
    %c0_i32 = arith.constant 0 : i32
    %c0_i32_0 = arith.constant 0 : i32
    %c0_i32_1 = arith.constant 0 : i32
    return %c0_i32, %c0_i32_0 : i32, i32
  }
  func.func @transform_3(%arg0: i32, %arg1: i32) -> (i32, i32) {
    %c0_i32 = arith.constant 0 : i32
    %c0_i32_0 = arith.constant 0 : i32
    %c0_i32_1 = arith.constant 0 : i32
    return %c0_i32, %c0_i32_0 : i32, i32
  }
  func.func @transform_4(%arg0: i32, %arg1: i32) -> (i32, i32) {
    %c0_i32 = arith.constant 0 : i32
    %c0_i32_0 = arith.constant 0 : i32
    %c0_i32_1 = arith.constant 0 : i32
    return %c0_i32, %c0_i32_0 : i32, i32
  }
  func.func @transform_5(%arg0: i32, %arg1: i32) -> (i32, i32) {
    %c0_i32 = arith.constant 0 : i32
    %c0_i32_0 = arith.constant 0 : i32
    %c0_i32_1 = arith.constant 0 : i32
    return %c0_i32, %c0_i32_0 : i32, i32
  }
  func.func @transform_6(%arg0: i32, %arg1: i32) -> (i32, i32) {
    %c0_i32 = arith.constant 0 : i32
    %c0_i32_0 = arith.constant 0 : i32
    %c0_i32_1 = arith.constant 0 : i32
    return %c0_i32, %c0_i32_0 : i32, i32
  }
  func.func @transform_7(%arg0: i32, %arg1: i32) -> (i32, i32, i32, i32) {
    %c0_i32 = arith.constant 0 : i32
    %c0_i32_0 = arith.constant 0 : i32
    %c0_i32_1 = arith.constant 0 : i32
    return %arg0, %arg1, %c0_i32, %c0_i32_0 : i32, i32, i32, i32
  }
}

</mosaic_0001>

<llo_original>
// kernel: inverted_residual_forward.1
$region0: #{inverted_residual_forward.1}
  #allocation0 [shape = 'u32[]', space=smem, size = 0x4, offset = 0x4, fixed_abs, tag = 'smem constant byte address 0x4 - core index']
  #allocation1 [shape = 'u32[144,128]{1,0:T(1,128)}', space=vmem, size = 0x12000, scoped, tag = 'internal scratch']
  #allocation2 [shape = 'bf16[1,18,32,128]{3,2,1,0:T(16,128)(2,1)}', space=vmem, size = 0x24000, scoped, tag = 'scratch operand']
  %s0 = inlined_call_operand.vmem [shape: bf16[2,16,16,128], index: 0, kind: input, shape index: {}]
  %s1 = inlined_call_operand.vmem [shape: bf16[128,128], index: 1, kind: input, shape index: {}]
  %s2 = inlined_call_operand.vmem [shape: f32[1,128], index: 2, kind: input, shape index: {}]
  %s3 = inlined_call_operand.vmem [shape: f32[9,128], index: 3, kind: input, shape index: {}]
  %s4 = inlined_call_operand.vmem [shape: f32[1,128], index: 4, kind: input, shape index: {}]
  %s5 = inlined_call_operand.vmem [shape: bf16[128,128], index: 5, kind: input, shape index: {}]
  %s6 = inlined_call_operand.vmem [shape: f32[1,128], index: 6, kind: input, shape index: {}]
  %s7 = inlined_call_operand.vmem [shape: f32[2,16,16,128], index: 7, kind: output, shape index: {}]
  %s8 = sld [smem:[#allocation0]]
  $region65: #{inverted_residual_forward.1} parent=0
    _
  %s10 = ssub.s32 1, %s8
  %s11 = scalar_select 0, %s10, %s8
  loop: start=0, step=1, limit=4
  $region2: #{inverted_residual_forward.1} parent=0 // loop_pre_header
    _
  $region3: #{inverted_residual_forward.1} parent=0 // loop_header
    %s13 = sphi 0, %s17
    %p14 = scmp.ge.s32.totalorder %s13, 4
    %s20 = sphi 0, %s32
    %s21 = sphi 0, %s28
    %s22 = sphi 0, %s20
    %s23 = sphi 0, %s21
    %s24 = sphi 0, %s22
    %s25 = sphi 0, %s23
    %s35 = sphi 0, %s37
    %s38 = sphi 0, %s35
    %s39 = sphi 0, %s38
    %s55 = sphi 0, %s39
    %s59 = sphi 0, %s59
    %s61 = sphi 0, %s59
    %s62 = sphi 0, %s61
    %s76 = sphi 0, %s62
    %s80 = sphi 0, %s80
    %s82 = sphi 0, %s80
    %s83 = sphi 0, %s82
    %s97 = sphi 0, %s83
    %s101 = sphi 0, %s101
    %s103 = sphi 0, %s101
    %s104 = sphi 0, %s103
    %s118 = sphi 0, %s104
    %s122 = sphi 0, %s122
    %s124 = sphi 0, %s122
    %s125 = sphi 0, %s124
    %s139 = sphi 0, %s125
    %s143 = sphi 0, %s143
    %s145 = sphi 0, %s143
    %s146 = sphi 0, %s145
    %s160 = sphi 0, %s146
    %s164 = sphi 0, %s164
    %s166 = sphi 0, %s164
    %s167 = sphi 0, %s166
    %s181 = sphi 0, %s167
    %s189 = sphi 0, %s191
    %s192 = sphi 0, %s189
    %s193 = sphi 0, %s192
    %s209 = sphi 0, %s193
  $region4: #{inverted_residual_forward.1} parent=0 // loop_header_branch
    %16 = sbr.rel (%p14) target = $region8
  $region5: #{inverted_residual_forward.1} parent=0 // loop_body
    %s18 = ssub.s32 %s13, 1
    %s19 = ssub.s32 %s13, 2
    %s26 = sadd.s32 1, %s21
    %p27 = scmp.ge.s32.totalorder %s26, 1
    %s28 = scalar_select %p27, 0, %s26
    %s29 = sadd.s32 1, %s20
    %s30 = scalar_select %p27, %s29, %s20
    %p31 = scmp.ge.s32.totalorder %s30, 2
    %s32 = scalar_select %p31, 0, %s30
    %s33 = ssub.s32 %s20, %s32
    %p34 = scmp.eq.s32.totalorder %s33, 0
    %s36 = sadd.s32 %s35, 1
    %s37 = scalar_select %p34, %s35, %s36
    %p40 = pneg %p34
    %p41 = scmp.eq.s32.totalorder %s13, 1
    %p42 = por %p40, %p41
    %p43 = scmp.ne.s32.totalorder %s35, %s38
    %p44 = scmp.eq.s32.totalorder %s13, 0
    %p45 = por %p43, %p44
    %p46 = scmp.ne.s32.totalorder %s35, %s38
    %p47 = scmp.eq.s32.totalorder %s18, 1
    %p48 = por %p46, %p47
    %p49 = scmp.ne.s32.totalorder %s38, %s39
    %p50 = scmp.eq.s32.totalorder %s18, 0
    %p51 = por %p49, %p50
    %p52 = scmp.ne.s32.totalorder %s38, %s39
    %p53 = scmp.eq.s32.totalorder %s19, 1
    %p54 = por %p52, %p53
    %p56 = scmp.ne.s32.totalorder %s39, %s55
    %p57 = scmp.eq.s32.totalorder %s19, 0
    %p58 = por %p56, %p57
    %s60 = sadd.s32 %s59, 1
    %p63 = scmp.eq.s32.totalorder %s13, 1
    %p64 = scmp.ne.s32.totalorder %s59, %s61
    %p65 = scmp.eq.s32.totalorder %s13, 0
    %p66 = por %p64, %p65
    %p67 = scmp.ne.s32.totalorder %s59, %s61
    %p68 = scmp.eq.s32.totalorder %s18, 1
    %p69 = por %p67, %p68
    %p70 = scmp.ne.s32.totalorder %s61, %s62
    %p71 = scmp.eq.s32.totalorder %s18, 0
    %p72 = por %p70, %p71
    %p73 = scmp.ne.s32.totalorder %s61, %s62
    %p74 = scmp.eq.s32.totalorder %s19, 1
    %p75 = por %p73, %p74
    %p77 = scmp.ne.s32.totalorder %s62, %s76
    %p78 = scmp.eq.s32.totalorder %s19, 0
    %p79 = por %p77, %p78
    %s81 = sadd.s32 %s80, 1
    %p84 = scmp.eq.s32.totalorder %s13, 1
    %p85 = scmp.ne.s32.totalorder %s80, %s82
    %p86 = scmp.eq.s32.totalorder %s13, 0
    %p87 = por %p85, %p86
    %p88 = scmp.ne.s32.totalorder %s80, %s82
    %p89 = scmp.eq.s32.totalorder %s18, 1
    %p90 = por %p88, %p89
    %p91 = scmp.ne.s32.totalorder %s82, %s83
    %p92 = scmp.eq.s32.totalorder %s18, 0
    %p93 = por %p91, %p92
    %p94 = scmp.ne.s32.totalorder %s82, %s83
    %p95 = scmp.eq.s32.totalorder %s19, 1
    %p96 = por %p94, %p95
    %p98 = scmp.ne.s32.totalorder %s83, %s97
    %p99 = scmp.eq.s32.totalorder %s19, 0
    %p100 = por %p98, %p99
    %s102 = sadd.s32 %s101, 1
    %p105 = scmp.eq.s32.totalorder %s13, 1
    %p106 = scmp.ne.s32.totalorder %s101, %s103
    %p107 = scmp.eq.s32.totalorder %s13, 0
    %p108 = por %p106, %p107
    %p109 = scmp.ne.s32.totalorder %s101, %s103
    %p110 = scmp.eq.s32.totalorder %s18, 1
    %p111 = por %p109, %p110
    %p112 = scmp.ne.s32.totalorder %s103, %s104
    %p113 = scmp.eq.s32.totalorder %s18, 0
    %p114 = por %p112, %p113
    %p115 = scmp.ne.s32.totalorder %s103, %s104
    %p116 = scmp.eq.s32.totalorder %s19, 1
    %p117 = por %p115, %p116
    %p119 = scmp.ne.s32.totalorder %s104, %s118
    %p120 = scmp.eq.s32.totalorder %s19, 0
    %p121 = por %p119, %p120
    %s123 = sadd.s32 %s122, 1
    %p126 = scmp.eq.s32.totalorder %s13, 1
    %p127 = scmp.ne.s32.totalorder %s122, %s124
    %p128 = scmp.eq.s32.totalorder %s13, 0
    %p129 = por %p127, %p128
    %p130 = scmp.ne.s32.totalorder %s122, %s124
    %p131 = scmp.eq.s32.totalorder %s18, 1
    %p132 = por %p130, %p131
    %p133 = scmp.ne.s32.totalorder %s124, %s125
    %p134 = scmp.eq.s32.totalorder %s18, 0
    %p135 = por %p133, %p134
    %p136 = scmp.ne.s32.totalorder %s124, %s125
    %p137 = scmp.eq.s32.totalorder %s19, 1
    %p138 = por %p136, %p137
    %p140 = scmp.ne.s32.totalorder %s125, %s139
    %p141 = scmp.eq.s32.totalorder %s19, 0
    %p142 = por %p140, %p141
    %s144 = sadd.s32 %s143, 1
    %p147 = scmp.eq.s32.totalorder %s13, 1
    %p148 = scmp.ne.s32.totalorder %s143, %s145
    %p149 = scmp.eq.s32.totalorder %s13, 0
    %p150 = por %p148, %p149
    %p151 = scmp.ne.s32.totalorder %s143, %s145
    %p152 = scmp.eq.s32.totalorder %s18, 1
    %p153 = por %p151, %p152
    %p154 = scmp.ne.s32.totalorder %s145, %s146
    %p155 = scmp.eq.s32.totalorder %s18, 0
    %p156 = por %p154, %p155
    %p157 = scmp.ne.s32.totalorder %s145, %s146
    %p158 = scmp.eq.s32.totalorder %s19, 1
    %p159 = por %p157, %p158
    %p161 = scmp.ne.s32.totalorder %s146, %s160
    %p162 = scmp.eq.s32.totalorder %s19, 0
    %p163 = por %p161, %p162
    %s165 = sadd.s32 %s164, 1
    %p168 = scmp.eq.s32.totalorder %s13, 1
    %p169 = scmp.ne.s32.totalorder %s164, %s166
    %p170 = scmp.eq.s32.totalorder %s13, 0
    %p171 = por %p169, %p170
    %p172 = scmp.ne.s32.totalorder %s164, %s166
    %p173 = scmp.eq.s32.totalorder %s18, 1
    %p174 = por %p172, %p173
    %p175 = scmp.ne.s32.totalorder %s166, %s167
    %p176 = scmp.eq.s32.totalorder %s18, 0
    %p177 = por %p175, %p176
    %p178 = scmp.ne.s32.totalorder %s166, %s167
    %p179 = scmp.eq.s32.totalorder %s19, 1
    %p180 = por %p178, %p179
    %p182 = scmp.ne.s32.totalorder %s167, %s181
    %p183 = scmp.eq.s32.totalorder %s19, 0
    %p184 = por %p182, %p183
    %s185 = ssub.s32 %s20, %s32
    %s186 = ssub.s32 %s21, %s28
    %s187 = sor.u32 %s185, %s186
    %p188 = scmp.eq.s32.totalorder %s187, 0
    %s190 = sadd.s32 %s189, 1
    %s191 = scalar_select %p188, %s189, %s190
    %p194 = pneg %p188
    %p195 = scmp.eq.s32.totalorder %s13, 1
    %p196 = por %p194, %p195
    %p197 = scmp.ne.s32.totalorder %s189, %s192
    %p198 = scmp.eq.s32.totalorder %s13, 0
    %p199 = por %p197, %p198
    %p200 = scmp.ne.s32.totalorder %s189, %s192
    %p201 = scmp.eq.s32.totalorder %s18, 1
    %p202 = por %p200, %p201
    %p203 = scmp.ne.s32.totalorder %s192, %s193
    %p204 = scmp.eq.s32.totalorder %s18, 0
    %p205 = por %p203, %p204
    %p206 = scmp.ne.s32.totalorder %s192, %s193
    %p207 = scmp.eq.s32.totalorder %s19, 1
    %p208 = por %p206, %p207
    %p210 = scmp.ne.s32.totalorder %s193, %s209
    %p211 = scmp.eq.s32.totalorder %s19, 0
    %p212 = por %p210, %p211
    %p213 = scmp.le.s32.totalorder 1, %s13
    %p214 = scmp.lt.s32.totalorder %s13, 3
    %p215 = pnand %p213, %p214
    %p216 = pneg %p215
    // Predicated region
    $region9: #{inverted_residual_forward.1} parent=5 // pred_check
      _
    $region10: #{inverted_residual_forward.1} parent=5 // pred_check_branch
      %218 = sbr.rel (%p215) target = $region12
    $region11: #{inverted_residual_forward.1} parent=5 // pred_region
      %s219 = ssub.s32 %s13, 1
      // Predicated region
      $region13: #{inverted_residual_forward.1} parent=11 // pred_check
        %p220 = pneg %p72
      $region14: #{inverted_residual_forward.1} parent=11 // pred_check_branch
        %222 = sbr.rel (%p220) target = $region16
      $region15: #{inverted_residual_forward.1} parent=11 // pred_region
        _
      $region16: #{inverted_residual_forward.1} parent=11 // pred_fallthru
        _
      // Predicated region
      $region17: #{inverted_residual_forward.1} parent=11 // pred_check
        %p223 = pneg %p93
      $region18: #{inverted_residual_forward.1} parent=11 // pred_check_branch
        %225 = sbr.rel (%p223) target = $region20
      $region19: #{inverted_residual_forward.1} parent=11 // pred_region
        _
      $region20: #{inverted_residual_forward.1} parent=11 // pred_fallthru
        _
      // Predicated region
      $region21: #{inverted_residual_forward.1} parent=11 // pred_check
        %p226 = pneg %p114
      $region22: #{inverted_residual_forward.1} parent=11 // pred_check_branch
        %228 = sbr.rel (%p226) target = $region24
      $region23: #{inverted_residual_forward.1} parent=11 // pred_region
        _
      $region24: #{inverted_residual_forward.1} parent=11 // pred_fallthru
        _
      // Predicated region
      $region25: #{inverted_residual_forward.1} parent=11 // pred_check
        %p229 = pneg %p135
      $region26: #{inverted_residual_forward.1} parent=11 // pred_check_branch
        %231 = sbr.rel (%p229) target = $region28
      $region27: #{inverted_residual_forward.1} parent=11 // pred_region
        _
      $region28: #{inverted_residual_forward.1} parent=11 // pred_fallthru
        _
      // Predicated region
      $region29: #{inverted_residual_forward.1} parent=11 // pred_check
        %p232 = pneg %p156
      $region30: #{inverted_residual_forward.1} parent=11 // pred_check_branch
        %234 = sbr.rel (%p232) target = $region32
      $region31: #{inverted_residual_forward.1} parent=11 // pred_region
        _
      $region32: #{inverted_residual_forward.1} parent=11 // pred_fallthru
        _
      // Predicated region
      $region33: #{inverted_residual_forward.1} parent=11 // pred_check
        %p235 = pneg %p177
      $region34: #{inverted_residual_forward.1} parent=11 // pred_check_branch
        %237 = sbr.rel (%p235) target = $region36
      $region35: #{inverted_residual_forward.1} parent=11 // pred_region
        _
      $region36: #{inverted_residual_forward.1} parent=11 // pred_fallthru
        _
    $region12: #{inverted_residual_forward.1} parent=5 // pred_fallthru
      _
    %p238 = scmp.lt.s32.totalorder %s13, 2
    // Predicated region
    $region37: #{inverted_residual_forward.1} parent=5 // pred_check
      %p239 = pneg %p238
    $region38: #{inverted_residual_forward.1} parent=5 // pred_check_branch
      %241 = sbr.rel (%p239) target = $region40
    $region39: #{inverted_residual_forward.1} parent=5 // pred_region
      // Predicated region
      $region41: #{inverted_residual_forward.1} parent=39 // pred_check
        %p242 = pneg %p45
      $region42: #{inverted_residual_forward.1} parent=39 // pred_check_branch
        %244 = sbr.rel (%p242) target = $region44
      $region43: #{inverted_residual_forward.1} parent=39 // pred_region
        %p245 = scmp.lt.s32.totalorder %s20, 1
        %s246 = scalar_select %p245, %s20, 1
        %s247 = smul.addr %s246, 32
        %s248 = smul.addr %s247, 4
        %s249 = scalar_lea.vmem %s0, %s248
      $region44: #{inverted_residual_forward.1} parent=39 // pred_fallthru
        _
    $region40: #{inverted_residual_forward.1} parent=5 // pred_fallthru
      _
    %p250 = scmp.le.s32.totalorder 1, %s13
    %p251 = scmp.lt.s32.totalorder %s13, 3
    %p252 = pnand %p250, %p251
    %p253 = pneg %p252
    // Predicated region
    $region45: #{inverted_residual_forward.1} parent=5 // pred_check
      _
    $region46: #{inverted_residual_forward.1} parent=5 // pred_check_branch
      %255 = sbr.rel (%p252) target = $region48
    $region47: #{inverted_residual_forward.1} parent=5 // pred_region
      %s256 = ssub.s32 %s13, 1
      %p257 = scmp.lt.s32.totalorder %s22, 1
      %s258 = scalar_select %p257, %s22, 1
      %s259 = smul.addr %s258, 32
      %s260 = smul.addr %s259, 4
      %s261 = scalar_lea.vmem %s0, %s260
      %p262 = pneg %p51
      %p263 = pneg %p48
      %p264 = pneg %p72
      %p265 = pneg %p69
      %p266 = pneg %p93
      %p267 = pneg %p90
      %p268 = pneg %p114
      %p269 = pneg %p111
      %p270 = pneg %p135
      %p271 = pneg %p132
      %p272 = pneg %p156
      %p273 = pneg %p153
      %p274 = pneg %p177
      %p275 = pneg %p174
      %p276 = pneg %p205
      %p277 = pneg %p202
      %s278 = smul.u32 16, %s23
      %p279 = scmp.lt.s32.totalorder %s22, 1
      %s280 = scalar_select %p279, %s22, 1
      %p281 = scmp.lt.s32.totalorder %s278, 15
      %s282 = scalar_select %p281, %s278, 15
      %s283 = smul.addr %s282, 2
      %s284 = smul.addr %s280, 32
      %s285 = sadd.s32 %s283, %s284
      %s286 = smul.addr %s285, 8
      %s287 = scalar_lea.vmem %s7, %s286
      %p288 = scmp.lt.s32.totalorder %s22, 1
      %s289 = scalar_select %p288, %s22, 1
      %s290 = smul.addr %s289, 32
      %s291 = smul.addr %s290, 4
      %s292 = scalar_lea.vmem %s0, %s291
      %s293 = smul.u32 16, %s23
      %p294 = scmp.lt.s32.totalorder %s22, 1
      %s295 = scalar_select %p294, %s22, 1
      %p296 = scmp.lt.s32.totalorder %s293, 15
      %s297 = scalar_select %p296, %s293, 15
      %s298 = smul.addr %s297, 2
      %s299 = smul.addr %s295, 32
      %s300 = sadd.s32 %s298, %s299
      %s301 = smul.addr %s300, 8
      %s302 = scalar_lea.vmem %s7, %s301
      %s303 = smul.u32 16, %s23
      %s305 = smul.u32 %s23, 16
      %s306 = smul.u32 %s305, 2
      %s307 = smul.addr %s306, 4
      %s308 = scalar_lea.vmem %s292, %s307
      %v309 = vld [vmem:[%s308] sm:$0xf]
      %v310 = vld [vmem:[%s308 + $0x4] sm:$0xf]
      %v311 = vld [vmem:[%s308 + $0x8] sm:$0xf]
      %v312 = vld [vmem:[%s308 + $0xc] sm:$0xf]
      %v313 = vld [vmem:[%s308 + $0x10] sm:$0xf]
      %v314 = vld [vmem:[%s308 + $0x14] sm:$0xf]
      %v315 = vld [vmem:[%s308 + $0x18] sm:$0xf]
      %v316 = vld [vmem:[%s308 + $0x1c] sm:$0xf]
      %v317 = vld [vmem:[%s308 + $0x20] sm:$0xf]
      %v318 = vld [vmem:[%s308 + $0x24] sm:$0xf]
      %v319 = vld [vmem:[%s308 + $0x28] sm:$0xf]
      %v320 = vld [vmem:[%s308 + $0x2c] sm:$0xf]
      %v321 = vld [vmem:[%s308 + $0x30] sm:$0xf]
      %v322 = vld [vmem:[%s308 + $0x34] sm:$0xf]
      %v323 = vld [vmem:[%s308 + $0x38] sm:$0xf]
      %v324 = vld [vmem:[%s308 + $0x3c] sm:$0xf]
      %v325 = vld [vmem:[%s308 + $0x40] sm:$0xf]
      %v326 = vld [vmem:[%s308 + $0x44] sm:$0xf]
      %v327 = vld [vmem:[%s308 + $0x48] sm:$0xf]
      %v328 = vld [vmem:[%s308 + $0x4c] sm:$0xf]
      %v329 = vld [vmem:[%s308 + $0x50] sm:$0xf]
      %v330 = vld [vmem:[%s308 + $0x54] sm:$0xf]
      %v331 = vld [vmem:[%s308 + $0x58] sm:$0xf]
      %v332 = vld [vmem:[%s308 + $0x5c] sm:$0xf]
      %v333 = vld [vmem:[%s308 + $0x60] sm:$0xf]
      %v334 = vld [vmem:[%s308 + $0x64] sm:$0xf]
      %v335 = vld [vmem:[%s308 + $0x68] sm:$0xf]
      %v336 = vld [vmem:[%s308 + $0x6c] sm:$0xf]
      %v337 = vld [vmem:[%s308 + $0x70] sm:$0xf]
      %v338 = vld [vmem:[%s308 + $0x74] sm:$0xf]
      %v339 = vld [vmem:[%s308 + $0x78] sm:$0xf]
      %v340 = vld [vmem:[%s308 + $0x7c] sm:$0xf]
      %v341 = vld [vmem:[%s1] sm:$0xf]
      %v342 = vld [vmem:[%s1 + $0x4] sm:$0xf]
      %v343 = vld [vmem:[%s1 + $0x8] sm:$0xf]
      %v344 = vld [vmem:[%s1 + $0xc] sm:$0xf]
      %v345 = vld [vmem:[%s1 + $0x10] sm:$0xf]
      %v346 = vld [vmem:[%s1 + $0x14] sm:$0xf]
      %v347 = vld [vmem:[%s1 + $0x18] sm:$0xf]
      %v348 = vld [vmem:[%s1 + $0x1c] sm:$0xf]
      %v349 = vld [vmem:[%s1 + $0x20] sm:$0xf]
      %v350 = vld [vmem:[%s1 + $0x24] sm:$0xf]
      %v351 = vld [vmem:[%s1 + $0x28] sm:$0xf]
      %v352 = vld [vmem:[%s1 + $0x2c] sm:$0xf]
      %v353 = vld [vmem:[%s1 + $0x30] sm:$0xf]
      %v354 = vld [vmem:[%s1 + $0x34] sm:$0xf]
      %v355 = vld [vmem:[%s1 + $0x38] sm:$0xf]
      %v356 = vld [vmem:[%s1 + $0x3c] sm:$0xf]
      %v357 = vld [vmem:[%s2] sm:$0x1]
      %v359 = vlaneseq
      %v360 = vshrl.u32 %v359, 7
      %v361 = vsub.s32 0, %v360
      %v362 = vrot.slane %v357, %v361
      %v396 = vunpack.c.l.b16 %v309
      %v397 = vunpack.c.l.b16 %v310
      %v398 = vunpack.c.l.b16 %v311
      %v399 = vunpack.c.l.b16 %v312
      %v400 = vunpack.c.l.b16 %v313
      %v401 = vunpack.c.l.b16 %v314
      %v402 = vunpack.c.l.b16 %v315
      %v403 = vunpack.c.l.b16 %v316
      %v404 = vunpack.c.l.b16 %v317
      %v405 = vunpack.c.l.b16 %v318
      %v406 = vunpack.c.l.b16 %v319
      %v407 = vunpack.c.l.b16 %v320
      %v408 = vunpack.c.l.b16 %v321
      %v409 = vunpack.c.l.b16 %v322
      %v410 = vunpack.c.l.b16 %v323
      %v411 = vunpack.c.l.b16 %v324
      %v412 = vunpack.c.l.b16 %v325
      %v413 = vunpack.c.l.b16 %v326
      %v414 = vunpack.c.l.b16 %v327
      %v415 = vunpack.c.l.b16 %v328
      %v416 = vunpack.c.l.b16 %v329
      %v417 = vunpack.c.l.b16 %v330
      %v418 = vunpack.c.l.b16 %v331
      %v419 = vunpack.c.l.b16 %v332
      %v420 = vunpack.c.l.b16 %v333
      %v421 = vunpack.c.l.b16 %v334
      %v422 = vunpack.c.l.b16 %v335
      %v423 = vunpack.c.l.b16 %v336
      %v424 = vunpack.c.l.b16 %v337
      %v425 = vunpack.c.l.b16 %v338
      %v426 = vunpack.c.l.b16 %v339
      %v427 = vunpack.c.l.b16 %v340
      %v428 = vpack.c.b16 %v397, %v396
      %v429 = vpack.c.b16 %v399, %v398
      %v430 = vpack.c.b16 %v401, %v400
      %v431 = vpack.c.b16 %v403, %v402
      %v432 = vpack.c.b16 %v405, %v404
      %v433 = vpack.c.b16 %v407, %v406
      %v434 = vpack.c.b16 %v409, %v408
      %v435 = vpack.c.b16 %v411, %v410
      %v436 = vpack.c.b16 %v413, %v412
      %v437 = vpack.c.b16 %v415, %v414
      %v438 = vpack.c.b16 %v417, %v416
      %v439 = vpack.c.b16 %v419, %v418
      %v440 = vpack.c.b16 %v421, %v420
      %v441 = vpack.c.b16 %v423, %v422
      %v442 = vpack.c.b16 %v425, %v424
      %v443 = vpack.c.b16 %v427, %v426
      %v476 = vunpack.c.l.b16 %v341
      %v477 = vunpack.c.l.b16 %v342
      %v478 = vunpack.c.l.b16 %v343
      %v479 = vunpack.c.l.b16 %v344
      %v480 = vunpack.c.l.b16 %v345
      %v481 = vunpack.c.l.b16 %v346
      %v482 = vunpack.c.l.b16 %v347
      %v483 = vunpack.c.l.b16 %v348
      %v484 = vunpack.c.l.b16 %v349
      %v485 = vunpack.c.l.b16 %v350
      %v486 = vunpack.c.l.b16 %v351
      %v487 = vunpack.c.l.b16 %v352
      %v488 = vunpack.c.l.b16 %v353
      %v489 = vunpack.c.l.b16 %v354
      %v490 = vunpack.c.l.b16 %v355
      %v491 = vunpack.c.l.b16 %v356
      %v492 = vpack.c.b16 %v477, %v476
      %v493 = vpack.c.b16 %v479, %v478
      %v494 = vpack.c.b16 %v481, %v480
      %v495 = vpack.c.b16 %v483, %v482
      %v496 = vpack.c.b16 %v485, %v484
      %v497 = vpack.c.b16 %v487, %v486
      %v498 = vpack.c.b16 %v489, %v488
      %v499 = vpack.c.b16 %v491, %v490
      %508 = vmatprep.subr.bf16.mxu0 0
      %509 = vmatpush1.bf16.msra.mxu0 %v492
      %510 = vmatprep.subr.bf16.mxu0 0
      %511 = vmatpush1.bf16.msra.mxu0 %v493
      %512 = vmatprep.subr.bf16.mxu0 0
      %513 = vmatpush1.bf16.msra.mxu0 %v494
      %514 = vmatprep.subr.bf16.mxu0 0
      %515 = vmatpush1.bf16.msra.mxu0 %v495
      %516 = vmatprep.subr.bf16.mxu0 0
      %517 = vmatpush1.bf16.msra.mxu0 %v496
      %518 = vmatprep.subr.bf16.mxu0 0
      %519 = vmatpush1.bf16.msra.mxu0 %v497
      %520 = vmatprep.subr.bf16.mxu0 0
      %521 = vmatpush1.bf16.msra.mxu0 %v498
      %522 = vmatprep.subr.bf16.mxu0 0
      %523 = vmatpush1.bf16.msra.mxu0 %v499
      %524 = vmatprep.subr.bf16.mxu0 0
      %525 = vmatpush1.bf16.msra.mxu0 0
      %526 = vmatprep.subr.bf16.mxu0 0
      %527 = vmatpush1.bf16.msra.mxu0 0
      %528 = vmatprep.subr.bf16.mxu0 0
      %529 = vmatpush1.bf16.msra.mxu0 0
      %530 = vmatprep.subr.bf16.mxu0 0
      %531 = vmatpush1.bf16.msra.mxu0 0
      %532 = vmatprep.subr.bf16.mxu0 0
      %533 = vmatpush1.bf16.msra.mxu0 0
      %534 = vmatprep.subr.bf16.mxu0 0
      %535 = vmatpush1.bf16.msra.mxu0 0
      %536 = vmatprep.subr.bf16.mxu0 0
      %537 = vmatpush1.bf16.msra.mxu0 0
      %538 = vmatprep.subr.bf16.mxu0 0
      %539 = vmatpush1.bf16.msra.mxu0 0
      %540 = vmatprep.mubr.bf16.mxu0 0
      %541 = vmatmul.mubr.bf16.gmra.mrb[0].mxu0 %v428
      %v542 = vpop.f32.mrb[0].mxu0
      %v543 = vadd.f32 %v362, %v542
      %v544 = vpop.f32.mrb[0].mxu0
      %v545 = vpop.f32.mrb[0].mxu0
      %v546 = vadd.f32 %v362, %v545
      %v547 = vpop.f32.mrb[0].mxu0
      %548 = vmatprep.mubr.bf16.mxu0 0
      %549 = vmatmul.mubr.bf16.gmra.mrb[0].mxu0 %v429
      %v550 = vpop.f32.mrb[0].mxu0
      %v551 = vadd.f32 %v362, %v550
      %v552 = vpop.f32.mrb[0].mxu0
      %v553 = vpop.f32.mrb[0].mxu0
      %v554 = vadd.f32 %v362, %v553
      %v555 = vpop.f32.mrb[0].mxu0
      %556 = vmatprep.mubr.bf16.mxu0 0
      %557 = vmatmul.mubr.bf16.gmra.mrb[0].mxu0 %v430
      %v558 = vpop.f32.mrb[0].mxu0
      %v559 = vadd.f32 %v362, %v558
      %v560 = vpop.f32.mrb[0].mxu0
      %v561 = vpop.f32.mrb[0].mxu0
      %v562 = vadd.f32 %v362, %v561
      %v563 = vpop.f32.mrb[0].mxu0
      %564 = vmatprep.mubr.bf16.mxu0 0
      %565 = vmatmul.mubr.bf16.gmra.mrb[0].mxu0 %v431
      %v566 = vpop.f32.mrb[0].mxu0
      %v567 = vadd.f32 %v362, %v566
      %v568 = vpop.f32.mrb[0].mxu0
      %v569 = vpop.f32.mrb[0].mxu0
      %v570 = vadd.f32 %v362, %v569
      %v571 = vpop.f32.mrb[0].mxu0
      %572 = vmatprep.mubr.bf16.mxu0 0
      %573 = vmatmul.mubr.bf16.gmra.mrb[0].mxu0 %v432
      %v574 = vpop.f32.mrb[0].mxu0
      %v575 = vadd.f32 %v362, %v574
      %v576 = vpop.f32.mrb[0].mxu0
      %v577 = vpop.f32.mrb[0].mxu0
      %v578 = vadd.f32 %v362, %v577
      %v579 = vpop.f32.mrb[0].mxu0
      %580 = vmatprep.mubr.bf16.mxu0 0
      %581 = vmatmul.mubr.bf16.gmra.mrb[0].mxu0 %v433
      %v582 = vpop.f32.mrb[0].mxu0
      %v583 = vadd.f32 %v362, %v582
      %v584 = vpop.f32.mrb[0].mxu0
      %v585 = vpop.f32.mrb[0].mxu0
      %v586 = vadd.f32 %v362, %v585
      %v587 = vpop.f32.mrb[0].mxu0
      %588 = vmatprep.mubr.bf16.mxu0 0
      %589 = vmatmul.mubr.bf16.gmra.mrb[0].mxu0 %v434
      %v590 = vpop.f32.mrb[0].mxu0
      %v591 = vadd.f32 %v362, %v590
      %v592 = vpop.f32.mrb[0].mxu0
      %v593 = vpop.f32.mrb[0].mxu0
      %v594 = vadd.f32 %v362, %v593
      %v595 = vpop.f32.mrb[0].mxu0
      %596 = vmatprep.mubr.bf16.mxu0 0
      %597 = vmatmul.mubr.bf16.gmra.mrb[0].mxu0 %v435
      %v598 = vpop.f32.mrb[0].mxu0
      %v599 = vadd.f32 %v362, %v598
      %v600 = vpop.f32.mrb[0].mxu0
      %v601 = vpop.f32.mrb[0].mxu0
      %v602 = vadd.f32 %v362, %v601
      %v603 = vpop.f32.mrb[0].mxu0
      %604 = vmatprep.mubr.bf16.mxu0 0
      %605 = vmatmul.mubr.bf16.gmra.mrb[0].mxu0 %v436
      %v606 = vpop.f32.mrb[0].mxu0
      %v607 = vadd.f32 %v362, %v606
      %v608 = vpop.f32.mrb[0].mxu0
      %v609 = vpop.f32.mrb[0].mxu0
      %v610 = vadd.f32 %v362, %v609
      %v611 = vpop.f32.mrb[0].mxu0
      %612 = vmatprep.mubr.bf16.mxu0 0
      %613 = vmatmul.mubr.bf16.gmra.mrb[0].mxu0 %v437
      %v614 = vpop.f32.mrb[0].mxu0
      %v615 = vadd.f32 %v362, %v614
      %v616 = vpop.f32.mrb[0].mxu0
      %v617 = vpop.f32.mrb[0].mxu0
      %v618 = vadd.f32 %v362, %v617
      %v619 = vpop.f32.mrb[0].mxu0
      %620 = vmatprep.mubr.bf16.mxu0 0
      %621 = vmatmul.mubr.bf16.gmra.mrb[0].mxu0 %v438
      %v622 = vpop.f32.mrb[0].mxu0
      %v623 = vadd.f32 %v362, %v622
      %v624 = vpop.f32.mrb[0].mxu0
      %v625 = vpop.f32.mrb[0].mxu0
      %v626 = vadd.f32 %v362, %v625
      %v627 = vpop.f32.mrb[0].mxu0
      %628 = vmatprep.mubr.bf16.mxu0 0
      %629 = vmatmul.mubr.bf16.gmra.mrb[0].mxu0 %v439
      %v630 = vpop.f32.mrb[0].mxu0
      %v631 = vadd.f32 %v362, %v630
      %v632 = vpop.f32.mrb[0].mxu0
      %v633 = vpop.f32.mrb[0].mxu0
      %v634 = vadd.f32 %v362, %v633
      %v635 = vpop.f32.mrb[0].mxu0
      %636 = vmatprep.mubr.bf16.mxu0 0
      %637 = vmatmul.mubr.bf16.gmra.mrb[0].mxu0 %v440
      %v638 = vpop.f32.mrb[0].mxu0
      %v639 = vadd.f32 %v362, %v638
      %v640 = vpop.f32.mrb[0].mxu0
      %v641 = vpop.f32.mrb[0].mxu0
      %v642 = vadd.f32 %v362, %v641
      %v643 = vpop.f32.mrb[0].mxu0
      %644 = vmatprep.mubr.bf16.mxu0 0
      %645 = vmatmul.mubr.bf16.gmra.mrb[0].mxu0 %v441
      %v646 = vpop.f32.mrb[0].mxu0
      %v647 = vadd.f32 %v362, %v646
      %v648 = vpop.f32.mrb[0].mxu0
      %v649 = vpop.f32.mrb[0].mxu0
      %v650 = vadd.f32 %v362, %v649
      %v651 = vpop.f32.mrb[0].mxu0
      %652 = vmatprep.mubr.bf16.mxu0 0
      %653 = vmatmul.mubr.bf16.gmra.mrb[0].mxu0 %v442
      %v654 = vpop.f32.mrb[0].mxu0
      %v655 = vadd.f32 %v362, %v654
      %v656 = vpop.f32.mrb[0].mxu0
      %v657 = vpop.f32.mrb[0].mxu0
      %v658 = vadd.f32 %v362, %v657
      %v659 = vpop.f32.mrb[0].mxu0
      %660 = vmatprep.mubr.bf16.mxu0 0
      %661 = vmatmul.mubr.bf16.gmra.mrb[0].mxu0 %v443
      %v662 = vpop.f32.mrb[0].mxu0
      %v663 = vadd.f32 %v362, %v662
      %v664 = vpop.f32.mrb[0].mxu0
      %v665 = vpop.f32.mrb[0].mxu0
      %v666 = vadd.f32 %v362, %v665
      %v667 = vpop.f32.mrb[0].mxu0
      %668 = vdwg.mxu0
      %v669 = vmax.f32 %v543, 0.0
      %v670 = vmax.f32 %v546, 0.0
      %v671 = vmax.f32 %v551, 0.0
      %v672 = vmax.f32 %v554, 0.0
      %v673 = vmax.f32 %v559, 0.0
      %v674 = vmax.f32 %v562, 0.0
      %v675 = vmax.f32 %v567, 0.0
      %v676 = vmax.f32 %v570, 0.0
      %v677 = vmax.f32 %v575, 0.0
      %v678 = vmax.f32 %v578, 0.0
      %v679 = vmax.f32 %v583, 0.0
      %v680 = vmax.f32 %v586, 0.0
      %v681 = vmax.f32 %v591, 0.0
      %v682 = vmax.f32 %v594, 0.0
      %v683 = vmax.f32 %v599, 0.0
      %v684 = vmax.f32 %v602, 0.0
      %v685 = vmax.f32 %v607, 0.0
      %v686 = vmax.f32 %v610, 0.0
      %v687 = vmax.f32 %v615, 0.0
      %v688 = vmax.f32 %v618, 0.0
      %v689 = vmax.f32 %v623, 0.0
      %v690 = vmax.f32 %v626, 0.0
      %v691 = vmax.f32 %v631, 0.0
      %v692 = vmax.f32 %v634, 0.0
      %v693 = vmax.f32 %v639, 0.0
      %v694 = vmax.f32 %v642, 0.0
      %v695 = vmax.f32 %v647, 0.0
      %v696 = vmax.f32 %v650, 0.0
      %v697 = vmax.f32 %v655, 0.0
      %v698 = vmax.f32 %v658, 0.0
      %v699 = vmax.f32 %v663, 0.0
      %v700 = vmax.f32 %v666, 0.0
      %v701 = vmin.f32 %v669, 6.0
      %v702 = vmin.f32 %v670, 6.0
      %v703 = vmin.f32 %v671, 6.0
      %v704 = vmin.f32 %v672, 6.0
      %v705 = vmin.f32 %v673, 6.0
      %v706 = vmin.f32 %v674, 6.0
      %v707 = vmin.f32 %v675, 6.0
      %v708 = vmin.f32 %v676, 6.0
      %v709 = vmin.f32 %v677, 6.0
      %v710 = vmin.f32 %v678, 6.0
      %v711 = vmin.f32 %v679, 6.0
      %v712 = vmin.f32 %v680, 6.0
      %v713 = vmin.f32 %v681, 6.0
      %v714 = vmin.f32 %v682, 6.0
      %v715 = vmin.f32 %v683, 6.0
      %v716 = vmin.f32 %v684, 6.0
      %v717 = vmin.f32 %v685, 6.0
      %v718 = vmin.f32 %v686, 6.0
      %v719 = vmin.f32 %v687, 6.0
      %v720 = vmin.f32 %v688, 6.0
      %v721 = vmin.f32 %v689, 6.0
      %v722 = vmin.f32 %v690, 6.0
      %v723 = vmin.f32 %v691, 6.0
      %v724 = vmin.f32 %v692, 6.0
      %v725 = vmin.f32 %v693, 6.0
      %v726 = vmin.f32 %v694, 6.0
      %v727 = vmin.f32 %v695, 6.0
      %v728 = vmin.f32 %v696, 6.0
      %v729 = vmin.f32 %v697, 6.0
      %v730 = vmin.f32 %v698, 6.0
      %v731 = vmin.f32 %v699, 6.0
      %v732 = vmin.f32 %v700, 6.0
      %v733 = vpack.c.bf16 %v702, %v701
      %v734 = vpack.c.bf16 %v704, %v703
      %v735 = vpack.c.bf16 %v706, %v705
      %v736 = vpack.c.bf16 %v708, %v707
      %v737 = vpack.c.bf16 %v710, %v709
      %v738 = vpack.c.bf16 %v712, %v711
      %v739 = vpack.c.bf16 %v714, %v713
      %v740 = vpack.c.bf16 %v716, %v715
      %v741 = vpack.c.bf16 %v718, %v717
      %v742 = vpack.c.bf16 %v720, %v719
      %v743 = vpack.c.bf16 %v722, %v721
      %v744 = vpack.c.bf16 %v724, %v723
      %v745 = vpack.c.bf16 %v726, %v725
      %v746 = vpack.c.bf16 %v728, %v727
      %v747 = vpack.c.bf16 %v730, %v729
      %v748 = vpack.c.bf16 %v732, %v731
      %v765 = vrot.slane %v733, 4
      %v766 = vrot.slane %v734, 4
      %v767 = vrot.slane %v735, 4
      %v768 = vrot.slane %v736, 4
      %v769 = vrot.slane %v737, 4
      %v770 = vrot.slane %v738, 4
      %v771 = vrot.slane %v739, 4
      %v772 = vrot.slane %v740, 4
      %v773 = vrot.slane %v741, 4
      %v774 = vrot.slane %v742, 4
      %v775 = vrot.slane %v743, 4
      %v776 = vrot.slane %v744, 4
      %v777 = vrot.slane %v745, 4
      %v778 = vrot.slane %v746, 4
      %v779 = vrot.slane %v747, 4
      %v780 = vrot.slane %v748, 4
      %s797 = scalar_lea.vmem [#allocation2], 16
      %798 = vst [vmem:[%s797] sm:$0xf0] %v765
      %799 = vst [vmem:[%s797 + $0x8] sm:$0xf] %v765
      %800 = vst [vmem:[%s797 + $0x10] sm:$0xf0] %v766
      %801 = vst [vmem:[%s797 + $0x18] sm:$0xf] %v766
      %802 = vst [vmem:[%s797 + $0x20] sm:$0xf0] %v767
      %803 = vst [vmem:[%s797 + $0x28] sm:$0xf] %v767
      %804 = vst [vmem:[%s797 + $0x30] sm:$0xf0] %v768
      %805 = vst [vmem:[%s797 + $0x38] sm:$0xf] %v768
      %806 = vst [vmem:[%s797 + $0x40] sm:$0xf0] %v769
      %807 = vst [vmem:[%s797 + $0x48] sm:$0xf] %v769
      %808 = vst [vmem:[%s797 + $0x50] sm:$0xf0] %v770
      %809 = vst [vmem:[%s797 + $0x58] sm:$0xf] %v770
      %810 = vst [vmem:[%s797 + $0x60] sm:$0xf0] %v771
      %811 = vst [vmem:[%s797 + $0x68] sm:$0xf] %v771
      %812 = vst [vmem:[%s797 + $0x70] sm:$0xf0] %v772
      %813 = vst [vmem:[%s797 + $0x78] sm:$0xf] %v772
      %814 = vst [vmem:[%s797 + $0x80] sm:$0xf0] %v773
      %815 = vst [vmem:[%s797 + $0x88] sm:$0xf] %v773
      %816 = vst [vmem:[%s797 + $0x90] sm:$0xf0] %v774
      %817 = vst [vmem:[%s797 + $0x98] sm:$0xf] %v774
      %818 = vst [vmem:[%s797 + $0xa0] sm:$0xf0] %v775
      %819 = vst [vmem:[%s797 + $0xa8] sm:$0xf] %v775
      %820 = vst [vmem:[%s797 + $0xb0] sm:$0xf0] %v776
      %821 = vst [vmem:[%s797 + $0xb8] sm:$0xf] %v776
      %822 = vst [vmem:[%s797 + $0xc0] sm:$0xf0] %v777
      %823 = vst [vmem:[%s797 + $0xc8] sm:$0xf] %v777
      %824 = vst [vmem:[%s797 + $0xd0] sm:$0xf0] %v778
      %825 = vst [vmem:[%s797 + $0xd8] sm:$0xf] %v778
      %826 = vst [vmem:[%s797 + $0xe0] sm:$0xf0] %v779
      %827 = vst [vmem:[%s797 + $0xe8] sm:$0xf] %v779
      %828 = vst [vmem:[%s797 + $0xf0] sm:$0xf0] %v780
      %829 = vst [vmem:[%s797 + $0xf8] sm:$0xf] %v780
      %s830 = ssub.s32 %s305, 1
      %p831 = scmp.gt.s32.totalorder %s830, 0
      %s832 = scalar_select %p831, %s830, 0
      %s833 = smul.u32 %s832, 2
      %s834 = smul.addr %s833, 4
      %s835 = scalar_lea.vmem %s292, %s834
      %v836 = vld [vmem:[%s835] sm:$0xf]
      %v837 = vld [vmem:[%s835 + $0x4] sm:$0xf]
      %v838 = vld [vmem:[%s1] sm:$0xf]
      %v839 = vld [vmem:[%s1 + $0x4] sm:$0xf]
      %v840 = vld [vmem:[%s1 + $0x8] sm:$0xf]
      %v841 = vld [vmem:[%s1 + $0xc] sm:$0xf]
      %v842 = vld [vmem:[%s1 + $0x10] sm:$0xf]
      %v843 = vld [vmem:[%s1 + $0x14] sm:$0xf]
      %v844 = vld [vmem:[%s1 + $0x18] sm:$0xf]
      %v845 = vld [vmem:[%s1 + $0x1c] sm:$0xf]
      %v846 = vld [vmem:[%s1 + $0x20] sm:$0xf]
      %v847 = vld [vmem:[%s1 + $0x24] sm:$0xf]
      %v848 = vld [vmem:[%s1 + $0x28] sm:$0xf]
      %v849 = vld [vmem:[%s1 + $0x2c] sm:$0xf]
      %v850 = vld [vmem:[%s1 + $0x30] sm:$0xf]
      %v851 = vld [vmem:[%s1 + $0x34] sm:$0xf]
      %v852 = vld [vmem:[%s1 + $0x38] sm:$0xf]
      %v853 = vld [vmem:[%s1 + $0x3c] sm:$0xf]
      %v854 = vld [vmem:[%s2] sm:$0x1]
      %v856 = vlaneseq
      %v857 = vshrl.u32 %v856, 7
      %v858 = vsub.s32 0, %v857
      %v859 = vrot.slane %v854, %v858
      %v863 = vunpack.c.l.b16 %v836
      %v864 = vunpack.c.l.b16 %v837
      %v865 = vpack.c.b16 %v864, %v863
      %v883 = vunpack.c.l.b16 %v838
      %v884 = vunpack.c.l.b16 %v839
      %v885 = vunpack.c.l.b16 %v840
      %v886 = vunpack.c.l.b16 %v841
      %v887 = vunpack.c.l.b16 %v842
      %v888 = vunpack.c.l.b16 %v843
      %v889 = vunpack.c.l.b16 %v844
      %v890 = vunpack.c.l.b16 %v845
      %v891 = vunpack.c.l.b16 %v846
      %v892 = vunpack.c.l.b16 %v847
      %v893 = vunpack.c.l.b16 %v848
      %v894 = vunpack.c.l.b16 %v849
      %v895 = vunpack.c.l.b16 %v850
      %v896 = vunpack.c.l.b16 %v851
      %v897 = vunpack.c.l.b16 %v852
      %v898 = vunpack.c.l.b16 %v853
      %v899 = vpack.c.b16 %v884, %v883
      %v900 = vpack.c.b16 %v886, %v885
      %v901 = vpack.c.b16 %v888, %v887
      %v902 = vpack.c.b16 %v890, %v889
      %v903 = vpack.c.b16 %v892, %v891
      %v904 = vpack.c.b16 %v894, %v893
      %v905 = vpack.c.b16 %v896, %v895
      %v906 = vpack.c.b16 %v898, %v897
      %915 = vmatprep.subr.bf16.mxu0 0
      %916 = vmatpush1.bf16.msra.mxu0 %v899
      %917 = vmatprep.subr.bf16.mxu0 0
      %918 = vmatpush1.bf16.msra.mxu0 %v900
      %919 = vmatprep.subr.bf16.mxu0 0
      %920 = vmatpush1.bf16.msra.mxu0 %v901
      %921 = vmatprep.subr.bf16.mxu0 0
      %922 = vmatpush1.bf16.msra.mxu0 %v902
      %923 = vmatprep.subr.bf16.mxu0 0
      %924 = vmatpush1.bf16.msra.mxu0 %v903
      %925 = vmatprep.subr.bf16.mxu0 0
      %926 = vmatpush1.bf16.msra.mxu0 %v904
      %927 = vmatprep.subr.bf16.mxu0 0
      %928 = vmatpush1.bf16.msra.mxu0 %v905
      %929 = vmatprep.subr.bf16.mxu0 0
      %930 = vmatpush1.bf16.msra.mxu0 %v906
      %931 = vmatprep.subr.bf16.mxu0 0
      %932 = vmatpush1.bf16.msra.mxu0 0
      %933 = vmatprep.subr.bf16.mxu0 0
      %934 = vmatpush1.bf16.msra.mxu0 0
      %935 = vmatprep.subr.bf16.mxu0 0
      %936 = vmatpush1.bf16.msra.mxu0 0
      %937 = vmatprep.subr.bf16.mxu0 0
      %938 = vmatpush1.bf16.msra.mxu0 0
      %939 = vmatprep.subr.bf16.mxu0 0
      %940 = vmatpush1.bf16.msra.mxu0 0
      %941 = vmatprep.subr.bf16.mxu0 0
      %942 = vmatpush1.bf16.msra.mxu0 0
      %943 = vmatprep.subr.bf16.mxu0 0
      %944 = vmatpush1.bf16.msra.mxu0 0
      %945 = vmatprep.subr.bf16.mxu0 0
      %946 = vmatpush1.bf16.msra.mxu0 0
      %947 = vmatprep.mubr.bf16.mxu0 0
      %948 = vmatmul.mubr.bf16.gmra.mrb[0].mxu0 %v865
      %v949 = vpop.f32.mrb[0].mxu0
      %v950 = vadd.f32 %v859, %v949
      %v951 = vpop.f32.mrb[0].mxu0
      %v952 = vpop.f32.mrb[0].mxu0
      %v953 = vadd.f32 %v859, %v952
      %v954 = vpop.f32.mrb[0].mxu0
      %955 = vdwg.mxu0
      %v956 = vmax.f32 %v950, 0.0
      %v957 = vmax.f32 %v953, 0.0
      %v958 = vmin.f32 %v956, 6.0
      %v959 = vmin.f32 %v957, 6.0
      %v960 = vpack.c.bf16 %v959, %v958
      %v962 = vrot.slane %v960, 4
      %964 = vst [vmem:[#allocation2] sm:$0xf0] %v962
      %965 = vst [vmem:[#allocation2 + $0x8] sm:$0xf] %v962
      %s966 = sadd.s32 %s305, 16
      %p967 = scmp.lt.s32.totalorder %s966, 15
      %s968 = scalar_select %p967, %s966, 15
      %s969 = smul.u32 %s968, 2
      %s970 = smul.addr %s969, 4
      %s971 = scalar_lea.vmem %s292, %s970
      %v972 = vld [vmem:[%s971] sm:$0xf]
      %v973 = vld [vmem:[%s971 + $0x4] sm:$0xf]
      %v974 = vld [vmem:[%s1] sm:$0xf]
      %v975 = vld [vmem:[%s1 + $0x4] sm:$0xf]
      %v976 = vld [vmem:[%s1 + $0x8] sm:$0xf]
      %v977 = vld [vmem:[%s1 + $0xc] sm:$0xf]
      %v978 = vld [vmem:[%s1 + $0x10] sm:$0xf]
      %v979 = vld [vmem:[%s1 + $0x14] sm:$0xf]
      %v980 = vld [vmem:[%s1 + $0x18] sm:$0xf]
      %v981 = vld [vmem:[%s1 + $0x1c] sm:$0xf]
      %v982 = vld [vmem:[%s1 + $0x20] sm:$0xf]
      %v983 = vld [vmem:[%s1 + $0x24] sm:$0xf]
      %v984 = vld [vmem:[%s1 + $0x28] sm:$0xf]
      %v985 = vld [vmem:[%s1 + $0x2c] sm:$0xf]
      %v986 = vld [vmem:[%s1 + $0x30] sm:$0xf]
      %v987 = vld [vmem:[%s1 + $0x34] sm:$0xf]
      %v988 = vld [vmem:[%s1 + $0x38] sm:$0xf]
      %v989 = vld [vmem:[%s1 + $0x3c] sm:$0xf]
      %v990 = vld [vmem:[%s2] sm:$0x1]
      %v992 = vlaneseq
      %v993 = vshrl.u32 %v992, 7
      %v994 = vsub.s32 0, %v993
      %v995 = vrot.slane %v990, %v994
      %v999 = vunpack.c.l.b16 %v972
      %v1000 = vunpack.c.l.b16 %v973
      %v1001 = vpack.c.b16 %v1000, %v999
      %v1019 = vunpack.c.l.b16 %v974
      %v1020 = vunpack.c.l.b16 %v975
      %v1021 = vunpack.c.l.b16 %v976
      %v1022 = vunpack.c.l.b16 %v977
      %v1023 = vunpack.c.l.b16 %v978
      %v1024 = vunpack.c.l.b16 %v979
      %v1025 = vunpack.c.l.b16 %v980
      %v1026 = vunpack.c.l.b16 %v981
      %v1027 = vunpack.c.l.b16 %v982
      %v1028 = vunpack.c.l.b16 %v983
      %v1029 = vunpack.c.l.b16 %v984
      %v1030 = vunpack.c.l.b16 %v985
      %v1031 = vunpack.c.l.b16 %v986
      %v1032 = vunpack.c.l.b16 %v987
      %v1033 = vunpack.c.l.b16 %v988
      %v1034 = vunpack.c.l.b16 %v989
      %v1035 = vpack.c.b16 %v1020, %v1019
      %v1036 = vpack.c.b16 %v1022, %v1021
      %v1037 = vpack.c.b16 %v1024, %v1023
      %v1038 = vpack.c.b16 %v1026, %v1025
      %v1039 = vpack.c.b16 %v1028, %v1027
      %v1040 = vpack.c.b16 %v1030, %v1029
      %v1041 = vpack.c.b16 %v1032, %v1031
      %v1042 = vpack.c.b16 %v1034, %v1033
      %1051 = vmatprep.subr.bf16.mxu0 0
      %1052 = vmatpush1.bf16.msra.mxu0 %v1035
      %1053 = vmatprep.subr.bf16.mxu0 0
      %1054 = vmatpush1.bf16.msra.mxu0 %v1036
      %1055 = vmatprep.subr.bf16.mxu0 0
      %1056 = vmatpush1.bf16.msra.mxu0 %v1037
      %1057 = vmatprep.subr.bf16.mxu0 0
      %1058 = vmatpush1.bf16.msra.mxu0 %v1038
      %1059 = vmatprep.subr.bf16.mxu0 0
      %1060 = vmatpush1.bf16.msra.mxu0 %v1039
      %1061 = vmatprep.subr.bf16.mxu0 0
      %1062 = vmatpush1.bf16.msra.mxu0 %v1040
      %1063 = vmatprep.subr.bf16.mxu0 0
      %1064 = vmatpush1.bf16.msra.mxu0 %v1041
      %1065 = vmatprep.subr.bf16.mxu0 0
      %1066 = vmatpush1.bf16.msra.mxu0 %v1042
      %1067 = vmatprep.subr.bf16.mxu0 0
      %1068 = vmatpush1.bf16.msra.mxu0 0
      %1069 = vmatprep.subr.bf16.mxu0 0
      %1070 = vmatpush1.bf16.msra.mxu0 0
      %1071 = vmatprep.subr.bf16.mxu0 0
      %1072 = vmatpush1.bf16.msra.mxu0 0
      %1073 = vmatprep.subr.bf16.mxu0 0
      %1074 = vmatpush1.bf16.msra.mxu0 0
      %1075 = vmatprep.subr.bf16.mxu0 0
      %1076 = vmatpush1.bf16.msra.mxu0 0
      %1077 = vmatprep.subr.bf16.mxu0 0
      %1078 = vmatpush1.bf16.msra.mxu0 0
      %1079 = vmatprep.subr.bf16.mxu0 0
      %1080 = vmatpush1.bf16.msra.mxu0 0
      %1081 = vmatprep.subr.bf16.mxu0 0
      %1082 = vmatpush1.bf16.msra.mxu0 0
      %1083 = vmatprep.mubr.bf16.mxu0 0
      %1084 = vmatmul.mubr.bf16.gmra.mrb[0].mxu0 %v1001
      %v1085 = vpop.f32.mrb[0].mxu0
      %v1086 = vadd.f32 %v995, %v1085
      %v1087 = vpop.f32.mrb[0].mxu0
      %v1088 = vpop.f32.mrb[0].mxu0
      %v1089 = vadd.f32 %v995, %v1088
      %v1090 = vpop.f32.mrb[0].mxu0
      %1091 = vdwg.mxu0
      %v1092 = vmax.f32 %v1086, 0.0
      %v1093 = vmax.f32 %v1089, 0.0
      %v1094 = vmin.f32 %v1092, 6.0
      %v1095 = vmin.f32 %v1093, 6.0
      %v1096 = vpack.c.bf16 %v1095, %v1094
      %v1098 = vrot.slane %v1096, 4
      %s1100 = scalar_lea.vmem [#allocation2], 272
      %1101 = vst [vmem:[%s1100] sm:$0xf0] %v1098
      %1102 = vst [vmem:[%s1100 + $0x8] sm:$0xf] %v1098
      %1103 = vst [vmem:[#allocation2] sm:$0xf] 0
      %1104 = vst [vmem:[#allocation2 + $0x10] sm:$0xf] 0
      %1105 = vst [vmem:[#allocation2 + $0x20] sm:$0xf] 0
      %1106 = vst [vmem:[#allocation2 + $0x30] sm:$0xf] 0
      %1107 = vst [vmem:[#allocation2 + $0x40] sm:$0xf] 0
      %1108 = vst [vmem:[#allocation2 + $0x50] sm:$0xf] 0
      %1109 = vst [vmem:[#allocation2 + $0x60] sm:$0xf] 0
      %1110 = vst [vmem:[#allocation2 + $0x70] sm:$0xf] 0
      %1111 = vst [vmem:[#allocation2 + $0x80] sm:$0xf] 0
      %1112 = vst [vmem:[#allocation2 + $0x90] sm:$0xf] 0
      %1113 = vst [vmem:[#allocation2 + $0xa0] sm:$0xf] 0
      %1114 = vst [vmem:[#allocation2 + $0xb0] sm:$0xf] 0
      %1115 = vst [vmem:[#allocation2 + $0xc0] sm:$0xf] 0
      %1116 = vst [vmem:[#allocation2 + $0xd0] sm:$0xf] 0
      %1117 = vst [vmem:[#allocation2 + $0xe0] sm:$0xf] 0
      %1118 = vst [vmem:[#allocation2 + $0xf0] sm:$0xf] 0
      %1119 = vst [vmem:[#allocation2 + $0x100] sm:$0xf] 0
      %1120 = vst [vmem:[#allocation2 + $0x110] sm:$0xf] 0
      %1121 = vst [vmem:[#allocation2 + $0x8] sm:$0xf0] 0
      %1122 = vst [vmem:[#allocation2 + $0x18] sm:$0xf0] 0
      %1123 = vst [vmem:[#allocation2 + $0x28] sm:$0xf0] 0
      %1124 = vst [vmem:[#allocation2 + $0x38] sm:$0xf0] 0
      %1125 = vst [vmem:[#allocation2 + $0x48] sm:$0xf0] 0
      %1126 = vst [vmem:[#allocation2 + $0x58] sm:$0xf0] 0
      %1127 = vst [vmem:[#allocation2 + $0x68] sm:$0xf0] 0
      %1128 = vst [vmem:[#allocation2 + $0x78] sm:$0xf0] 0
      %1129 = vst [vmem:[#allocation2 + $0x88] sm:$0xf0] 0
      %1130 = vst [vmem:[#allocation2 + $0x98] sm:$0xf0] 0
      %1131 = vst [vmem:[#allocation2 + $0xa8] sm:$0xf0] 0
      %1132 = vst [vmem:[#allocation2 + $0xb8] sm:$0xf0] 0
      %1133 = vst [vmem:[#allocation2 + $0xc8] sm:$0xf0] 0
      %1134 = vst [vmem:[#allocation2 + $0xd8] sm:$0xf0] 0
      %1135 = vst [vmem:[#allocation2 + $0xe8] sm:$0xf0] 0
      %1136 = vst [vmem:[#allocation2 + $0xf8] sm:$0xf0] 0
      %1137 = vst [vmem:[#allocation2 + $0x108] sm:$0xf0] 0
      %1138 = vst [vmem:[#allocation2 + $0x118] sm:$0xf0] 0
      %p1139 = scmp.eq.s32.totalorder %s23, 0
      // Predicated region
      $region49: #{inverted_residual_forward.1} parent=47 // pred_check
        %p1140 = pneg %p1139
      $region50: #{inverted_residual_forward.1} parent=47 // pred_check_branch
        %1142 = sbr.rel (%p1140) target = $region52
      $region51: #{inverted_residual_forward.1} parent=47 // pred_region
        %1143 = vst [vmem:[#allocation2] sm:$0xff] 0
        %1144 = vst [vmem:[#allocation2 + $0x8] sm:$0xff] 0
        %1145 = vst [vmem:[%s1100] sm:$0xff] 0
        %1146 = vst [vmem:[%s1100 + $0x8] sm:$0xff] 0
      $region52: #{inverted_residual_forward.1} parent=47 // pred_fallthru
        _
      %v1147 = vld [vmem:[%s3] sm:$0xff]
      %v1148 = vld [vmem:[%s3 + $0x8] sm:$0x1]
      %v1149 = vld [vmem:[%s4] sm:$0x1]
      %v1150 = vld [vmem:[%s6] sm:$0x1]
      %v1151 = vld [vmem:[#allocation2] sm:$0xf8]
      %v1152 = vld [vmem:[#allocation2 + $0x8] sm:$0xf]
      %v1153 = vld [vmem:[#allocation2 + $0x10] sm:$0xf8]
      %v1154 = vld [vmem:[#allocation2 + $0x18] sm:$0xf]
      %v1155 = vld [vmem:[#allocation2 + $0x20] sm:$0xf8]
      %v1156 = vld [vmem:[#allocation2 + $0x28] sm:$0xf]
      %v1157 = vld [vmem:[#allocation2 + $0x30] sm:$0xf8]
      %v1158 = vld [vmem:[#allocation2 + $0x38] sm:$0xf]
      %v1159 = vld [vmem:[#allocation2 + $0x40] sm:$0xf8]
      %v1160 = vld [vmem:[#allocation2 + $0x48] sm:$0xf]
      %v1161 = vld [vmem:[#allocation2 + $0x50] sm:$0xf8]
      %v1162 = vld [vmem:[#allocation2 + $0x58] sm:$0xf]
      %v1163 = vld [vmem:[#allocation2 + $0x60] sm:$0xf8]
      %v1164 = vld [vmem:[#allocation2 + $0x68] sm:$0xf]
      %v1165 = vld [vmem:[#allocation2 + $0x70] sm:$0xf8]
      %v1166 = vld [vmem:[#allocation2 + $0x78] sm:$0xf]
      %v1167 = vld [vmem:[#allocation2 + $0x80] sm:$0xf8]
      %v1168 = vld [vmem:[#allocation2 + $0x88] sm:$0xf]
      %v1169 = vld [vmem:[#allocation2 + $0x90] sm:$0xf8]
      %v1170 = vld [vmem:[#allocation2 + $0x98] sm:$0xf]
      %v1171 = vld [vmem:[#allocation2 + $0xa0] sm:$0xf8]
      %v1172 = vld [vmem:[#allocation2 + $0xa8] sm:$0xf]
      %v1173 = vld [vmem:[#allocation2 + $0xb0] sm:$0xf8]
      %v1174 = vld [vmem:[#allocation2 + $0xb8] sm:$0xf]
      %v1175 = vld [vmem:[#allocation2 + $0xc0] sm:$0xf8]
      %v1176 = vld [vmem:[#allocation2 + $0xc8] sm:$0xf]
      %v1177 = vld [vmem:[#allocation2 + $0xd0] sm:$0xf8]
      %v1178 = vld [vmem:[#allocation2 + $0xd8] sm:$0xf]
      %v1179 = vld [vmem:[#allocation2 + $0xe0] sm:$0xf8]
      %v1180 = vld [vmem:[#allocation2 + $0xe8] sm:$0xf]
      %v1181 = vld [vmem:[#allocation2 + $0xf0] sm:$0xf8]
      %v1182 = vld [vmem:[#allocation2 + $0xf8] sm:$0xf]
      %v1183 = vunpack.c.l.bf16 %v1151
      %v1184 = vunpack.c.h.bf16 %v1151
      %v1185 = vunpack.c.l.bf16 %v1152
      %v1186 = vunpack.c.l.bf16 %v1153
      %v1187 = vunpack.c.h.bf16 %v1153
      %v1188 = vunpack.c.l.bf16 %v1154
      %v1189 = vunpack.c.l.bf16 %v1155
      %v1190 = vunpack.c.h.bf16 %v1155
      %v1191 = vunpack.c.l.bf16 %v1156
      %v1192 = vunpack.c.l.bf16 %v1157
      %v1193 = vunpack.c.h.bf16 %v1157
      %v1194 = vunpack.c.l.bf16 %v1158
      %v1195 = vunpack.c.l.bf16 %v1159
      %v1196 = vunpack.c.h.bf16 %v1159
      %v1197 = vunpack.c.l.bf16 %v1160
      %v1198 = vunpack.c.l.bf16 %v1161
      %v1199 = vunpack.c.h.bf16 %v1161
      %v1200 = vunpack.c.l.bf16 %v1162
      %v1201 = vunpack.c.l.bf16 %v1163
      %v1202 = vunpack.c.h.bf16 %v1163
      %v1203 = vunpack.c.l.bf16 %v1164
      %v1204 = vunpack.c.l.bf16 %v1165
      %v1205 = vunpack.c.h.bf16 %v1165
      %v1206 = vunpack.c.l.bf16 %v1166
      %v1207 = vunpack.c.l.bf16 %v1167
      %v1208 = vunpack.c.h.bf16 %v1167
      %v1209 = vunpack.c.l.bf16 %v1168
      %v1210 = vunpack.c.l.bf16 %v1169
      %v1211 = vunpack.c.h.bf16 %v1169
      %v1212 = vunpack.c.l.bf16 %v1170
      %v1213 = vunpack.c.l.bf16 %v1171
      %v1214 = vunpack.c.h.bf16 %v1171
      %v1215 = vunpack.c.l.bf16 %v1172
      %v1216 = vunpack.c.l.bf16 %v1173
      %v1217 = vunpack.c.h.bf16 %v1173
      %v1218 = vunpack.c.l.bf16 %v1174
      %v1219 = vunpack.c.l.bf16 %v1175
      %v1220 = vunpack.c.h.bf16 %v1175
      %v1221 = vunpack.c.l.bf16 %v1176
      %v1222 = vunpack.c.l.bf16 %v1177
      %v1223 = vunpack.c.h.bf16 %v1177
      %v1224 = vunpack.c.l.bf16 %v1178
      %v1225 = vunpack.c.l.bf16 %v1179
      %v1226 = vunpack.c.h.bf16 %v1179
      %v1227 = vunpack.c.l.bf16 %v1180
      %v1228 = vunpack.c.l.bf16 %v1181
      %v1229 = vunpack.c.h.bf16 %v1181
      %v1230 = vunpack.c.l.bf16 %v1182
      %v1231 = vlaneseq
      %v1232 = vshrl.u32 %v1231, 7
      %v1233 = vsub.s32 0, %v1232
      %v1234 = vrot.slane %v1147, %v1233
      %v1235 = vmul.f32 %v1183, %v1234
      %v1236 = vmul.f32 %v1184, %v1234
      %v1237 = vmul.f32 %v1185, %v1234
      %v1238 = vmul.f32 %v1186, %v1234
      %v1239 = vmul.f32 %v1187, %v1234
      %v1240 = vmul.f32 %v1188, %v1234
      %v1241 = vmul.f32 %v1189, %v1234
      %v1242 = vmul.f32 %v1190, %v1234
      %v1243 = vmul.f32 %v1191, %v1234
      %v1244 = vmul.f32 %v1192, %v1234
      %v1245 = vmul.f32 %v1193, %v1234
      %v1246 = vmul.f32 %v1194, %v1234
      %v1247 = vmul.f32 %v1195, %v1234
      %v1248 = vmul.f32 %v1196, %v1234
      %v1249 = vmul.f32 %v1197, %v1234
      %v1250 = vmul.f32 %v1198, %v1234
      %v1251 = vmul.f32 %v1199, %v1234
      %v1252 = vmul.f32 %v1200, %v1234
      %v1253 = vmul.f32 %v1201, %v1234
      %v1254 = vmul.f32 %v1202, %v1234
      %v1255 = vmul.f32 %v1203, %v1234
      %v1256 = vmul.f32 %v1204, %v1234
      %v1257 = vmul.f32 %v1205, %v1234
      %v1258 = vmul.f32 %v1206, %v1234
      %v1259 = vmul.f32 %v1207, %v1234
      %v1260 = vmul.f32 %v1208, %v1234
      %v1261 = vmul.f32 %v1209, %v1234
      %v1262 = vmul.f32 %v1210, %v1234
      %v1263 = vmul.f32 %v1211, %v1234
      %v1264 = vmul.f32 %v1212, %v1234
      %v1265 = vmul.f32 %v1213, %v1234
      %v1266 = vmul.f32 %v1214, %v1234
      %v1267 = vmul.f32 %v1215, %v1234
      %v1268 = vmul.f32 %v1216, %v1234
      %v1269 = vmul.f32 %v1217, %v1234
      %v1270 = vmul.f32 %v1218, %v1234
      %v1271 = vmul.f32 %v1219, %v1234
      %v1272 = vmul.f32 %v1220, %v1234
      %v1273 = vmul.f32 %v1221, %v1234
      %v1274 = vmul.f32 %v1222, %v1234
      %v1275 = vmul.f32 %v1223, %v1234
      %v1276 = vmul.f32 %v1224, %v1234
      %v1277 = vmul.f32 %v1225, %v1234
      %v1278 = vmul.f32 %v1226, %v1234
      %v1279 = vmul.f32 %v1227, %v1234
      %v1280 = vmul.f32 %v1228, %v1234
      %v1281 = vmul.f32 %v1229, %v1234
      %v1282 = vmul.f32 %v1230, %v1234
      %v1283 = vld [vmem:[#allocation2] sm:$0xf0]
      %v1284 = vld [vmem:[#allocation2 + $0x10] sm:$0xf0]
      %v1285 = vld [vmem:[#allocation2 + $0x20] sm:$0xf0]
      %v1286 = vld [vmem:[#allocation2 + $0x30] sm:$0xf0]
      %v1287 = vld [vmem:[#allocation2 + $0x40] sm:$0xf0]
      %v1288 = vld [vmem:[#allocation2 + $0x50] sm:$0xf0]
      %v1289 = vld [vmem:[#allocation2 + $0x60] sm:$0xf0]
      %v1290 = vld [vmem:[#allocation2 + $0x70] sm:$0xf0]
      %v1291 = vld [vmem:[#allocation2 + $0x80] sm:$0xf0]
      %v1292 = vld [vmem:[#allocation2 + $0x90] sm:$0xf0]
      %v1293 = vld [vmem:[#allocation2 + $0xa0] sm:$0xf0]
      %v1294 = vld [vmem:[#allocation2 + $0xb0] sm:$0xf0]
      %v1295 = vld [vmem:[#allocation2 + $0xc0] sm:$0xf0]
      %v1296 = vld [vmem:[#allocation2 + $0xd0] sm:$0xf0]
      %v1297 = vld [vmem:[#allocation2 + $0xe0] sm:$0xf0]
      %v1298 = vld [vmem:[#allocation2 + $0xf0] sm:$0xf0]
      %vm1331 = vcmask 1043456
      %v1332 = vrot.slane %v1283, 4
      %v1333 = vrot.slane %v1152, 4
      %v1334 = vsel %vm1331, %v1332, %v1333
      %v1335 = vrot.slane %v1284, 4
      %v1336 = vrot.slane %v1154, 4
      %v1337 = vsel %vm1331, %v1335, %v1336
      %v1338 = vrot.slane %v1285, 4
      %v1339 = vrot.slane %v1156, 4
      %v1340 = vsel %vm1331, %v1338, %v1339
      %v1341 = vrot.slane %v1286, 4
      %v1342 = vrot.slane %v1158, 4
      %v1343 = vsel %vm1331, %v1341, %v1342
      %v1344 = vrot.slane %v1287, 4
      %v1345 = vrot.slane %v1160, 4
      %v1346 = vsel %vm1331, %v1344, %v1345
      %v1347 = vrot.slane %v1288, 4
      %v1348 = vrot.slane %v1162, 4
      %v1349 = vsel %vm1331, %v1347, %v1348
      %v1350 = vrot.slane %v1289, 4
      %v1351 = vrot.slane %v1164, 4
      %v1352 = vsel %vm1331, %v1350, %v1351
      %v1353 = vrot.slane %v1290, 4
      %v1354 = vrot.slane %v1166, 4
      %v1355 = vsel %vm1331, %v1353, %v1354
      %v1356 = vrot.slane %v1291, 4
      %v1357 = vrot.slane %v1168, 4
      %v1358 = vsel %vm1331, %v1356, %v1357
      %v1359 = vrot.slane %v1292, 4
      %v1360 = vrot.slane %v1170, 4
      %v1361 = vsel %vm1331, %v1359, %v1360
      %v1362 = vrot.slane %v1293, 4
      %v1363 = vrot.slane %v1172, 4
      %v1364 = vsel %vm1331, %v1362, %v1363
      %v1365 = vrot.slane %v1294, 4
      %v1366 = vrot.slane %v1174, 4
      %v1367 = vsel %vm1331, %v1365, %v1366
      %v1368 = vrot.slane %v1295, 4
      %v1369 = vrot.slane %v1176, 4
      %v1370 = vsel %vm1331, %v1368, %v1369
      %v1371 = vrot.slane %v1296, 4
      %v1372 = vrot.slane %v1178, 4
      %v1373 = vsel %vm1331, %v1371, %v1372
      %v1374 = vrot.slane %v1297, 4
      %v1375 = vrot.slane %v1180, 4
      %v1376 = vsel %vm1331, %v1374, %v1375
      %v1377 = vrot.slane %v1298, 4
      %v1378 = vrot.slane %v1182, 4
      %v1379 = vsel %vm1331, %v1377, %v1378
      %v1396 = vunpack.c.l.bf16 %v1334
      %v1397 = vunpack.c.h.bf16 %v1334
      %v1398 = vunpack.c.l.bf16 %v1337
      %v1399 = vunpack.c.h.bf16 %v1337
      %v1400 = vunpack.c.l.bf16 %v1340
      %v1401 = vunpack.c.h.bf16 %v1340
      %v1402 = vunpack.c.l.bf16 %v1343
      %v1403 = vunpack.c.h.bf16 %v1343
      %v1404 = vunpack.c.l.bf16 %v1346
      %v1405 = vunpack.c.h.bf16 %v1346
      %v1406 = vunpack.c.l.bf16 %v1349
      %v1407 = vunpack.c.h.bf16 %v1349
      %v1408 = vunpack.c.l.bf16 %v1352
      %v1409 = vunpack.c.h.bf16 %v1352
      %v1410 = vunpack.c.l.bf16 %v1355
      %v1411 = vunpack.c.h.bf16 %v1355
      %v1412 = vunpack.c.l.bf16 %v1358
      %v1413 = vunpack.c.h.bf16 %v1358
      %v1414 = vunpack.c.l.bf16 %v1361
      %v1415 = vunpack.c.h.bf16 %v1361
      %v1416 = vunpack.c.l.bf16 %v1364
      %v1417 = vunpack.c.h.bf16 %v1364
      %v1418 = vunpack.c.l.bf16 %v1367
      %v1419 = vunpack.c.h.bf16 %v1367
      %v1420 = vunpack.c.l.bf16 %v1370
      %v1421 = vunpack.c.h.bf16 %v1370
      %v1422 = vunpack.c.l.bf16 %v1373
      %v1423 = vunpack.c.h.bf16 %v1373
      %v1424 = vunpack.c.l.bf16 %v1376
      %v1425 = vunpack.c.h.bf16 %v1376
      %v1426 = vunpack.c.l.bf16 %v1379
      %v1427 = vunpack.c.h.bf16 %v1379
      %v1428 = vlaneseq
      %v1429 = vshrl.u32 %v1428, 7
      %v1430 = vsub.s32 1, %v1429
      %v1431 = vrot.slane %v1147, %v1430
      %v1432 = vmul.f32 %v1396, %v1431
      %v1433 = vmul.f32 %v1397, %v1431
      %v1434 = vmul.f32 %v1398, %v1431
      %v1435 = vmul.f32 %v1399, %v1431
      %v1436 = vmul.f32 %v1400, %v1431
      %v1437 = vmul.f32 %v1401, %v1431
      %v1438 = vmul.f32 %v1402, %v1431
      %v1439 = vmul.f32 %v1403, %v1431
      %v1440 = vmul.f32 %v1404, %v1431
      %v1441 = vmul.f32 %v1405, %v1431
      %v1442 = vmul.f32 %v1406, %v1431
      %v1443 = vmul.f32 %v1407, %v1431
      %v1444 = vmul.f32 %v1408, %v1431
      %v1445 = vmul.f32 %v1409, %v1431
      %v1446 = vmul.f32 %v1410, %v1431
      %v1447 = vmul.f32 %v1411, %v1431
      %v1448 = vmul.f32 %v1412, %v1431
      %v1449 = vmul.f32 %v1413, %v1431
      %v1450 = vmul.f32 %v1414, %v1431
      %v1451 = vmul.f32 %v1415, %v1431
      %v1452 = vmul.f32 %v1416, %v1431
      %v1453 = vmul.f32 %v1417, %v1431
      %v1454 = vmul.f32 %v1418, %v1431
      %v1455 = vmul.f32 %v1419, %v1431
      %v1456 = vmul.f32 %v1420, %v1431
      %v1457 = vmul.f32 %v1421, %v1431
      %v1458 = vmul.f32 %v1422, %v1431
      %v1459 = vmul.f32 %v1423, %v1431
      %v1460 = vmul.f32 %v1424, %v1431
      %v1461 = vmul.f32 %v1425, %v1431
      %v1462 = vmul.f32 %v1426, %v1431
      %v1463 = vmul.f32 %v1427, %v1431
      %vm1496 = vcmask 1046528
      %v1497 = vrot.slane %v1432, 1
      %v1498 = vrot.slane %v1433, 1
      %v1499 = vsel %vm1496, %v1497, %v1498
      %v1500 = vrot.slane %v1434, 1
      %v1501 = vrot.slane %v1435, 1
      %v1502 = vsel %vm1496, %v1500, %v1501
      %v1503 = vrot.slane %v1436, 1
      %v1504 = vrot.slane %v1437, 1
      %v1505 = vsel %vm1496, %v1503, %v1504
      %v1506 = vrot.slane %v1438, 1
      %v1507 = vrot.slane %v1439, 1
      %v1508 = vsel %vm1496, %v1506, %v1507
      %v1509 = vrot.slane %v1440, 1
      %v1510 = vrot.slane %v1441, 1
      %v1511 = vsel %vm1496, %v1509, %v1510
      %v1512 = vrot.slane %v1442, 1
      %v1513 = vrot.slane %v1443, 1
      %v1514 = vsel %vm1496, %v1512, %v1513
      %v1515 = vrot.slane %v1444, 1
      %v1516 = vrot.slane %v1445, 1
      %v1517 = vsel %vm1496, %v1515, %v1516
      %v1518 = vrot.slane %v1446, 1
      %v1519 = vrot.slane %v1447, 1
      %v1520 = vsel %vm1496, %v1518, %v1519
      %v1521 = vrot.slane %v1448, 1
      %v1522 = vrot.slane %v1449, 1
      %v1523 = vsel %vm1496, %v1521, %v1522
      %v1524 = vrot.slane %v1450, 1
      %v1525 = vrot.slane %v1451, 1
      %v1526 = vsel %vm1496, %v1524, %v1525
      %v1527 = vrot.slane %v1452, 1
      %v1528 = vrot.slane %v1453, 1
      %v1529 = vsel %vm1496, %v1527, %v1528
      %v1530 = vrot.slane %v1454, 1
      %v1531 = vrot.slane %v1455, 1
      %v1532 = vsel %vm1496, %v1530, %v1531
      %v1533 = vrot.slane %v1456, 1
      %v1534 = vrot.slane %v1457, 1
      %v1535 = vsel %vm1496, %v1533, %v1534
      %v1536 = vrot.slane %v1458, 1
      %v1537 = vrot.slane %v1459, 1
      %v1538 = vsel %vm1496, %v1536, %v1537
      %v1539 = vrot.slane %v1460, 1
      %v1540 = vrot.slane %v1461, 1
      %v1541 = vsel %vm1496, %v1539, %v1540
      %v1542 = vrot.slane %v1462, 1
      %v1543 = vrot.slane %v1463, 1
      %v1544 = vsel %vm1496, %v1542, %v1543
      %v1593 = vadd.f32 %v1235, %v1497
      %v1594 = vadd.f32 %v1236, %v1499
      %v1595 = vadd.f32 %v1237, %v1498
      %v1596 = vadd.f32 %v1238, %v1500
      %v1597 = vadd.f32 %v1239, %v1502
      %v1598 = vadd.f32 %v1240, %v1501
      %v1599 = vadd.f32 %v1241, %v1503
      %v1600 = vadd.f32 %v1242, %v1505
      %v1601 = vadd.f32 %v1243, %v1504
      %v1602 = vadd.f32 %v1244, %v1506
      %v1603 = vadd.f32 %v1245, %v1508
      %v1604 = vadd.f32 %v1246, %v1507
      %v1605 = vadd.f32 %v1247, %v1509
      %v1606 = vadd.f32 %v1248, %v1511
      %v1607 = vadd.f32 %v1249, %v1510
      %v1608 = vadd.f32 %v1250, %v1512
      %v1609 = vadd.f32 %v1251, %v1514
      %v1610 = vadd.f32 %v1252, %v1513
      %v1611 = vadd.f32 %v1253, %v1515
      %v1612 = vadd.f32 %v1254, %v1517
      %v1613 = vadd.f32 %v1255, %v1516
      %v1614 = vadd.f32 %v1256, %v1518
      %v1615 = vadd.f32 %v1257, %v1520
      %v1616 = vadd.f32 %v1258, %v1519
      %v1617 = vadd.f32 %v1259, %v1521
      %v1618 = vadd.f32 %v1260, %v1523
      %v1619 = vadd.f32 %v1261, %v1522
      %v1620 = vadd.f32 %v1262, %v1524
      %v1621 = vadd.f32 %v1263, %v1526
      %v1622 = vadd.f32 %v1264, %v1525
      %v1623 = vadd.f32 %v1265, %v1527
      %v1624 = vadd.f32 %v1266, %v1529
      %v1625 = vadd.f32 %v1267, %v1528
      %v1626 = vadd.f32 %v1268, %v1530
      %v1627 = vadd.f32 %v1269, %v1532
      %v1628 = vadd.f32 %v1270, %v1531
      %v1629 = vadd.f32 %v1271, %v1533
      %v1630 = vadd.f32 %v1272, %v1535
      %v1631 = vadd.f32 %v1273, %v1534
      %v1632 = vadd.f32 %v1274, %v1536
      %v1633 = vadd.f32 %v1275, %v1538
      %v1634 = vadd.f32 %v1276, %v1537
      %v1635 = vadd.f32 %v1277, %v1539
      %v1636 = vadd.f32 %v1278, %v1541
      %v1637 = vadd.f32 %v1279, %v1540
      %v1638 = vadd.f32 %v1280, %v1542
      %v1639 = vadd.f32 %v1281, %v1544
      %v1640 = vadd.f32 %v1282, %v1543
      %v1641 = vld [vmem:[#allocation2 + $0x8] sm:$0x1f]
      %v1642 = vld [vmem:[#allocation2 + $0x18] sm:$0x1f]
      %v1643 = vld [vmem:[#allocation2 + $0x28] sm:$0x1f]
      %v1644 = vld [vmem:[#allocation2 + $0x38] sm:$0x1f]
      %v1645 = vld [vmem:[#allocation2 + $0x48] sm:$0x1f]
      %v1646 = vld [vmem:[#allocation2 + $0x58] sm:$0x1f]
      %v1647 = vld [vmem:[#allocation2 + $0x68] sm:$0x1f]
      %v1648 = vld [vmem:[#allocation2 + $0x78] sm:$0x1f]
      %v1649 = vld [vmem:[#allocation2 + $0x88] sm:$0x1f]
      %v1650 = vld [vmem:[#allocation2 + $0x98] sm:$0x1f]
      %v1651 = vld [vmem:[#allocation2 + $0xa8] sm:$0x1f]
      %v1652 = vld [vmem:[#allocation2 + $0xb8] sm:$0x1f]
      %v1653 = vld [vmem:[#allocation2 + $0xc8] sm:$0x1f]
      %v1654 = vld [vmem:[#allocation2 + $0xd8] sm:$0x1f]
      %v1655 = vld [vmem:[#allocation2 + $0xe8] sm:$0x1f]
      %v1656 = vld [vmem:[#allocation2 + $0xf8] sm:$0x1f]
      %v1673 = vrot.slane %v1641, 4
      %v1674 = vsel %vm1331, %v1332, %v1673
      %v1675 = vrot.slane %v1642, 4
      %v1676 = vsel %vm1331, %v1335, %v1675
      %v1677 = vrot.slane %v1643, 4
      %v1678 = vsel %vm1331, %v1338, %v1677
      %v1679 = vrot.slane %v1644, 4
      %v1680 = vsel %vm1331, %v1341, %v1679
      %v1681 = vrot.slane %v1645, 4
      %v1682 = vsel %vm1331, %v1344, %v1681
      %v1683 = vrot.slane %v1646, 4
      %v1684 = vsel %vm1331, %v1347, %v1683
      %v1685 = vrot.slane %v1647, 4
      %v1686 = vsel %vm1331, %v1350, %v1685
      %v1687 = vrot.slane %v1648, 4
      %v1688 = vsel %vm1331, %v1353, %v1687
      %v1689 = vrot.slane %v1649, 4
      %v1690 = vsel %vm1331, %v1356, %v1689
      %v1691 = vrot.slane %v1650, 4
      %v1692 = vsel %vm1331, %v1359, %v1691
      %v1693 = vrot.slane %v1651, 4
      %v1694 = vsel %vm1331, %v1362, %v1693
      %v1695 = vrot.slane %v1652, 4
      %v1696 = vsel %vm1331, %v1365, %v1695
      %v1697 = vrot.slane %v1653, 4
      %v1698 = vsel %vm1331, %v1368, %v1697
      %v1699 = vrot.slane %v1654, 4
      %v1700 = vsel %vm1331, %v1371, %v1699
      %v1701 = vrot.slane %v1655, 4
      %v1702 = vsel %vm1331, %v1374, %v1701
      %v1703 = vrot.slane %v1656, 4
      %v1704 = vsel %vm1331, %v1377, %v1703
      %v1737 = vunpack.c.l.bf16 %v1674
      %v1738 = vunpack.c.h.bf16 %v1674
      %v1739 = vunpack.c.l.bf16 %v1673
      %v1740 = vunpack.c.l.bf16 %v1676
      %v1741 = vunpack.c.h.bf16 %v1676
      %v1742 = vunpack.c.l.bf16 %v1675
      %v1743 = vunpack.c.l.bf16 %v1678
      %v1744 = vunpack.c.h.bf16 %v1678
      %v1745 = vunpack.c.l.bf16 %v1677
      %v1746 = vunpack.c.l.bf16 %v1680
      %v1747 = vunpack.c.h.bf16 %v1680
      %v1748 = vunpack.c.l.bf16 %v1679
      %v1749 = vunpack.c.l.bf16 %v1682
      %v1750 = vunpack.c.h.bf16 %v1682
      %v1751 = vunpack.c.l.bf16 %v1681
      %v1752 = vunpack.c.l.bf16 %v1684
      %v1753 = vunpack.c.h.bf16 %v1684
      %v1754 = vunpack.c.l.bf16 %v1683
      %v1755 = vunpack.c.l.bf16 %v1686
      %v1756 = vunpack.c.h.bf16 %v1686
      %v1757 = vunpack.c.l.bf16 %v1685
      %v1758 = vunpack.c.l.bf16 %v1688
      %v1759 = vunpack.c.h.bf16 %v1688
      %v1760 = vunpack.c.l.bf16 %v1687
      %v1761 = vunpack.c.l.bf16 %v1690
      %v1762 = vunpack.c.h.bf16 %v1690
      %v1763 = vunpack.c.l.bf16 %v1689
      %v1764 = vunpack.c.l.bf16 %v1692
      %v1765 = vunpack.c.h.bf16 %v1692
      %v1766 = vunpack.c.l.bf16 %v1691
      %v1767 = vunpack.c.l.bf16 %v1694
      %v1768 = vunpack.c.h.bf16 %v1694
      %v1769 = vunpack.c.l.bf16 %v1693
      %v1770 = vunpack.c.l.bf16 %v1696
      %v1771 = vunpack.c.h.bf16 %v1696
      %v1772 = vunpack.c.l.bf16 %v1695
      %v1773 = vunpack.c.l.bf16 %v1698
      %v1774 = vunpack.c.h.bf16 %v1698
      %v1775 = vunpack.c.l.bf16 %v1697
      %v1776 = vunpack.c.l.bf16 %v1700
      %v1777 = vunpack.c.h.bf16 %v1700
      %v1778 = vunpack.c.l.bf16 %v1699
      %v1779 = vunpack.c.l.bf16 %v1702
      %v1780 = vunpack.c.h.bf16 %v1702
      %v1781 = vunpack.c.l.bf16 %v1701
      %v1782 = vunpack.c.l.bf16 %v1704
      %v1783 = vunpack.c.h.bf16 %v1704
      %v1784 = vunpack.c.l.bf16 %v1703
      %v1785 = vlaneseq
      %v1786 = vshrl.u32 %v1785, 7
      %v1787 = vsub.s32 2, %v1786
      %v1788 = vrot.slane %v1147, %v1787
      %v1789 = vmul.f32 %v1737, %v1788
      %v1790 = vmul.f32 %v1738, %v1788
      %v1791 = vmul.f32 %v1739, %v1788
      %v1792 = vmul.f32 %v1740, %v1788
      %v1793 = vmul.f32 %v1741, %v1788
      %v1794 = vmul.f32 %v1742, %v1788
      %v1795 = vmul.f32 %v1743, %v1788
      %v1796 = vmul.f32 %v1744, %v1788
      %v1797 = vmul.f32 %v1745, %v1788
      %v1798 = vmul.f32 %v1746, %v1788
      %v1799 = vmul.f32 %v1747, %v1788
      %v1800 = vmul.f32 %v1748, %v1788
      %v1801 = vmul.f32 %v1749, %v1788
      %v1802 = vmul.f32 %v1750, %v1788
      %v1803 = vmul.f32 %v1751, %v1788
      %v1804 = vmul.f32 %v1752, %v1788
      %v1805 = vmul.f32 %v1753, %v1788
      %v1806 = vmul.f32 %v1754, %v1788
      %v1807 = vmul.f32 %v1755, %v1788
      %v1808 = vmul.f32 %v1756, %v1788
      %v1809 = vmul.f32 %v1757, %v1788
      %v1810 = vmul.f32 %v1758, %v1788
      %v1811 = vmul.f32 %v1759, %v1788
      %v1812 = vmul.f32 %v1760, %v1788
      %v1813 = vmul.f32 %v1761, %v1788
      %v1814 = vmul.f32 %v1762, %v1788
      %v1815 = vmul.f32 %v1763, %v1788
      %v1816 = vmul.f32 %v1764, %v1788
      %v1817 = vmul.f32 %v1765, %v1788
      %v1818 = vmul.f32 %v1766, %v1788
      %v1819 = vmul.f32 %v1767, %v1788
      %v1820 = vmul.f32 %v1768, %v1788
      %v1821 = vmul.f32 %v1769, %v1788
      %v1822 = vmul.f32 %v1770, %v1788
      %v1823 = vmul.f32 %v1771, %v1788
      %v1824 = vmul.f32 %v1772, %v1788
      %v1825 = vmul.f32 %v1773, %v1788
      %v1826 = vmul.f32 %v1774, %v1788
      %v1827 = vmul.f32 %v1775, %v1788
      %v1828 = vmul.f32 %v1776, %v1788
      %v1829 = vmul.f32 %v1777, %v1788
      %v1830 = vmul.f32 %v1778, %v1788
      %v1831 = vmul.f32 %v1779, %v1788
      %v1832 = vmul.f32 %v1780, %v1788
      %v1833 = vmul.f32 %v1781, %v1788
      %v1834 = vmul.f32 %v1782, %v1788
      %v1835 = vmul.f32 %v1783, %v1788
      %v1836 = vmul.f32 %v1784, %v1788
      %vm1885 = vcmask 1045504
      %v1886 = vrot.slane %v1789, 2
      %v1887 = vrot.slane %v1790, 2
      %v1888 = vsel %vm1885, %v1886, %v1887
      %v1889 = vrot.slane %v1791, 2
      %v1890 = vsel %vm1885, %v1887, %v1889
      %v1891 = vrot.slane %v1792, 2
      %v1892 = vrot.slane %v1793, 2
      %v1893 = vsel %vm1885, %v1891, %v1892
      %v1894 = vrot.slane %v1794, 2
      %v1895 = vsel %vm1885, %v1892, %v1894
      %v1896 = vrot.slane %v1795, 2
      %v1897 = vrot.slane %v1796, 2
      %v1898 = vsel %vm1885, %v1896, %v1897
      %v1899 = vrot.slane %v1797, 2
      %v1900 = vsel %vm1885, %v1897, %v1899
      %v1901 = vrot.slane %v1798, 2
      %v1902 = vrot.slane %v1799, 2
      %v1903 = vsel %vm1885, %v1901, %v1902
      %v1904 = vrot.slane %v1800, 2
      %v1905 = vsel %vm1885, %v1902, %v1904
      %v1906 = vrot.slane %v1801, 2
      %v1907 = vrot.slane %v1802, 2
      %v1908 = vsel %vm1885, %v1906, %v1907
      %v1909 = vrot.slane %v1803, 2
      %v1910 = vsel %vm1885, %v1907, %v1909
      %v1911 = vrot.slane %v1804, 2
      %v1912 = vrot.slane %v1805, 2
      %v1913 = vsel %vm1885, %v1911, %v1912
      %v1914 = vrot.slane %v1806, 2
      %v1915 = vsel %vm1885, %v1912, %v1914
      %v1916 = vrot.slane %v1807, 2
      %v1917 = vrot.slane %v1808, 2
      %v1918 = vsel %vm1885, %v1916, %v1917
      %v1919 = vrot.slane %v1809, 2
      %v1920 = vsel %vm1885, %v1917, %v1919
      %v1921 = vrot.slane %v1810, 2
      %v1922 = vrot.slane %v1811, 2
      %v1923 = vsel %vm1885, %v1921, %v1922
      %v1924 = vrot.slane %v1812, 2
      %v1925 = vsel %vm1885, %v1922, %v1924
      %v1926 = vrot.slane %v1813, 2
      %v1927 = vrot.slane %v1814, 2
      %v1928 = vsel %vm1885, %v1926, %v1927
      %v1929 = vrot.slane %v1815, 2
      %v1930 = vsel %vm1885, %v1927, %v1929
      %v1931 = vrot.slane %v1816, 2
      %v1932 = vrot.slane %v1817, 2
      %v1933 = vsel %vm1885, %v1931, %v1932
      %v1934 = vrot.slane %v1818, 2
      %v1935 = vsel %vm1885, %v1932, %v1934
      %v1936 = vrot.slane %v1819, 2
      %v1937 = vrot.slane %v1820, 2
      %v1938 = vsel %vm1885, %v1936, %v1937
      %v1939 = vrot.slane %v1821, 2
      %v1940 = vsel %vm1885, %v1937, %v1939
      %v1941 = vrot.slane %v1822, 2
      %v1942 = vrot.slane %v1823, 2
      %v1943 = vsel %vm1885, %v1941, %v1942
      %v1944 = vrot.slane %v1824, 2
      %v1945 = vsel %vm1885, %v1942, %v1944
      %v1946 = vrot.slane %v1825, 2
      %v1947 = vrot.slane %v1826, 2
      %v1948 = vsel %vm1885, %v1946, %v1947
      %v1949 = vrot.slane %v1827, 2
      %v1950 = vsel %vm1885, %v1947, %v1949
      %v1951 = vrot.slane %v1828, 2
      %v1952 = vrot.slane %v1829, 2
      %v1953 = vsel %vm1885, %v1951, %v1952
      %v1954 = vrot.slane %v1830, 2
      %v1955 = vsel %vm1885, %v1952, %v1954
      %v1956 = vrot.slane %v1831, 2
      %v1957 = vrot.slane %v1832, 2
      %v1958 = vsel %vm1885, %v1956, %v1957
      %v1959 = vrot.slane %v1833, 2
      %v1960 = vsel %vm1885, %v1957, %v1959
      %v1961 = vrot.slane %v1834, 2
      %v1962 = vrot.slane %v1835, 2
      %v1963 = vsel %vm1885, %v1961, %v1962
      %v1964 = vrot.slane %v1836, 2
      %v1965 = vsel %vm1885, %v1962, %v1964
      %v2014 = vadd.f32 %v1593, %v1886
      %v2015 = vadd.f32 %v1594, %v1888
      %v2016 = vadd.f32 %v1595, %v1890
      %v2017 = vadd.f32 %v1596, %v1891
      %v2018 = vadd.f32 %v1597, %v1893
      %v2019 = vadd.f32 %v1598, %v1895
      %v2020 = vadd.f32 %v1599, %v1896
      %v2021 = vadd.f32 %v1600, %v1898
      %v2022 = vadd.f32 %v1601, %v1900
      %v2023 = vadd.f32 %v1602, %v1901
      %v2024 = vadd.f32 %v1603, %v1903
      %v2025 = vadd.f32 %v1604, %v1905
      %v2026 = vadd.f32 %v1605, %v1906
      %v2027 = vadd.f32 %v1606, %v1908
      %v2028 = vadd.f32 %v1607, %v1910
      %v2029 = vadd.f32 %v1608, %v1911
      %v2030 = vadd.f32 %v1609, %v1913
      %v2031 = vadd.f32 %v1610, %v1915
      %v2032 = vadd.f32 %v1611, %v1916
      %v2033 = vadd.f32 %v1612, %v1918
      %v2034 = vadd.f32 %v1613, %v1920
      %v2035 = vadd.f32 %v1614, %v1921
      %v2036 = vadd.f32 %v1615, %v1923
      %v2037 = vadd.f32 %v1616, %v1925
      %v2038 = vadd.f32 %v1617, %v1926
      %v2039 = vadd.f32 %v1618, %v1928
      %v2040 = vadd.f32 %v1619, %v1930
      %v2041 = vadd.f32 %v1620, %v1931
      %v2042 = vadd.f32 %v1621, %v1933
      %v2043 = vadd.f32 %v1622, %v1935
      %v2044 = vadd.f32 %v1623, %v1936
      %v2045 = vadd.f32 %v1624, %v1938
      %v2046 = vadd.f32 %v1625, %v1940
      %v2047 = vadd.f32 %v1626, %v1941
      %v2048 = vadd.f32 %v1627, %v1943
      %v2049 = vadd.f32 %v1628, %v1945
      %v2050 = vadd.f32 %v1629, %v1946
      %v2051 = vadd.f32 %v1630, %v1948
      %v2052 = vadd.f32 %v1631, %v1950
      %v2053 = vadd.f32 %v1632, %v1951
      %v2054 = vadd.f32 %v1633, %v1953
      %v2055 = vadd.f32 %v1634, %v1955
      %v2056 = vadd.f32 %v1635, %v1956
      %v2057 = vadd.f32 %v1636, %v1958
      %v2058 = vadd.f32 %v1637, %v1960
      %v2059 = vadd.f32 %v1638, %v1961
      %v2060 = vadd.f32 %v1639, %v1963
      %v2061 = vadd.f32 %v1640, %v1965
      %v2062 = vld [vmem:[%s797] sm:$0xf8]
      %v2063 = vld [vmem:[%s797 + $0x8] sm:$0xf]
      %v2064 = vld [vmem:[%s797 + $0x10] sm:$0xf8]
      %v2065 = vld [vmem:[%s797 + $0x18] sm:$0xf]
      %v2066 = vld [vmem:[%s797 + $0x20] sm:$0xf8]
      %v2067 = vld [vmem:[%s797 + $0x28] sm:$0xf]
      %v2068 = vld [vmem:[%s797 + $0x30] sm:$0xf8]
      %v2069 = vld [vmem:[%s797 + $0x38] sm:$0xf]
      %v2070 = vld [vmem:[%s797 + $0x40] sm:$0xf8]
      %v2071 = vld [vmem:[%s797 + $0x48] sm:$0xf]
      %v2072 = vld [vmem:[%s797 + $0x50] sm:$0xf8]
      %v2073 = vld [vmem:[%s797 + $0x58] sm:$0xf]
      %v2074 = vld [vmem:[%s797 + $0x60] sm:$0xf8]
      %v2075 = vld [vmem:[%s797 + $0x68] sm:$0xf]
      %v2076 = vld [vmem:[%s797 + $0x70] sm:$0xf8]
      %v2077 = vld [vmem:[%s797 + $0x78] sm:$0xf]
      %v2078 = vld [vmem:[%s797 + $0x80] sm:$0xf8]
      %v2079 = vld [vmem:[%s797 + $0x88] sm:$0xf]
      %v2080 = vld [vmem:[%s797 + $0x90] sm:$0xf8]
      %v2081 = vld [vmem:[%s797 + $0x98] sm:$0xf]
      %v2082 = vld [vmem:[%s797 + $0xa0] sm:$0xf8]
      %v2083 = vld [vmem:[%s797 + $0xa8] sm:$0xf]
      %v2084 = vld [vmem:[%s797 + $0xb0] sm:$0xf8]
      %v2085 = vld [vmem:[%s797 + $0xb8] sm:$0xf]
      %v2086 = vld [vmem:[%s797 + $0xc0] sm:$0xf8]
      %v2087 = vld [vmem:[%s797 + $0xc8] sm:$0xf]
      %v2088 = vld [vmem:[%s797 + $0xd0] sm:$0xf8]
      %v2089 = vld [vmem:[%s797 + $0xd8] sm:$0xf]
      %v2090 = vld [vmem:[%s797 + $0xe0] sm:$0xf8]
      %v2091 = vld [vmem:[%s797 + $0xe8] sm:$0xf]
      %v2092 = vld [vmem:[%s797 + $0xf0] sm:$0xf8]
      %v2093 = vld [vmem:[%s797 + $0xf8] sm:$0xf]
      %v2094 = vunpack.c.l.bf16 %v2062
      %v2095 = vunpack.c.h.bf16 %v2062
      %v2096 = vunpack.c.l.bf16 %v2063
      %v2097 = vunpack.c.l.bf16 %v2064
      %v2098 = vunpack.c.h.bf16 %v2064
      %v2099 = vunpack.c.l.bf16 %v2065
      %v2100 = vunpack.c.l.bf16 %v2066
      %v2101 = vunpack.c.h.bf16 %v2066
      %v2102 = vunpack.c.l.bf16 %v2067
      %v2103 = vunpack.c.l.bf16 %v2068
      %v2104 = vunpack.c.h.bf16 %v2068
      %v2105 = vunpack.c.l.bf16 %v2069
      %v2106 = vunpack.c.l.bf16 %v2070
      %v2107 = vunpack.c.h.bf16 %v2070
      %v2108 = vunpack.c.l.bf16 %v2071
      %v2109 = vunpack.c.l.bf16 %v2072
      %v2110 = vunpack.c.h.bf16 %v2072
      %v2111 = vunpack.c.l.bf16 %v2073
      %v2112 = vunpack.c.l.bf16 %v2074
      %v2113 = vunpack.c.h.bf16 %v2074
      %v2114 = vunpack.c.l.bf16 %v2075
      %v2115 = vunpack.c.l.bf16 %v2076
      %v2116 = vunpack.c.h.bf16 %v2076
      %v2117 = vunpack.c.l.bf16 %v2077
      %v2118 = vunpack.c.l.bf16 %v2078
      %v2119 = vunpack.c.h.bf16 %v2078
      %v2120 = vunpack.c.l.bf16 %v2079
      %v2121 = vunpack.c.l.bf16 %v2080
      %v2122 = vunpack.c.h.bf16 %v2080
      %v2123 = vunpack.c.l.bf16 %v2081
      %v2124 = vunpack.c.l.bf16 %v2082
      %v2125 = vunpack.c.h.bf16 %v2082
      %v2126 = vunpack.c.l.bf16 %v2083
      %v2127 = vunpack.c.l.bf16 %v2084
      %v2128 = vunpack.c.h.bf16 %v2084
      %v2129 = vunpack.c.l.bf16 %v2085
      %v2130 = vunpack.c.l.bf16 %v2086
      %v2131 = vunpack.c.h.bf16 %v2086
      %v2132 = vunpack.c.l.bf16 %v2087
      %v2133 = vunpack.c.l.bf16 %v2088
      %v2134 = vunpack.c.h.bf16 %v2088
      %v2135 = vunpack.c.l.bf16 %v2089
      %v2136 = vunpack.c.l.bf16 %v2090
      %v2137 = vunpack.c.h.bf16 %v2090
      %v2138 = vunpack.c.l.bf16 %v2091
      %v2139 = vunpack.c.l.bf16 %v2092
      %v2140 = vunpack.c.h.bf16 %v2092
      %v2141 = vunpack.c.l.bf16 %v2093
      %v2142 = vlaneseq
      %v2143 = vshrl.u32 %v2142, 7
      %v2144 = vsub.s32 3, %v2143
      %v2145 = vrot.slane %v1147, %v2144
      %v2146 = vmul.f32 %v2094, %v2145
      %v2147 = vmul.f32 %v2095, %v2145
      %v2148 = vmul.f32 %v2096, %v2145
      %v2149 = vmul.f32 %v2097, %v2145
      %v2150 = vmul.f32 %v2098, %v2145
      %v2151 = vmul.f32 %v2099, %v2145
      %v2152 = vmul.f32 %v2100, %v2145
      %v2153 = vmul.f32 %v2101, %v2145
      %v2154 = vmul.f32 %v2102, %v2145
      %v2155 = vmul.f32 %v2103, %v2145
      %v2156 = vmul.f32 %v2104, %v2145
      %v2157 = vmul.f32 %v2105, %v2145
      %v2158 = vmul.f32 %v2106, %v2145
      %v2159 = vmul.f32 %v2107, %v2145
      %v2160 = vmul.f32 %v2108, %v2145
      %v2161 = vmul.f32 %v2109, %v2145
      %v2162 = vmul.f32 %v2110, %v2145
      %v2163 = vmul.f32 %v2111, %v2145
      %v2164 = vmul.f32 %v2112, %v2145
      %v2165 = vmul.f32 %v2113, %v2145
      %v2166 = vmul.f32 %v2114, %v2145
      %v2167 = vmul.f32 %v2115, %v2145
      %v2168 = vmul.f32 %v2116, %v2145
      %v2169 = vmul.f32 %v2117, %v2145
      %v2170 = vmul.f32 %v2118, %v2145
      %v2171 = vmul.f32 %v2119, %v2145
      %v2172 = vmul.f32 %v2120, %v2145
      %v2173 = vmul.f32 %v2121, %v2145
      %v2174 = vmul.f32 %v2122, %v2145
      %v2175 = vmul.f32 %v2123, %v2145
      %v2176 = vmul.f32 %v2124, %v2145
      %v2177 = vmul.f32 %v2125, %v2145
      %v2178 = vmul.f32 %v2126, %v2145
      %v2179 = vmul.f32 %v2127, %v2145
      %v2180 = vmul.f32 %v2128, %v2145
      %v2181 = vmul.f32 %v2129, %v2145
      %v2182 = vmul.f32 %v2130, %v2145
      %v2183 = vmul.f32 %v2131, %v2145
      %v2184 = vmul.f32 %v2132, %v2145
      %v2185 = vmul.f32 %v2133, %v2145
      %v2186 = vmul.f32 %v2134, %v2145
      %v2187 = vmul.f32 %v2135, %v2145
      %v2188 = vmul.f32 %v2136, %v2145
      %v2189 = vmul.f32 %v2137, %v2145
      %v2190 = vmul.f32 %v2138, %v2145
      %v2191 = vmul.f32 %v2139, %v2145
      %v2192 = vmul.f32 %v2140, %v2145
      %v2193 = vmul.f32 %v2141, %v2145
      %v2194 = vadd.f32 %v2014, %v2146
      %v2195 = vadd.f32 %v2015, %v2147
      %v2196 = vadd.f32 %v2016, %v2148
      %v2197 = vadd.f32 %v2017, %v2149
      %v2198 = vadd.f32 %v2018, %v2150
      %v2199 = vadd.f32 %v2019, %v2151
      %v2200 = vadd.f32 %v2020, %v2152
      %v2201 = vadd.f32 %v2021, %v2153
      %v2202 = vadd.f32 %v2022, %v2154
      %v2203 = vadd.f32 %v2023, %v2155
      %v2204 = vadd.f32 %v2024, %v2156
      %v2205 = vadd.f32 %v2025, %v2157
      %v2206 = vadd.f32 %v2026, %v2158
      %v2207 = vadd.f32 %v2027, %v2159
      %v2208 = vadd.f32 %v2028, %v2160
      %v2209 = vadd.f32 %v2029, %v2161
      %v2210 = vadd.f32 %v2030, %v2162
      %v2211 = vadd.f32 %v2031, %v2163
      %v2212 = vadd.f32 %v2032, %v2164
      %v2213 = vadd.f32 %v2033, %v2165
      %v2214 = vadd.f32 %v2034, %v2166
      %v2215 = vadd.f32 %v2035, %v2167
      %v2216 = vadd.f32 %v2036, %v2168
      %v2217 = vadd.f32 %v2037, %v2169
      %v2218 = vadd.f32 %v2038, %v2170
      %v2219 = vadd.f32 %v2039, %v2171
      %v2220 = vadd.f32 %v2040, %v2172
      %v2221 = vadd.f32 %v2041, %v2173
      %v2222 = vadd.f32 %v2042, %v2174
      %v2223 = vadd.f32 %v2043, %v2175
      %v2224 = vadd.f32 %v2044, %v2176
      %v2225 = vadd.f32 %v2045, %v2177
      %v2226 = vadd.f32 %v2046, %v2178
      %v2227 = vadd.f32 %v2047, %v2179
      %v2228 = vadd.f32 %v2048, %v2180
      %v2229 = vadd.f32 %v2049, %v2181
      %v2230 = vadd.f32 %v2050, %v2182
      %v2231 = vadd.f32 %v2051, %v2183
      %v2232 = vadd.f32 %v2052, %v2184
      %v2233 = vadd.f32 %v2053, %v2185
      %v2234 = vadd.f32 %v2054, %v2186
      %v2235 = vadd.f32 %v2055, %v2187
      %v2236 = vadd.f32 %v2056, %v2188
      %v2237 = vadd.f32 %v2057, %v2189
      %v2238 = vadd.f32 %v2058, %v2190
      %v2239 = vadd.f32 %v2059, %v2191
      %v2240 = vadd.f32 %v2060, %v2192
      %v2241 = vadd.f32 %v2061, %v2193
      %v2242 = vld [vmem:[%s797] sm:$0xf0]
      %v2243 = vld [vmem:[%s797 + $0x10] sm:$0xf0]
      %v2244 = vld [vmem:[%s797 + $0x20] sm:$0xf0]
      %v2245 = vld [vmem:[%s797 + $0x30] sm:$0xf0]
      %v2246 = vld [vmem:[%s797 + $0x40] sm:$0xf0]
      %v2247 = vld [vmem:[%s797 + $0x50] sm:$0xf0]
      %v2248 = vld [vmem:[%s797 + $0x60] sm:$0xf0]
      %v2249 = vld [vmem:[%s797 + $0x70] sm:$0xf0]
      %v2250 = vld [vmem:[%s797 + $0x80] sm:$0xf0]
      %v2251 = vld [vmem:[%s797 + $0x90] sm:$0xf0]
      %v2252 = vld [vmem:[%s797 + $0xa0] sm:$0xf0]
      %v2253 = vld [vmem:[%s797 + $0xb0] sm:$0xf0]
      %v2254 = vld [vmem:[%s797 + $0xc0] sm:$0xf0]
      %v2255 = vld [vmem:[%s797 + $0xd0] sm:$0xf0]
      %v2256 = vld [vmem:[%s797 + $0xe0] sm:$0xf0]
      %v2257 = vld [vmem:[%s797 + $0xf0] sm:$0xf0]
      %v2290 = vrot.slane %v2242, 4
      %v2291 = vrot.slane %v2063, 4
      %v2292 = vsel %vm1331, %v2290, %v2291
      %v2293 = vrot.slane %v2243, 4
      %v2294 = vrot.slane %v2065, 4
      %v2295 = vsel %vm1331, %v2293, %v2294
      %v2296 = vrot.slane %v2244, 4
      %v2297 = vrot.slane %v2067, 4
      %v2298 = vsel %vm1331, %v2296, %v2297
      %v2299 = vrot.slane %v2245, 4
      %v2300 = vrot.slane %v2069, 4
      %v2301 = vsel %vm1331, %v2299, %v2300
      %v2302 = vrot.slane %v2246, 4
      %v2303 = vrot.slane %v2071, 4
      %v2304 = vsel %vm1331, %v2302, %v2303
      %v2305 = vrot.slane %v2247, 4
      %v2306 = vrot.slane %v2073, 4
      %v2307 = vsel %vm1331, %v2305, %v2306
      %v2308 = vrot.slane %v2248, 4
      %v2309 = vrot.slane %v2075, 4
      %v2310 = vsel %vm1331, %v2308, %v2309
      %v2311 = vrot.slane %v2249, 4
      %v2312 = vrot.slane %v2077, 4
      %v2313 = vsel %vm1331, %v2311, %v2312
      %v2314 = vrot.slane %v2250, 4
      %v2315 = vrot.slane %v2079, 4
      %v2316 = vsel %vm1331, %v2314, %v2315
      %v2317 = vrot.slane %v2251, 4
      %v2318 = vrot.slane %v2081, 4
      %v2319 = vsel %vm1331, %v2317, %v2318
      %v2320 = vrot.slane %v2252, 4
      %v2321 = vrot.slane %v2083, 4
      %v2322 = vsel %vm1331, %v2320, %v2321
      %v2323 = vrot.slane %v2253, 4
      %v2324 = vrot.slane %v2085, 4
      %v2325 = vsel %vm1331, %v2323, %v2324
      %v2326 = vrot.slane %v2254, 4
      %v2327 = vrot.slane %v2087, 4
      %v2328 = vsel %vm1331, %v2326, %v2327
      %v2329 = vrot.slane %v2255, 4
      %v2330 = vrot.slane %v2089, 4
      %v2331 = vsel %vm1331, %v2329, %v2330
      %v2332 = vrot.slane %v2256, 4
      %v2333 = vrot.slane %v2091, 4
      %v2334 = vsel %vm1331, %v2332, %v2333
      %v2335 = vrot.slane %v2257, 4
      %v2336 = vrot.slane %v2093, 4
      %v2337 = vsel %vm1331, %v2335, %v2336
      %v2354 = vunpack.c.l.bf16 %v2292
      %v2355 = vunpack.c.h.bf16 %v2292
      %v2356 = vunpack.c.l.bf16 %v2295
      %v2357 = vunpack.c.h.bf16 %v2295
      %v2358 = vunpack.c.l.bf16 %v2298
      %v2359 = vunpack.c.h.bf16 %v2298
      %v2360 = vunpack.c.l.bf16 %v2301
      %v2361 = vunpack.c.h.bf16 %v2301
      %v2362 = vunpack.c.l.bf16 %v2304
      %v2363 = vunpack.c.h.bf16 %v2304
      %v2364 = vunpack.c.l.bf16 %v2307
      %v2365 = vunpack.c.h.bf16 %v2307
      %v2366 = vunpack.c.l.bf16 %v2310
      %v2367 = vunpack.c.h.bf16 %v2310
      %v2368 = vunpack.c.l.bf16 %v2313
      %v2369 = vunpack.c.h.bf16 %v2313
      %v2370 = vunpack.c.l.bf16 %v2316
      %v2371 = vunpack.c.h.bf16 %v2316
      %v2372 = vunpack.c.l.bf16 %v2319
      %v2373 = vunpack.c.h.bf16 %v2319
      %v2374 = vunpack.c.l.bf16 %v2322
      %v2375 = vunpack.c.h.bf16 %v2322
      %v2376 = vunpack.c.l.bf16 %v2325
      %v2377 = vunpack.c.h.bf16 %v2325
      %v2378 = vunpack.c.l.bf16 %v2328
      %v2379 = vunpack.c.h.bf16 %v2328
      %v2380 = vunpack.c.l.bf16 %v2331
      %v2381 = vunpack.c.h.bf16 %v2331
      %v2382 = vunpack.c.l.bf16 %v2334
      %v2383 = vunpack.c.h.bf16 %v2334
      %v2384 = vunpack.c.l.bf16 %v2337
      %v2385 = vunpack.c.h.bf16 %v2337
      %v2386 = vlaneseq
      %v2387 = vshrl.u32 %v2386, 7
      %v2388 = vsub.s32 4, %v2387
      %v2389 = vrot.slane %v1147, %v2388
      %v2390 = vmul.f32 %v2354, %v2389
      %v2391 = vmul.f32 %v2355, %v2389
      %v2392 = vmul.f32 %v2356, %v2389
      %v2393 = vmul.f32 %v2357, %v2389
      %v2394 = vmul.f32 %v2358, %v2389
      %v2395 = vmul.f32 %v2359, %v2389
      %v2396 = vmul.f32 %v2360, %v2389
      %v2397 = vmul.f32 %v2361, %v2389
      %v2398 = vmul.f32 %v2362, %v2389
      %v2399 = vmul.f32 %v2363, %v2389
      %v2400 = vmul.f32 %v2364, %v2389
      %v2401 = vmul.f32 %v2365, %v2389
      %v2402 = vmul.f32 %v2366, %v2389
      %v2403 = vmul.f32 %v2367, %v2389
      %v2404 = vmul.f32 %v2368, %v2389
      %v2405 = vmul.f32 %v2369, %v2389
      %v2406 = vmul.f32 %v2370, %v2389
      %v2407 = vmul.f32 %v2371, %v2389
      %v2408 = vmul.f32 %v2372, %v2389
      %v2409 = vmul.f32 %v2373, %v2389
      %v2410 = vmul.f32 %v2374, %v2389
      %v2411 = vmul.f32 %v2375, %v2389
      %v2412 = vmul.f32 %v2376, %v2389
      %v2413 = vmul.f32 %v2377, %v2389
      %v2414 = vmul.f32 %v2378, %v2389
      %v2415 = vmul.f32 %v2379, %v2389
      %v2416 = vmul.f32 %v2380, %v2389
      %v2417 = vmul.f32 %v2381, %v2389
      %v2418 = vmul.f32 %v2382, %v2389
      %v2419 = vmul.f32 %v2383, %v2389
      %v2420 = vmul.f32 %v2384, %v2389
      %v2421 = vmul.f32 %v2385, %v2389
      %v2454 = vrot.slane %v2390, 1
      %v2455 = vrot.slane %v2391, 1
      %v2456 = vsel %vm1496, %v2454, %v2455
      %v2457 = vrot.slane %v2392, 1
      %v2458 = vrot.slane %v2393, 1
      %v2459 = vsel %vm1496, %v2457, %v2458
      %v2460 = vrot.slane %v2394, 1
      %v2461 = vrot.slane %v2395, 1
      %v2462 = vsel %vm1496, %v2460, %v2461
      %v2463 = vrot.slane %v2396, 1
      %v2464 = vrot.slane %v2397, 1
      %v2465 = vsel %vm1496, %v2463, %v2464
      %v2466 = vrot.slane %v2398, 1
      %v2467 = vrot.slane %v2399, 1
      %v2468 = vsel %vm1496, %v2466, %v2467
      %v2469 = vrot.slane %v2400, 1
      %v2470 = vrot.slane %v2401, 1
      %v2471 = vsel %vm1496, %v2469, %v2470
      %v2472 = vrot.slane %v2402, 1
      %v2473 = vrot.slane %v2403, 1
      %v2474 = vsel %vm1496, %v2472, %v2473
      %v2475 = vrot.slane %v2404, 1
      %v2476 = vrot.slane %v2405, 1
      %v2477 = vsel %vm1496, %v2475, %v2476
      %v2478 = vrot.slane %v2406, 1
      %v2479 = vrot.slane %v2407, 1
      %v2480 = vsel %vm1496, %v2478, %v2479
      %v2481 = vrot.slane %v2408, 1
      %v2482 = vrot.slane %v2409, 1
      %v2483 = vsel %vm1496, %v2481, %v2482
      %v2484 = vrot.slane %v2410, 1
      %v2485 = vrot.slane %v2411, 1
      %v2486 = vsel %vm1496, %v2484, %v2485
      %v2487 = vrot.slane %v2412, 1
      %v2488 = vrot.slane %v2413, 1
      %v2489 = vsel %vm1496, %v2487, %v2488
      %v2490 = vrot.slane %v2414, 1
      %v2491 = vrot.slane %v2415, 1
      %v2492 = vsel %vm1496, %v2490, %v2491
      %v2493 = vrot.slane %v2416, 1
      %v2494 = vrot.slane %v2417, 1
      %v2495 = vsel %vm1496, %v2493, %v2494
      %v2496 = vrot.slane %v2418, 1
      %v2497 = vrot.slane %v2419, 1
      %v2498 = vsel %vm1496, %v2496, %v2497
      %v2499 = vrot.slane %v2420, 1
      %v2500 = vrot.slane %v2421, 1
      %v2501 = vsel %vm1496, %v2499, %v2500
      %v2550 = vadd.f32 %v2194, %v2454
      %v2551 = vadd.f32 %v2195, %v2456
      %v2552 = vadd.f32 %v2196, %v2455
      %v2553 = vadd.f32 %v2197, %v2457
      %v2554 = vadd.f32 %v2198, %v2459
      %v2555 = vadd.f32 %v2199, %v2458
      %v2556 = vadd.f32 %v2200, %v2460
      %v2557 = vadd.f32 %v2201, %v2462
      %v2558 = vadd.f32 %v2202, %v2461
      %v2559 = vadd.f32 %v2203, %v2463
      %v2560 = vadd.f32 %v2204, %v2465
      %v2561 = vadd.f32 %v2205, %v2464
      %v2562 = vadd.f32 %v2206, %v2466
      %v2563 = vadd.f32 %v2207, %v2468
      %v2564 = vadd.f32 %v2208, %v2467
      %v2565 = vadd.f32 %v2209, %v2469
      %v2566 = vadd.f32 %v2210, %v2471
      %v2567 = vadd.f32 %v2211, %v2470
      %v2568 = vadd.f32 %v2212, %v2472
      %v2569 = vadd.f32 %v2213, %v2474
      %v2570 = vadd.f32 %v2214, %v2473
      %v2571 = vadd.f32 %v2215, %v2475
      %v2572 = vadd.f32 %v2216, %v2477
      %v2573 = vadd.f32 %v2217, %v2476
      %v2574 = vadd.f32 %v2218, %v2478
      %v2575 = vadd.f32 %v2219, %v2480
      %v2576 = vadd.f32 %v2220, %v2479
      %v2577 = vadd.f32 %v2221, %v2481
      %v2578 = vadd.f32 %v2222, %v2483
      %v2579 = vadd.f32 %v2223, %v2482
      %v2580 = vadd.f32 %v2224, %v2484
      %v2581 = vadd.f32 %v2225, %v2486
      %v2582 = vadd.f32 %v2226, %v2485
      %v2583 = vadd.f32 %v2227, %v2487
      %v2584 = vadd.f32 %v2228, %v2489
      %v2585 = vadd.f32 %v2229, %v2488
      %v2586 = vadd.f32 %v2230, %v2490
      %v2587 = vadd.f32 %v2231, %v2492
      %v2588 = vadd.f32 %v2232, %v2491
      %v2589 = vadd.f32 %v2233, %v2493
      %v2590 = vadd.f32 %v2234, %v2495
      %v2591 = vadd.f32 %v2235, %v2494
      %v2592 = vadd.f32 %v2236, %v2496
      %v2593 = vadd.f32 %v2237, %v2498
      %v2594 = vadd.f32 %v2238, %v2497
      %v2595 = vadd.f32 %v2239, %v2499
      %v2596 = vadd.f32 %v2240, %v2501
      %v2597 = vadd.f32 %v2241, %v2500
      %v2598 = vld [vmem:[%s797 + $0x8] sm:$0x1f]
      %v2599 = vld [vmem:[%s797 + $0x18] sm:$0x1f]
      %v2600 = vld [vmem:[%s797 + $0x28] sm:$0x1f]
      %v2601 = vld [vmem:[%s797 + $0x38] sm:$0x1f]
      %v2602 = vld [vmem:[%s797 + $0x48] sm:$0x1f]
      %v2603 = vld [vmem:[%s797 + $0x58] sm:$0x1f]
      %v2604 = vld [vmem:[%s797 + $0x68] sm:$0x1f]
      %v2605 = vld [vmem:[%s797 + $0x78] sm:$0x1f]
      %v2606 = vld [vmem:[%s797 + $0x88] sm:$0x1f]
      %v2607 = vld [vmem:[%s797 + $0x98] sm:$0x1f]
      %v2608 = vld [vmem:[%s797 + $0xa8] sm:$0x1f]
      %v2609 = vld [vmem:[%s797 + $0xb8] sm:$0x1f]
      %v2610 = vld [vmem:[%s797 + $0xc8] sm:$0x1f]
      %v2611 = vld [vmem:[%s797 + $0xd8] sm:$0x1f]
      %v2612 = vld [vmem:[%s797 + $0xe8] sm:$0x1f]
      %v2613 = vld [vmem:[%s797 + $0xf8] sm:$0x1f]
      %v2630 = vrot.slane %v2598, 4
      %v2631 = vsel %vm1331, %v2290, %v2630
      %v2632 = vrot.slane %v2599, 4
      %v2633 = vsel %vm1331, %v2293, %v2632
      %v2634 = vrot.slane %v2600, 4
      %v2635 = vsel %vm1331, %v2296, %v2634
      %v2636 = vrot.slane %v2601, 4
      %v2637 = vsel %vm1331, %v2299, %v2636
      %v2638 = vrot.slane %v2602, 4
      %v2639 = vsel %vm1331, %v2302, %v2638
      %v2640 = vrot.slane %v2603, 4
      %v2641 = vsel %vm1331, %v2305, %v2640
      %v2642 = vrot.slane %v2604, 4
      %v2643 = vsel %vm1331, %v2308, %v2642
      %v2644 = vrot.slane %v2605, 4
      %v2645 = vsel %vm1331, %v2311, %v2644
      %v2646 = vrot.slane %v2606, 4
      %v2647 = vsel %vm1331, %v2314, %v2646
      %v2648 = vrot.slane %v2607, 4
      %v2649 = vsel %vm1331, %v2317, %v2648
      %v2650 = vrot.slane %v2608, 4
      %v2651 = vsel %vm1331, %v2320, %v2650
      %v2652 = vrot.slane %v2609, 4
      %v2653 = vsel %vm1331, %v2323, %v2652
      %v2654 = vrot.slane %v2610, 4
      %v2655 = vsel %vm1331, %v2326, %v2654
      %v2656 = vrot.slane %v2611, 4
      %v2657 = vsel %vm1331, %v2329, %v2656
      %v2658 = vrot.slane %v2612, 4
      %v2659 = vsel %vm1331, %v2332, %v2658
      %v2660 = vrot.slane %v2613, 4
      %v2661 = vsel %vm1331, %v2335, %v2660
      %v2694 = vunpack.c.l.bf16 %v2631
      %v2695 = vunpack.c.h.bf16 %v2631
      %v2696 = vunpack.c.l.bf16 %v2630
      %v2697 = vunpack.c.l.bf16 %v2633
      %v2698 = vunpack.c.h.bf16 %v2633
      %v2699 = vunpack.c.l.bf16 %v2632
      %v2700 = vunpack.c.l.bf16 %v2635
      %v2701 = vunpack.c.h.bf16 %v2635
      %v2702 = vunpack.c.l.bf16 %v2634
      %v2703 = vunpack.c.l.bf16 %v2637
      %v2704 = vunpack.c.h.bf16 %v2637
      %v2705 = vunpack.c.l.bf16 %v2636
      %v2706 = vunpack.c.l.bf16 %v2639
      %v2707 = vunpack.c.h.bf16 %v2639
      %v2708 = vunpack.c.l.bf16 %v2638
      %v2709 = vunpack.c.l.bf16 %v2641
      %v2710 = vunpack.c.h.bf16 %v2641
      %v2711 = vunpack.c.l.bf16 %v2640
      %v2712 = vunpack.c.l.bf16 %v2643
      %v2713 = vunpack.c.h.bf16 %v2643
      %v2714 = vunpack.c.l.bf16 %v2642
      %v2715 = vunpack.c.l.bf16 %v2645
      %v2716 = vunpack.c.h.bf16 %v2645
      %v2717 = vunpack.c.l.bf16 %v2644
      %v2718 = vunpack.c.l.bf16 %v2647
      %v2719 = vunpack.c.h.bf16 %v2647
      %v2720 = vunpack.c.l.bf16 %v2646
      %v2721 = vunpack.c.l.bf16 %v2649
      %v2722 = vunpack.c.h.bf16 %v2649
      %v2723 = vunpack.c.l.bf16 %v2648
      %v2724 = vunpack.c.l.bf16 %v2651
      %v2725 = vunpack.c.h.bf16 %v2651
      %v2726 = vunpack.c.l.bf16 %v2650
      %v2727 = vunpack.c.l.bf16 %v2653
      %v2728 = vunpack.c.h.bf16 %v2653
      %v2729 = vunpack.c.l.bf16 %v2652
      %v2730 = vunpack.c.l.bf16 %v2655
      %v2731 = vunpack.c.h.bf16 %v2655
      %v2732 = vunpack.c.l.bf16 %v2654
      %v2733 = vunpack.c.l.bf16 %v2657
      %v2734 = vunpack.c.h.bf16 %v2657
      %v2735 = vunpack.c.l.bf16 %v2656
      %v2736 = vunpack.c.l.bf16 %v2659
      %v2737 = vunpack.c.h.bf16 %v2659
      %v2738 = vunpack.c.l.bf16 %v2658
      %v2739 = vunpack.c.l.bf16 %v2661
      %v2740 = vunpack.c.h.bf16 %v2661
      %v2741 = vunpack.c.l.bf16 %v2660
      %v2742 = vlaneseq
      %v2743 = vshrl.u32 %v2742, 7
      %v2744 = vsub.s32 5, %v2743
      %v2745 = vrot.slane %v1147, %v2744
      %v2746 = vmul.f32 %v2694, %v2745
      %v2747 = vmul.f32 %v2695, %v2745
      %v2748 = vmul.f32 %v2696, %v2745
      %v2749 = vmul.f32 %v2697, %v2745
      %v2750 = vmul.f32 %v2698, %v2745
      %v2751 = vmul.f32 %v2699, %v2745
      %v2752 = vmul.f32 %v2700, %v2745
      %v2753 = vmul.f32 %v2701, %v2745
      %v2754 = vmul.f32 %v2702, %v2745
      %v2755 = vmul.f32 %v2703, %v2745
      %v2756 = vmul.f32 %v2704, %v2745
      %v2757 = vmul.f32 %v2705, %v2745
      %v2758 = vmul.f32 %v2706, %v2745
      %v2759 = vmul.f32 %v2707, %v2745
      %v2760 = vmul.f32 %v2708, %v2745
      %v2761 = vmul.f32 %v2709, %v2745
      %v2762 = vmul.f32 %v2710, %v2745
      %v2763 = vmul.f32 %v2711, %v2745
      %v2764 = vmul.f32 %v2712, %v2745
      %v2765 = vmul.f32 %v2713, %v2745
      %v2766 = vmul.f32 %v2714, %v2745
      %v2767 = vmul.f32 %v2715, %v2745
      %v2768 = vmul.f32 %v2716, %v2745
      %v2769 = vmul.f32 %v2717, %v2745
      %v2770 = vmul.f32 %v2718, %v2745
      %v2771 = vmul.f32 %v2719, %v2745
      %v2772 = vmul.f32 %v2720, %v2745
      %v2773 = vmul.f32 %v2721, %v2745
      %v2774 = vmul.f32 %v2722, %v2745
      %v2775 = vmul.f32 %v2723, %v2745
      %v2776 = vmul.f32 %v2724, %v2745
      %v2777 = vmul.f32 %v2725, %v2745
      %v2778 = vmul.f32 %v2726, %v2745
      %v2779 = vmul.f32 %v2727, %v2745
      %v2780 = vmul.f32 %v2728, %v2745
      %v2781 = vmul.f32 %v2729, %v2745
      %v2782 = vmul.f32 %v2730, %v2745
      %v2783 = vmul.f32 %v2731, %v2745
      %v2784 = vmul.f32 %v2732, %v2745
      %v2785 = vmul.f32 %v2733, %v2745
      %v2786 = vmul.f32 %v2734, %v2745
      %v2787 = vmul.f32 %v2735, %v2745
      %v2788 = vmul.f32 %v2736, %v2745
      %v2789 = vmul.f32 %v2737, %v2745
      %v2790 = vmul.f32 %v2738, %v2745
      %v2791 = vmul.f32 %v2739, %v2745
      %v2792 = vmul.f32 %v2740, %v2745
      %v2793 = vmul.f32 %v2741, %v2745
      %v2842 = vrot.slane %v2746, 2
      %v2843 = vrot.slane %v2747, 2
      %v2844 = vsel %vm1885, %v2842, %v2843
      %v2845 = vrot.slane %v2748, 2
      %v2846 = vsel %vm1885, %v2843, %v2845
      %v2847 = vrot.slane %v2749, 2
      %v2848 = vrot.slane %v2750, 2
      %v2849 = vsel %vm1885, %v2847, %v2848
      %v2850 = vrot.slane %v2751, 2
      %v2851 = vsel %vm1885, %v2848, %v2850
      %v2852 = vrot.slane %v2752, 2
      %v2853 = vrot.slane %v2753, 2
      %v2854 = vsel %vm1885, %v2852, %v2853
      %v2855 = vrot.slane %v2754, 2
      %v2856 = vsel %vm1885, %v2853, %v2855
      %v2857 = vrot.slane %v2755, 2
      %v2858 = vrot.slane %v2756, 2
      %v2859 = vsel %vm1885, %v2857, %v2858
      %v2860 = vrot.slane %v2757, 2
      %v2861 = vsel %vm1885, %v2858, %v2860
      %v2862 = vrot.slane %v2758, 2
      %v2863 = vrot.slane %v2759, 2
      %v2864 = vsel %vm1885, %v2862, %v2863
      %v2865 = vrot.slane %v2760, 2
      %v2866 = vsel %vm1885, %v2863, %v2865
      %v2867 = vrot.slane %v2761, 2
      %v2868 = vrot.slane %v2762, 2
      %v2869 = vsel %vm1885, %v2867, %v2868
      %v2870 = vrot.slane %v2763, 2
      %v2871 = vsel %vm1885, %v2868, %v2870
      %v2872 = vrot.slane %v2764, 2
      %v2873 = vrot.slane %v2765, 2
      %v2874 = vsel %vm1885, %v2872, %v2873
      %v2875 = vrot.slane %v2766, 2
      %v2876 = vsel %vm1885, %v2873, %v2875
      %v2877 = vrot.slane %v2767, 2
      %v2878 = vrot.slane %v2768, 2
      %v2879 = vsel %vm1885, %v2877, %v2878
      %v2880 = vrot.slane %v2769, 2
      %v2881 = vsel %vm1885, %v2878, %v2880
      %v2882 = vrot.slane %v2770, 2
      %v2883 = vrot.slane %v2771, 2
      %v2884 = vsel %vm1885, %v2882, %v2883
      %v2885 = vrot.slane %v2772, 2
      %v2886 = vsel %vm1885, %v2883, %v2885
      %v2887 = vrot.slane %v2773, 2
      %v2888 = vrot.slane %v2774, 2
      %v2889 = vsel %vm1885, %v2887, %v2888
      %v2890 = vrot.slane %v2775, 2
      %v2891 = vsel %vm1885, %v2888, %v2890
      %v2892 = vrot.slane %v2776, 2
      %v2893 = vrot.slane %v2777, 2
      %v2894 = vsel %vm1885, %v2892, %v2893
      %v2895 = vrot.slane %v2778, 2
      %v2896 = vsel %vm1885, %v2893, %v2895
      %v2897 = vrot.slane %v2779, 2
      %v2898 = vrot.slane %v2780, 2
      %v2899 = vsel %vm1885, %v2897, %v2898
      %v2900 = vrot.slane %v2781, 2
      %v2901 = vsel %vm1885, %v2898, %v2900
      %v2902 = vrot.slane %v2782, 2
      %v2903 = vrot.slane %v2783, 2
      %v2904 = vsel %vm1885, %v2902, %v2903
      %v2905 = vrot.slane %v2784, 2
      %v2906 = vsel %vm1885, %v2903, %v2905
      %v2907 = vrot.slane %v2785, 2
      %v2908 = vrot.slane %v2786, 2
      %v2909 = vsel %vm1885, %v2907, %v2908
      %v2910 = vrot.slane %v2787, 2
      %v2911 = vsel %vm1885, %v2908, %v2910
      %v2912 = vrot.slane %v2788, 2
      %v2913 = vrot.slane %v2789, 2
      %v2914 = vsel %vm1885, %v2912, %v2913
      %v2915 = vrot.slane %v2790, 2
      %v2916 = vsel %vm1885, %v2913, %v2915
      %v2917 = vrot.slane %v2791, 2
      %v2918 = vrot.slane %v2792, 2
      %v2919 = vsel %vm1885, %v2917, %v2918
      %v2920 = vrot.slane %v2793, 2
      %v2921 = vsel %vm1885, %v2918, %v2920
      %v2970 = vadd.f32 %v2550, %v2842
      %v2971 = vadd.f32 %v2551, %v2844
      %v2972 = vadd.f32 %v2552, %v2846
      %v2973 = vadd.f32 %v2553, %v2847
      %v2974 = vadd.f32 %v2554, %v2849
      %v2975 = vadd.f32 %v2555, %v2851
      %v2976 = vadd.f32 %v2556, %v2852
      %v2977 = vadd.f32 %v2557, %v2854
      %v2978 = vadd.f32 %v2558, %v2856
      %v2979 = vadd.f32 %v2559, %v2857
      %v2980 = vadd.f32 %v2560, %v2859
      %v2981 = vadd.f32 %v2561, %v2861
      %v2982 = vadd.f32 %v2562, %v2862
      %v2983 = vadd.f32 %v2563, %v2864
      %v2984 = vadd.f32 %v2564, %v2866
      %v2985 = vadd.f32 %v2565, %v2867
      %v2986 = vadd.f32 %v2566, %v2869
      %v2987 = vadd.f32 %v2567, %v2871
      %v2988 = vadd.f32 %v2568, %v2872
      %v2989 = vadd.f32 %v2569, %v2874
      %v2990 = vadd.f32 %v2570, %v2876
      %v2991 = vadd.f32 %v2571, %v2877
      %v2992 = vadd.f32 %v2572, %v2879
      %v2993 = vadd.f32 %v2573, %v2881
      %v2994 = vadd.f32 %v2574, %v2882
      %v2995 = vadd.f32 %v2575, %v2884
      %v2996 = vadd.f32 %v2576, %v2886
      %v2997 = vadd.f32 %v2577, %v2887
      %v2998 = vadd.f32 %v2578, %v2889
      %v2999 = vadd.f32 %v2579, %v2891
      %v3000 = vadd.f32 %v2580, %v2892
      %v3001 = vadd.f32 %v2581, %v2894
      %v3002 = vadd.f32 %v2582, %v2896
      %v3003 = vadd.f32 %v2583, %v2897
      %v3004 = vadd.f32 %v2584, %v2899
      %v3005 = vadd.f32 %v2585, %v2901
      %v3006 = vadd.f32 %v2586, %v2902
      %v3007 = vadd.f32 %v2587, %v2904
      %v3008 = vadd.f32 %v2588, %v2906
      %v3009 = vadd.f32 %v2589, %v2907
      %v3010 = vadd.f32 %v2590, %v2909
      %v3011 = vadd.f32 %v2591, %v2911
      %v3012 = vadd.f32 %v2592, %v2912
      %v3013 = vadd.f32 %v2593, %v2914
      %v3014 = vadd.f32 %v2594, %v2916
      %v3015 = vadd.f32 %v2595, %v2917
      %v3016 = vadd.f32 %v2596, %v2919
      %v3017 = vadd.f32 %v2597, %v2921
      %s3018 = scalar_lea.vmem [#allocation2], 32
      %v3019 = vld [vmem:[%s3018] sm:$0xf8]
      %v3020 = vld [vmem:[%s3018 + $0x8] sm:$0xf]
      %v3021 = vld [vmem:[%s3018 + $0x10] sm:$0xf8]
      %v3022 = vld [vmem:[%s3018 + $0x18] sm:$0xf]
      %v3023 = vld [vmem:[%s3018 + $0x20] sm:$0xf8]
      %v3024 = vld [vmem:[%s3018 + $0x28] sm:$0xf]
      %v3025 = vld [vmem:[%s3018 + $0x30] sm:$0xf8]
      %v3026 = vld [vmem:[%s3018 + $0x38] sm:$0xf]
      %v3027 = vld [vmem:[%s3018 + $0x40] sm:$0xf8]
      %v3028 = vld [vmem:[%s3018 + $0x48] sm:$0xf]
      %v3029 = vld [vmem:[%s3018 + $0x50] sm:$0xf8]
      %v3030 = vld [vmem:[%s3018 + $0x58] sm:$0xf]
      %v3031 = vld [vmem:[%s3018 + $0x60] sm:$0xf8]
      %v3032 = vld [vmem:[%s3018 + $0x68] sm:$0xf]
      %v3033 = vld [vmem:[%s3018 + $0x70] sm:$0xf8]
      %v3034 = vld [vmem:[%s3018 + $0x78] sm:$0xf]
      %v3035 = vld [vmem:[%s3018 + $0x80] sm:$0xf8]
      %v3036 = vld [vmem:[%s3018 + $0x88] sm:$0xf]
      %v3037 = vld [vmem:[%s3018 + $0x90] sm:$0xf8]
      %v3038 = vld [vmem:[%s3018 + $0x98] sm:$0xf]
      %v3039 = vld [vmem:[%s3018 + $0xa0] sm:$0xf8]
      %v3040 = vld [vmem:[%s3018 + $0xa8] sm:$0xf]
      %v3041 = vld [vmem:[%s3018 + $0xb0] sm:$0xf8]
      %v3042 = vld [vmem:[%s3018 + $0xb8] sm:$0xf]
      %v3043 = vld [vmem:[%s3018 + $0xc0] sm:$0xf8]
      %v3044 = vld [vmem:[%s3018 + $0xc8] sm:$0xf]
      %v3045 = vld [vmem:[%s3018 + $0xd0] sm:$0xf8]
      %v3046 = vld [vmem:[%s3018 + $0xd8] sm:$0xf]
      %v3047 = vld [vmem:[%s3018 + $0xe0] sm:$0xf8]
      %v3048 = vld [vmem:[%s3018 + $0xe8] sm:$0xf]
      %v3049 = vld [vmem:[%s3018 + $0xf0] sm:$0xf8]
      %v3050 = vld [vmem:[%s3018 + $0xf8] sm:$0xf]
      %v3051 = vunpack.c.l.bf16 %v3019
      %v3052 = vunpack.c.h.bf16 %v3019
      %v3053 = vunpack.c.l.bf16 %v3020
      %v3054 = vunpack.c.l.bf16 %v3021
      %v3055 = vunpack.c.h.bf16 %v3021
      %v3056 = vunpack.c.l.bf16 %v3022
      %v3057 = vunpack.c.l.bf16 %v3023
      %v3058 = vunpack.c.h.bf16 %v3023
      %v3059 = vunpack.c.l.bf16 %v3024
      %v3060 = vunpack.c.l.bf16 %v3025
      %v3061 = vunpack.c.h.bf16 %v3025
      %v3062 = vunpack.c.l.bf16 %v3026
      %v3063 = vunpack.c.l.bf16 %v3027
      %v3064 = vunpack.c.h.bf16 %v3027
      %v3065 = vunpack.c.l.bf16 %v3028
      %v3066 = vunpack.c.l.bf16 %v3029
      %v3067 = vunpack.c.h.bf16 %v3029
      %v3068 = vunpack.c.l.bf16 %v3030
      %v3069 = vunpack.c.l.bf16 %v3031
      %v3070 = vunpack.c.h.bf16 %v3031
      %v3071 = vunpack.c.l.bf16 %v3032
      %v3072 = vunpack.c.l.bf16 %v3033
      %v3073 = vunpack.c.h.bf16 %v3033
      %v3074 = vunpack.c.l.bf16 %v3034
      %v3075 = vunpack.c.l.bf16 %v3035
      %v3076 = vunpack.c.h.bf16 %v3035
      %v3077 = vunpack.c.l.bf16 %v3036
      %v3078 = vunpack.c.l.bf16 %v3037
      %v3079 = vunpack.c.h.bf16 %v3037
      %v3080 = vunpack.c.l.bf16 %v3038
      %v3081 = vunpack.c.l.bf16 %v3039
      %v3082 = vunpack.c.h.bf16 %v3039
      %v3083 = vunpack.c.l.bf16 %v3040
      %v3084 = vunpack.c.l.bf16 %v3041
      %v3085 = vunpack.c.h.bf16 %v3041
      %v3086 = vunpack.c.l.bf16 %v3042
      %v3087 = vunpack.c.l.bf16 %v3043
      %v3088 = vunpack.c.h.bf16 %v3043
      %v3089 = vunpack.c.l.bf16 %v3044
      %v3090 = vunpack.c.l.bf16 %v3045
      %v3091 = vunpack.c.h.bf16 %v3045
      %v3092 = vunpack.c.l.bf16 %v3046
      %v3093 = vunpack.c.l.bf16 %v3047
      %v3094 = vunpack.c.h.bf16 %v3047
      %v3095 = vunpack.c.l.bf16 %v3048
      %v3096 = vunpack.c.l.bf16 %v3049
      %v3097 = vunpack.c.h.bf16 %v3049
      %v3098 = vunpack.c.l.bf16 %v3050
      %v3099 = vlaneseq
      %v3100 = vshrl.u32 %v3099, 7
      %v3101 = vsub.s32 6, %v3100
      %v3102 = vrot.slane %v1147, %v3101
      %v3103 = vmul.f32 %v3051, %v3102
      %v3104 = vmul.f32 %v3052, %v3102
      %v3105 = vmul.f32 %v3053, %v3102
      %v3106 = vmul.f32 %v3054, %v3102
      %v3107 = vmul.f32 %v3055, %v3102
      %v3108 = vmul.f32 %v3056, %v3102
      %v3109 = vmul.f32 %v3057, %v3102
      %v3110 = vmul.f32 %v3058, %v3102
      %v3111 = vmul.f32 %v3059, %v3102
      %v3112 = vmul.f32 %v3060, %v3102
      %v3113 = vmul.f32 %v3061, %v3102
      %v3114 = vmul.f32 %v3062, %v3102
      %v3115 = vmul.f32 %v3063, %v3102
      %v3116 = vmul.f32 %v3064, %v3102
      %v3117 = vmul.f32 %v3065, %v3102
      %v3118 = vmul.f32 %v3066, %v3102
      %v3119 = vmul.f32 %v3067, %v3102
      %v3120 = vmul.f32 %v3068, %v3102
      %v3121 = vmul.f32 %v3069, %v3102
      %v3122 = vmul.f32 %v3070, %v3102
      %v3123 = vmul.f32 %v3071, %v3102
      %v3124 = vmul.f32 %v3072, %v3102
      %v3125 = vmul.f32 %v3073, %v3102
      %v3126 = vmul.f32 %v3074, %v3102
      %v3127 = vmul.f32 %v3075, %v3102
      %v3128 = vmul.f32 %v3076, %v3102
      %v3129 = vmul.f32 %v3077, %v3102
      %v3130 = vmul.f32 %v3078, %v3102
      %v3131 = vmul.f32 %v3079, %v3102
      %v3132 = vmul.f32 %v3080, %v3102
      %v3133 = vmul.f32 %v3081, %v3102
      %v3134 = vmul.f32 %v3082, %v3102
      %v3135 = vmul.f32 %v3083, %v3102
      %v3136 = vmul.f32 %v3084, %v3102
      %v3137 = vmul.f32 %v3085, %v3102
      %v3138 = vmul.f32 %v3086, %v3102
      %v3139 = vmul.f32 %v3087, %v3102
      %v3140 = vmul.f32 %v3088, %v3102
      %v3141 = vmul.f32 %v3089, %v3102
      %v3142 = vmul.f32 %v3090, %v3102
      %v3143 = vmul.f32 %v3091, %v3102
      %v3144 = vmul.f32 %v3092, %v3102
      %v3145 = vmul.f32 %v3093, %v3102
      %v3146 = vmul.f32 %v3094, %v3102
      %v3147 = vmul.f32 %v3095, %v3102
      %v3148 = vmul.f32 %v3096, %v3102
      %v3149 = vmul.f32 %v3097, %v3102
      %v3150 = vmul.f32 %v3098, %v3102
      %v3151 = vadd.f32 %v2970, %v3103
      %v3152 = vadd.f32 %v2971, %v3104
      %v3153 = vadd.f32 %v2972, %v3105
      %v3154 = vadd.f32 %v2973, %v3106
      %v3155 = vadd.f32 %v2974, %v3107
      %v3156 = vadd.f32 %v2975, %v3108
      %v3157 = vadd.f32 %v2976, %v3109
      %v3158 = vadd.f32 %v2977, %v3110
      %v3159 = vadd.f32 %v2978, %v3111
      %v3160 = vadd.f32 %v2979, %v3112
      %v3161 = vadd.f32 %v2980, %v3113
      %v3162 = vadd.f32 %v2981, %v3114
      %v3163 = vadd.f32 %v2982, %v3115
      %v3164 = vadd.f32 %v2983, %v3116
      %v3165 = vadd.f32 %v2984, %v3117
      %v3166 = vadd.f32 %v2985, %v3118
      %v3167 = vadd.f32 %v2986, %v3119
      %v3168 = vadd.f32 %v2987, %v3120
      %v3169 = vadd.f32 %v2988, %v3121
      %v3170 = vadd.f32 %v2989, %v3122
      %v3171 = vadd.f32 %v2990, %v3123
      %v3172 = vadd.f32 %v2991, %v3124
      %v3173 = vadd.f32 %v2992, %v3125
      %v3174 = vadd.f32 %v2993, %v3126
      %v3175 = vadd.f32 %v2994, %v3127
      %v3176 = vadd.f32 %v2995, %v3128
      %v3177 = vadd.f32 %v2996, %v3129
      %v3178 = vadd.f32 %v2997, %v3130
      %v3179 = vadd.f32 %v2998, %v3131
      %v3180 = vadd.f32 %v2999, %v3132
      %v3181 = vadd.f32 %v3000, %v3133
      %v3182 = vadd.f32 %v3001, %v3134
      %v3183 = vadd.f32 %v3002, %v3135
      %v3184 = vadd.f32 %v3003, %v3136
      %v3185 = vadd.f32 %v3004, %v3137
      %v3186 = vadd.f32 %v3005, %v3138
      %v3187 = vadd.f32 %v3006, %v3139
      %v3188 = vadd.f32 %v3007, %v3140
      %v3189 = vadd.f32 %v3008, %v3141
      %v3190 = vadd.f32 %v3009, %v3142
      %v3191 = vadd.f32 %v3010, %v3143
      %v3192 = vadd.f32 %v3011, %v3144
      %v3193 = vadd.f32 %v3012, %v3145
      %v3194 = vadd.f32 %v3013, %v3146
      %v3195 = vadd.f32 %v3014, %v3147
      %v3196 = vadd.f32 %v3015, %v3148
      %v3197 = vadd.f32 %v3016, %v3149
      %v3198 = vadd.f32 %v3017, %v3150
      %v3199 = vld [vmem:[%s3018] sm:$0xf0]
      %v3200 = vld [vmem:[%s3018 + $0x10] sm:$0xf0]
      %v3201 = vld [vmem:[%s3018 + $0x20] sm:$0xf0]
      %v3202 = vld [vmem:[%s3018 + $0x30] sm:$0xf0]
      %v3203 = vld [vmem:[%s3018 + $0x40] sm:$0xf0]
      %v3204 = vld [vmem:[%s3018 + $0x50] sm:$0xf0]
      %v3205 = vld [vmem:[%s3018 + $0x60] sm:$0xf0]
      %v3206 = vld [vmem:[%s3018 + $0x70] sm:$0xf0]
      %v3207 = vld [vmem:[%s3018 + $0x80] sm:$0xf0]
      %v3208 = vld [vmem:[%s3018 + $0x90] sm:$0xf0]
      %v3209 = vld [vmem:[%s3018 + $0xa0] sm:$0xf0]
      %v3210 = vld [vmem:[%s3018 + $0xb0] sm:$0xf0]
      %v3211 = vld [vmem:[%s3018 + $0xc0] sm:$0xf0]
      %v3212 = vld [vmem:[%s3018 + $0xd0] sm:$0xf0]
      %v3213 = vld [vmem:[%s3018 + $0xe0] sm:$0xf0]
      %v3214 = vld [vmem:[%s3018 + $0xf0] sm:$0xf0]
      %v3247 = vrot.slane %v3199, 4
      %v3248 = vrot.slane %v3020, 4
      %v3249 = vsel %vm1331, %v3247, %v3248
      %v3250 = vrot.slane %v3200, 4
      %v3251 = vrot.slane %v3022, 4
      %v3252 = vsel %vm1331, %v3250, %v3251
      %v3253 = vrot.slane %v3201, 4
      %v3254 = vrot.slane %v3024, 4
      %v3255 = vsel %vm1331, %v3253, %v3254
      %v3256 = vrot.slane %v3202, 4
      %v3257 = vrot.slane %v3026, 4
      %v3258 = vsel %vm1331, %v3256, %v3257
      %v3259 = vrot.slane %v3203, 4
      %v3260 = vrot.slane %v3028, 4
      %v3261 = vsel %vm1331, %v3259, %v3260
      %v3262 = vrot.slane %v3204, 4
      %v3263 = vrot.slane %v3030, 4
      %v3264 = vsel %vm1331, %v3262, %v3263
      %v3265 = vrot.slane %v3205, 4
      %v3266 = vrot.slane %v3032, 4
      %v3267 = vsel %vm1331, %v3265, %v3266
      %v3268 = vrot.slane %v3206, 4
      %v3269 = vrot.slane %v3034, 4
      %v3270 = vsel %vm1331, %v3268, %v3269
      %v3271 = vrot.slane %v3207, 4
      %v3272 = vrot.slane %v3036, 4
      %v3273 = vsel %vm1331, %v3271, %v3272
      %v3274 = vrot.slane %v3208, 4
      %v3275 = vrot.slane %v3038, 4
      %v3276 = vsel %vm1331, %v3274, %v3275
      %v3277 = vrot.slane %v3209, 4
      %v3278 = vrot.slane %v3040, 4
      %v3279 = vsel %vm1331, %v3277, %v3278
      %v3280 = vrot.slane %v3210, 4
      %v3281 = vrot.slane %v3042, 4
      %v3282 = vsel %vm1331, %v3280, %v3281
      %v3283 = vrot.slane %v3211, 4
      %v3284 = vrot.slane %v3044, 4
      %v3285 = vsel %vm1331, %v3283, %v3284
      %v3286 = vrot.slane %v3212, 4
      %v3287 = vrot.slane %v3046, 4
      %v3288 = vsel %vm1331, %v3286, %v3287
      %v3289 = vrot.slane %v3213, 4
      %v3290 = vrot.slane %v3048, 4
      %v3291 = vsel %vm1331, %v3289, %v3290
      %v3292 = vrot.slane %v3214, 4
      %v3293 = vrot.slane %v3050, 4
      %v3294 = vsel %vm1331, %v3292, %v3293
      %v3311 = vunpack.c.l.bf16 %v3249
      %v3312 = vunpack.c.h.bf16 %v3249
      %v3313 = vunpack.c.l.bf16 %v3252
      %v3314 = vunpack.c.h.bf16 %v3252
      %v3315 = vunpack.c.l.bf16 %v3255
      %v3316 = vunpack.c.h.bf16 %v3255
      %v3317 = vunpack.c.l.bf16 %v3258
      %v3318 = vunpack.c.h.bf16 %v3258
      %v3319 = vunpack.c.l.bf16 %v3261
      %v3320 = vunpack.c.h.bf16 %v3261
      %v3321 = vunpack.c.l.bf16 %v3264
      %v3322 = vunpack.c.h.bf16 %v3264
      %v3323 = vunpack.c.l.bf16 %v3267
      %v3324 = vunpack.c.h.bf16 %v3267
      %v3325 = vunpack.c.l.bf16 %v3270
      %v3326 = vunpack.c.h.bf16 %v3270
      %v3327 = vunpack.c.l.bf16 %v3273
      %v3328 = vunpack.c.h.bf16 %v3273
      %v3329 = vunpack.c.l.bf16 %v3276
      %v3330 = vunpack.c.h.bf16 %v3276
      %v3331 = vunpack.c.l.bf16 %v3279
      %v3332 = vunpack.c.h.bf16 %v3279
      %v3333 = vunpack.c.l.bf16 %v3282
      %v3334 = vunpack.c.h.bf16 %v3282
      %v3335 = vunpack.c.l.bf16 %v3285
      %v3336 = vunpack.c.h.bf16 %v3285
      %v3337 = vunpack.c.l.bf16 %v3288
      %v3338 = vunpack.c.h.bf16 %v3288
      %v3339 = vunpack.c.l.bf16 %v3291
      %v3340 = vunpack.c.h.bf16 %v3291
      %v3341 = vunpack.c.l.bf16 %v3294
      %v3342 = vunpack.c.h.bf16 %v3294
      %v3343 = vlaneseq
      %v3344 = vshrl.u32 %v3343, 7
      %v3345 = vsub.s32 7, %v3344
      %v3346 = vrot.slane %v1147, %v3345
      %v3347 = vmul.f32 %v3311, %v3346
      %v3348 = vmul.f32 %v3312, %v3346
      %v3349 = vmul.f32 %v3313, %v3346
      %v3350 = vmul.f32 %v3314, %v3346
      %v3351 = vmul.f32 %v3315, %v3346
      %v3352 = vmul.f32 %v3316, %v3346
      %v3353 = vmul.f32 %v3317, %v3346
      %v3354 = vmul.f32 %v3318, %v3346
      %v3355 = vmul.f32 %v3319, %v3346
      %v3356 = vmul.f32 %v3320, %v3346
      %v3357 = vmul.f32 %v3321, %v3346
      %v3358 = vmul.f32 %v3322, %v3346
      %v3359 = vmul.f32 %v3323, %v3346
      %v3360 = vmul.f32 %v3324, %v3346
      %v3361 = vmul.f32 %v3325, %v3346
      %v3362 = vmul.f32 %v3326, %v3346
      %v3363 = vmul.f32 %v3327, %v3346
      %v3364 = vmul.f32 %v3328, %v3346
      %v3365 = vmul.f32 %v3329, %v3346
      %v3366 = vmul.f32 %v3330, %v3346
      %v3367 = vmul.f32 %v3331, %v3346
      %v3368 = vmul.f32 %v3332, %v3346
      %v3369 = vmul.f32 %v3333, %v3346
      %v3370 = vmul.f32 %v3334, %v3346
      %v3371 = vmul.f32 %v3335, %v3346
      %v3372 = vmul.f32 %v3336, %v3346
      %v3373 = vmul.f32 %v3337, %v3346
      %v3374 = vmul.f32 %v3338, %v3346
      %v3375 = vmul.f32 %v3339, %v3346
      %v3376 = vmul.f32 %v3340, %v3346
      %v3377 = vmul.f32 %v3341, %v3346
      %v3378 = vmul.f32 %v3342, %v3346
      %v3411 = vrot.slane %v3347, 1
      %v3412 = vrot.slane %v3348, 1
      %v3413 = vsel %vm1496, %v3411, %v3412
      %v3414 = vrot.slane %v3349, 1
      %v3415 = vrot.slane %v3350, 1
      %v3416 = vsel %vm1496, %v3414, %v3415
      %v3417 = vrot.slane %v3351, 1
      %v3418 = vrot.slane %v3352, 1
      %v3419 = vsel %vm1496, %v3417, %v3418
      %v3420 = vrot.slane %v3353, 1
      %v3421 = vrot.slane %v3354, 1
      %v3422 = vsel %vm1496, %v3420, %v3421
      %v3423 = vrot.slane %v3355, 1
      %v3424 = vrot.slane %v3356, 1
      %v3425 = vsel %vm1496, %v3423, %v3424
      %v3426 = vrot.slane %v3357, 1
      %v3427 = vrot.slane %v3358, 1
      %v3428 = vsel %vm1496, %v3426, %v3427
      %v3429 = vrot.slane %v3359, 1
      %v3430 = vrot.slane %v3360, 1
      %v3431 = vsel %vm1496, %v3429, %v3430
      %v3432 = vrot.slane %v3361, 1
      %v3433 = vrot.slane %v3362, 1
      %v3434 = vsel %vm1496, %v3432, %v3433
      %v3435 = vrot.slane %v3363, 1
      %v3436 = vrot.slane %v3364, 1
      %v3437 = vsel %vm1496, %v3435, %v3436
      %v3438 = vrot.slane %v3365, 1
      %v3439 = vrot.slane %v3366, 1
      %v3440 = vsel %vm1496, %v3438, %v3439
      %v3441 = vrot.slane %v3367, 1
      %v3442 = vrot.slane %v3368, 1
      %v3443 = vsel %vm1496, %v3441, %v3442
      %v3444 = vrot.slane %v3369, 1
      %v3445 = vrot.slane %v3370, 1
      %v3446 = vsel %vm1496, %v3444, %v3445
      %v3447 = vrot.slane %v3371, 1
      %v3448 = vrot.slane %v3372, 1
      %v3449 = vsel %vm1496, %v3447, %v3448
      %v3450 = vrot.slane %v3373, 1
      %v3451 = vrot.slane %v3374, 1
      %v3452 = vsel %vm1496, %v3450, %v3451
      %v3453 = vrot.slane %v3375, 1
      %v3454 = vrot.slane %v3376, 1
      %v3455 = vsel %vm1496, %v3453, %v3454
      %v3456 = vrot.slane %v3377, 1
      %v3457 = vrot.slane %v3378, 1
      %v3458 = vsel %vm1496, %v3456, %v3457
      %v3507 = vadd.f32 %v3151, %v3411
      %v3508 = vadd.f32 %v3152, %v3413
      %v3509 = vadd.f32 %v3153, %v3412
      %v3510 = vadd.f32 %v3154, %v3414
      %v3511 = vadd.f32 %v3155, %v3416
      %v3512 = vadd.f32 %v3156, %v3415
      %v3513 = vadd.f32 %v3157, %v3417
      %v3514 = vadd.f32 %v3158, %v3419
      %v3515 = vadd.f32 %v3159, %v3418
      %v3516 = vadd.f32 %v3160, %v3420
      %v3517 = vadd.f32 %v3161, %v3422
      %v3518 = vadd.f32 %v3162, %v3421
      %v3519 = vadd.f32 %v3163, %v3423
      %v3520 = vadd.f32 %v3164, %v3425
      %v3521 = vadd.f32 %v3165, %v3424
      %v3522 = vadd.f32 %v3166, %v3426
      %v3523 = vadd.f32 %v3167, %v3428
      %v3524 = vadd.f32 %v3168, %v3427
      %v3525 = vadd.f32 %v3169, %v3429
      %v3526 = vadd.f32 %v3170, %v3431
      %v3527 = vadd.f32 %v3171, %v3430
      %v3528 = vadd.f32 %v3172, %v3432
      %v3529 = vadd.f32 %v3173, %v3434
      %v3530 = vadd.f32 %v3174, %v3433
      %v3531 = vadd.f32 %v3175, %v3435
      %v3532 = vadd.f32 %v3176, %v3437
      %v3533 = vadd.f32 %v3177, %v3436
      %v3534 = vadd.f32 %v3178, %v3438
      %v3535 = vadd.f32 %v3179, %v3440
      %v3536 = vadd.f32 %v3180, %v3439
      %v3537 = vadd.f32 %v3181, %v3441
      %v3538 = vadd.f32 %v3182, %v3443
      %v3539 = vadd.f32 %v3183, %v3442
      %v3540 = vadd.f32 %v3184, %v3444
      %v3541 = vadd.f32 %v3185, %v3446
      %v3542 = vadd.f32 %v3186, %v3445
      %v3543 = vadd.f32 %v3187, %v3447
      %v3544 = vadd.f32 %v3188, %v3449
      %v3545 = vadd.f32 %v3189, %v3448
      %v3546 = vadd.f32 %v3190, %v3450
      %v3547 = vadd.f32 %v3191, %v3452
      %v3548 = vadd.f32 %v3192, %v3451
      %v3549 = vadd.f32 %v3193, %v3453
      %v3550 = vadd.f32 %v3194, %v3455
      %v3551 = vadd.f32 %v3195, %v3454
      %v3552 = vadd.f32 %v3196, %v3456
      %v3553 = vadd.f32 %v3197, %v3458
      %v3554 = vadd.f32 %v3198, %v3457
      %v3555 = vld [vmem:[%s3018 + $0x8] sm:$0x1f]
      %v3556 = vld [vmem:[%s3018 + $0x18] sm:$0x1f]
      %v3557 = vld [vmem:[%s3018 + $0x28] sm:$0x1f]
      %v3558 = vld [vmem:[%s3018 + $0x38] sm:$0x1f]
      %v3559 = vld [vmem:[%s3018 + $0x48] sm:$0x1f]
      %v3560 = vld [vmem:[%s3018 + $0x58] sm:$0x1f]
      %v3561 = vld [vmem:[%s3018 + $0x68] sm:$0x1f]
      %v3562 = vld [vmem:[%s3018 + $0x78] sm:$0x1f]
      %v3563 = vld [vmem:[%s3018 + $0x88] sm:$0x1f]
      %v3564 = vld [vmem:[%s3018 + $0x98] sm:$0x1f]
      %v3565 = vld [vmem:[%s3018 + $0xa8] sm:$0x1f]
      %v3566 = vld [vmem:[%s3018 + $0xb8] sm:$0x1f]
      %v3567 = vld [vmem:[%s3018 + $0xc8] sm:$0x1f]
      %v3568 = vld [vmem:[%s3018 + $0xd8] sm:$0x1f]
      %v3569 = vld [vmem:[%s3018 + $0xe8] sm:$0x1f]
      %v3570 = vld [vmem:[%s3018 + $0xf8] sm:$0x1f]
      %v3587 = vrot.slane %v3555, 4
      %v3588 = vsel %vm1331, %v3247, %v3587
      %v3589 = vrot.slane %v3556, 4
      %v3590 = vsel %vm1331, %v3250, %v3589
      %v3591 = vrot.slane %v3557, 4
      %v3592 = vsel %vm1331, %v3253, %v3591
      %v3593 = vrot.slane %v3558, 4
      %v3594 = vsel %vm1331, %v3256, %v3593
      %v3595 = vrot.slane %v3559, 4
      %v3596 = vsel %vm1331, %v3259, %v3595
      %v3597 = vrot.slane %v3560, 4
      %v3598 = vsel %vm1331, %v3262, %v3597
      %v3599 = vrot.slane %v3561, 4
      %v3600 = vsel %vm1331, %v3265, %v3599
      %v3601 = vrot.slane %v3562, 4
      %v3602 = vsel %vm1331, %v3268, %v3601
      %v3603 = vrot.slane %v3563, 4
      %v3604 = vsel %vm1331, %v3271, %v3603
      %v3605 = vrot.slane %v3564, 4
      %v3606 = vsel %vm1331, %v3274, %v3605
      %v3607 = vrot.slane %v3565, 4
      %v3608 = vsel %vm1331, %v3277, %v3607
      %v3609 = vrot.slane %v3566, 4
      %v3610 = vsel %vm1331, %v3280, %v3609
      %v3611 = vrot.slane %v3567, 4
      %v3612 = vsel %vm1331, %v3283, %v3611
      %v3613 = vrot.slane %v3568, 4
      %v3614 = vsel %vm1331, %v3286, %v3613
      %v3615 = vrot.slane %v3569, 4
      %v3616 = vsel %vm1331, %v3289, %v3615
      %v3617 = vrot.slane %v3570, 4
      %v3618 = vsel %vm1331, %v3292, %v3617
      %v3651 = vunpack.c.l.bf16 %v3588
      %v3652 = vunpack.c.h.bf16 %v3588
      %v3653 = vunpack.c.l.bf16 %v3587
      %v3654 = vunpack.c.l.bf16 %v3590
      %v3655 = vunpack.c.h.bf16 %v3590
      %v3656 = vunpack.c.l.bf16 %v3589
      %v3657 = vunpack.c.l.bf16 %v3592
      %v3658 = vunpack.c.h.bf16 %v3592
      %v3659 = vunpack.c.l.bf16 %v3591
      %v3660 = vunpack.c.l.bf16 %v3594
      %v3661 = vunpack.c.h.bf16 %v3594
      %v3662 = vunpack.c.l.bf16 %v3593
      %v3663 = vunpack.c.l.bf16 %v3596
      %v3664 = vunpack.c.h.bf16 %v3596
      %v3665 = vunpack.c.l.bf16 %v3595
      %v3666 = vunpack.c.l.bf16 %v3598
      %v3667 = vunpack.c.h.bf16 %v3598
      %v3668 = vunpack.c.l.bf16 %v3597
      %v3669 = vunpack.c.l.bf16 %v3600
      %v3670 = vunpack.c.h.bf16 %v3600
      %v3671 = vunpack.c.l.bf16 %v3599
      %v3672 = vunpack.c.l.bf16 %v3602
      %v3673 = vunpack.c.h.bf16 %v3602
      %v3674 = vunpack.c.l.bf16 %v3601
      %v3675 = vunpack.c.l.bf16 %v3604
      %v3676 = vunpack.c.h.bf16 %v3604
      %v3677 = vunpack.c.l.bf16 %v3603
      %v3678 = vunpack.c.l.bf16 %v3606
      %v3679 = vunpack.c.h.bf16 %v3606
      %v3680 = vunpack.c.l.bf16 %v3605
      %v3681 = vunpack.c.l.bf16 %v3608
      %v3682 = vunpack.c.h.bf16 %v3608
      %v3683 = vunpack.c.l.bf16 %v3607
      %v3684 = vunpack.c.l.bf16 %v3610
      %v3685 = vunpack.c.h.bf16 %v3610
      %v3686 = vunpack.c.l.bf16 %v3609
      %v3687 = vunpack.c.l.bf16 %v3612
      %v3688 = vunpack.c.h.bf16 %v3612
      %v3689 = vunpack.c.l.bf16 %v3611
      %v3690 = vunpack.c.l.bf16 %v3614
      %v3691 = vunpack.c.h.bf16 %v3614
      %v3692 = vunpack.c.l.bf16 %v3613
      %v3693 = vunpack.c.l.bf16 %v3616
      %v3694 = vunpack.c.h.bf16 %v3616
      %v3695 = vunpack.c.l.bf16 %v3615
      %v3696 = vunpack.c.l.bf16 %v3618
      %v3697 = vunpack.c.h.bf16 %v3618
      %v3698 = vunpack.c.l.bf16 %v3617
      %v3699 = vlaneseq
      %v3700 = vshrl.u32 %v3699, 7
      %v3701 = vsub.s32 0, %v3700
      %v3702 = vrot.slane %v1148, %v3701
      %v3703 = vmul.f32 %v3651, %v3702
      %v3704 = vmul.f32 %v3652, %v3702
      %v3705 = vmul.f32 %v3653, %v3702
      %v3706 = vmul.f32 %v3654, %v3702
      %v3707 = vmul.f32 %v3655, %v3702
      %v3708 = vmul.f32 %v3656, %v3702
      %v3709 = vmul.f32 %v3657, %v3702
      %v3710 = vmul.f32 %v3658, %v3702
      %v3711 = vmul.f32 %v3659, %v3702
      %v3712 = vmul.f32 %v3660, %v3702
      %v3713 = vmul.f32 %v3661, %v3702
      %v3714 = vmul.f32 %v3662, %v3702
      %v3715 = vmul.f32 %v3663, %v3702
      %v3716 = vmul.f32 %v3664, %v3702
      %v3717 = vmul.f32 %v3665, %v3702
      %v3718 = vmul.f32 %v3666, %v3702
      %v3719 = vmul.f32 %v3667, %v3702
      %v3720 = vmul.f32 %v3668, %v3702
      %v3721 = vmul.f32 %v3669, %v3702
      %v3722 = vmul.f32 %v3670, %v3702
      %v3723 = vmul.f32 %v3671, %v3702
      %v3724 = vmul.f32 %v3672, %v3702
      %v3725 = vmul.f32 %v3673, %v3702
      %v3726 = vmul.f32 %v3674, %v3702
      %v3727 = vmul.f32 %v3675, %v3702
      %v3728 = vmul.f32 %v3676, %v3702
      %v3729 = vmul.f32 %v3677, %v3702
      %v3730 = vmul.f32 %v3678, %v3702
      %v3731 = vmul.f32 %v3679, %v3702
      %v3732 = vmul.f32 %v3680, %v3702
      %v3733 = vmul.f32 %v3681, %v3702
      %v3734 = vmul.f32 %v3682, %v3702
      %v3735 = vmul.f32 %v3683, %v3702
      %v3736 = vmul.f32 %v3684, %v3702
      %v3737 = vmul.f32 %v3685, %v3702
      %v3738 = vmul.f32 %v3686, %v3702
      %v3739 = vmul.f32 %v3687, %v3702
      %v3740 = vmul.f32 %v3688, %v3702
      %v3741 = vmul.f32 %v3689, %v3702
      %v3742 = vmul.f32 %v3690, %v3702
      %v3743 = vmul.f32 %v3691, %v3702
      %v3744 = vmul.f32 %v3692, %v3702
      %v3745 = vmul.f32 %v3693, %v3702
      %v3746 = vmul.f32 %v3694, %v3702
      %v3747 = vmul.f32 %v3695, %v3702
      %v3748 = vmul.f32 %v3696, %v3702
      %v3749 = vmul.f32 %v3697, %v3702
      %v3750 = vmul.f32 %v3698, %v3702
      %v3799 = vrot.slane %v3703, 2
      %v3800 = vrot.slane %v3704, 2
      %v3801 = vsel %vm1885, %v3799, %v3800
      %v3802 = vrot.slane %v3705, 2
      %v3803 = vsel %vm1885, %v3800, %v3802
      %v3804 = vrot.slane %v3706, 2
      %v3805 = vrot.slane %v3707, 2
      %v3806 = vsel %vm1885, %v3804, %v3805
      %v3807 = vrot.slane %v3708, 2
      %v3808 = vsel %vm1885, %v3805, %v3807
      %v3809 = vrot.slane %v3709, 2
      %v3810 = vrot.slane %v3710, 2
      %v3811 = vsel %vm1885, %v3809, %v3810
      %v3812 = vrot.slane %v3711, 2
      %v3813 = vsel %vm1885, %v3810, %v3812
      %v3814 = vrot.slane %v3712, 2
      %v3815 = vrot.slane %v3713, 2
      %v3816 = vsel %vm1885, %v3814, %v3815
      %v3817 = vrot.slane %v3714, 2
      %v3818 = vsel %vm1885, %v3815, %v3817
      %v3819 = vrot.slane %v3715, 2
      %v3820 = vrot.slane %v3716, 2
      %v3821 = vsel %vm1885, %v3819, %v3820
      %v3822 = vrot.slane %v3717, 2
      %v3823 = vsel %vm1885, %v3820, %v3822
      %v3824 = vrot.slane %v3718, 2
      %v3825 = vrot.slane %v3719, 2
      %v3826 = vsel %vm1885, %v3824, %v3825
      %v3827 = vrot.slane %v3720, 2
      %v3828 = vsel %vm1885, %v3825, %v3827
      %v3829 = vrot.slane %v3721, 2
      %v3830 = vrot.slane %v3722, 2
      %v3831 = vsel %vm1885, %v3829, %v3830
      %v3832 = vrot.slane %v3723, 2
      %v3833 = vsel %vm1885, %v3830, %v3832
      %v3834 = vrot.slane %v3724, 2
      %v3835 = vrot.slane %v3725, 2
      %v3836 = vsel %vm1885, %v3834, %v3835
      %v3837 = vrot.slane %v3726, 2
      %v3838 = vsel %vm1885, %v3835, %v3837
      %v3839 = vrot.slane %v3727, 2
      %v3840 = vrot.slane %v3728, 2
      %v3841 = vsel %vm1885, %v3839, %v3840
      %v3842 = vrot.slane %v3729, 2
      %v3843 = vsel %vm1885, %v3840, %v3842
      %v3844 = vrot.slane %v3730, 2
      %v3845 = vrot.slane %v3731, 2
      %v3846 = vsel %vm1885, %v3844, %v3845
      %v3847 = vrot.slane %v3732, 2
      %v3848 = vsel %vm1885, %v3845, %v3847
      %v3849 = vrot.slane %v3733, 2
      %v3850 = vrot.slane %v3734, 2
      %v3851 = vsel %vm1885, %v3849, %v3850
      %v3852 = vrot.slane %v3735, 2
      %v3853 = vsel %vm1885, %v3850, %v3852
      %v3854 = vrot.slane %v3736, 2
      %v3855 = vrot.slane %v3737, 2
      %v3856 = vsel %vm1885, %v3854, %v3855
      %v3857 = vrot.slane %v3738, 2
      %v3858 = vsel %vm1885, %v3855, %v3857
      %v3859 = vrot.slane %v3739, 2
      %v3860 = vrot.slane %v3740, 2
      %v3861 = vsel %vm1885, %v3859, %v3860
      %v3862 = vrot.slane %v3741, 2
      %v3863 = vsel %vm1885, %v3860, %v3862
      %v3864 = vrot.slane %v3742, 2
      %v3865 = vrot.slane %v3743, 2
      %v3866 = vsel %vm1885, %v3864, %v3865
      %v3867 = vrot.slane %v3744, 2
      %v3868 = vsel %vm1885, %v3865, %v3867
      %v3869 = vrot.slane %v3745, 2
      %v3870 = vrot.slane %v3746, 2
      %v3871 = vsel %vm1885, %v3869, %v3870
      %v3872 = vrot.slane %v3747, 2
      %v3873 = vsel %vm1885, %v3870, %v3872
      %v3874 = vrot.slane %v3748, 2
      %v3875 = vrot.slane %v3749, 2
      %v3876 = vsel %vm1885, %v3874, %v3875
      %v3877 = vrot.slane %v3750, 2
      %v3878 = vsel %vm1885, %v3875, %v3877
      %v3927 = vadd.f32 %v3507, %v3799
      %v3928 = vadd.f32 %v3508, %v3801
      %v3929 = vadd.f32 %v3509, %v3803
      %v3930 = vadd.f32 %v3510, %v3804
      %v3931 = vadd.f32 %v3511, %v3806
      %v3932 = vadd.f32 %v3512, %v3808
      %v3933 = vadd.f32 %v3513, %v3809
      %v3934 = vadd.f32 %v3514, %v3811
      %v3935 = vadd.f32 %v3515, %v3813
      %v3936 = vadd.f32 %v3516, %v3814
      %v3937 = vadd.f32 %v3517, %v3816
      %v3938 = vadd.f32 %v3518, %v3818
      %v3939 = vadd.f32 %v3519, %v3819
      %v3940 = vadd.f32 %v3520, %v3821
      %v3941 = vadd.f32 %v3521, %v3823
      %v3942 = vadd.f32 %v3522, %v3824
      %v3943 = vadd.f32 %v3523, %v3826
      %v3944 = vadd.f32 %v3524, %v3828
      %v3945 = vadd.f32 %v3525, %v3829
      %v3946 = vadd.f32 %v3526, %v3831
      %v3947 = vadd.f32 %v3527, %v3833
      %v3948 = vadd.f32 %v3528, %v3834
      %v3949 = vadd.f32 %v3529, %v3836
      %v3950 = vadd.f32 %v3530, %v3838
      %v3951 = vadd.f32 %v3531, %v3839
      %v3952 = vadd.f32 %v3532, %v3841
      %v3953 = vadd.f32 %v3533, %v3843
      %v3954 = vadd.f32 %v3534, %v3844
      %v3955 = vadd.f32 %v3535, %v3846
      %v3956 = vadd.f32 %v3536, %v3848
      %v3957 = vadd.f32 %v3537, %v3849
      %v3958 = vadd.f32 %v3538, %v3851
      %v3959 = vadd.f32 %v3539, %v3853
      %v3960 = vadd.f32 %v3540, %v3854
      %v3961 = vadd.f32 %v3541, %v3856
      %v3962 = vadd.f32 %v3542, %v3858
      %v3963 = vadd.f32 %v3543, %v3859
      %v3964 = vadd.f32 %v3544, %v3861
      %v3965 = vadd.f32 %v3545, %v3863
      %v3966 = vadd.f32 %v3546, %v3864
      %v3967 = vadd.f32 %v3547, %v3866
      %v3968 = vadd.f32 %v3548, %v3868
      %v3969 = vadd.f32 %v3549, %v3869
      %v3970 = vadd.f32 %v3550, %v3871
      %v3971 = vadd.f32 %v3551, %v3873
      %v3972 = vadd.f32 %v3552, %v3874
      %v3973 = vadd.f32 %v3553, %v3876
      %v3974 = vadd.f32 %v3554, %v3878
      %v3976 = vlaneseq
      %v3977 = vshrl.u32 %v3976, 7
      %v3978 = vsub.s32 0, %v3977
      %v3979 = vrot.slane %v1149, %v3978
      %v3981 = vadd.f32 %v3927, %v3979
      %v3982 = vadd.f32 %v3928, %v3979
      %v3983 = vadd.f32 %v3929, %v3979
      %v3984 = vadd.f32 %v3930, %v3979
      %v3985 = vadd.f32 %v3931, %v3979
      %v3986 = vadd.f32 %v3932, %v3979
      %v3987 = vadd.f32 %v3933, %v3979
      %v3988 = vadd.f32 %v3934, %v3979
      %v3989 = vadd.f32 %v3935, %v3979
      %v3990 = vadd.f32 %v3936, %v3979
      %v3991 = vadd.f32 %v3937, %v3979
      %v3992 = vadd.f32 %v3938, %v3979
      %v3993 = vadd.f32 %v3939, %v3979
      %v3994 = vadd.f32 %v3940, %v3979
      %v3995 = vadd.f32 %v3941, %v3979
      %v3996 = vadd.f32 %v3942, %v3979
      %v3997 = vadd.f32 %v3943, %v3979
      %v3998 = vadd.f32 %v3944, %v3979
      %v3999 = vadd.f32 %v3945, %v3979
      %v4000 = vadd.f32 %v3946, %v3979
      %v4001 = vadd.f32 %v3947, %v3979
      %v4002 = vadd.f32 %v3948, %v3979
      %v4003 = vadd.f32 %v3949, %v3979
      %v4004 = vadd.f32 %v3950, %v3979
      %v4005 = vadd.f32 %v3951, %v3979
      %v4006 = vadd.f32 %v3952, %v3979
      %v4007 = vadd.f32 %v3953, %v3979
      %v4008 = vadd.f32 %v3954, %v3979
      %v4009 = vadd.f32 %v3955, %v3979
      %v4010 = vadd.f32 %v3956, %v3979
      %v4011 = vadd.f32 %v3957, %v3979
      %v4012 = vadd.f32 %v3958, %v3979
      %v4013 = vadd.f32 %v3959, %v3979
      %v4014 = vadd.f32 %v3960, %v3979
      %v4015 = vadd.f32 %v3961, %v3979
      %v4016 = vadd.f32 %v3962, %v3979
      %v4017 = vadd.f32 %v3963, %v3979
      %v4018 = vadd.f32 %v3964, %v3979
      %v4019 = vadd.f32 %v3965, %v3979
      %v4020 = vadd.f32 %v3966, %v3979
      %v4021 = vadd.f32 %v3967, %v3979
      %v4022 = vadd.f32 %v3968, %v3979
      %v4023 = vadd.f32 %v3969, %v3979
      %v4024 = vadd.f32 %v3970, %v3979
      %v4025 = vadd.f32 %v3971, %v3979
      %v4026 = vadd.f32 %v3972, %v3979
      %v4027 = vadd.f32 %v3973, %v3979
      %v4028 = vadd.f32 %v3974, %v3979
      %v4029 = vmax.f32 %v3981, 0.0
      %v4030 = vmax.f32 %v3982, 0.0
      %v4031 = vmax.f32 %v3983, 0.0
      %v4032 = vmax.f32 %v3984, 0.0
      %v4033 = vmax.f32 %v3985, 0.0
      %v4034 = vmax.f32 %v3986, 0.0
      %v4035 = vmax.f32 %v3987, 0.0
      %v4036 = vmax.f32 %v3988, 0.0
      %v4037 = vmax.f32 %v3989, 0.0
      %v4038 = vmax.f32 %v3990, 0.0
      %v4039 = vmax.f32 %v3991, 0.0
      %v4040 = vmax.f32 %v3992, 0.0
      %v4041 = vmax.f32 %v3993, 0.0
      %v4042 = vmax.f32 %v3994, 0.0
      %v4043 = vmax.f32 %v3995, 0.0
      %v4044 = vmax.f32 %v3996, 0.0
      %v4045 = vmax.f32 %v3997, 0.0
      %v4046 = vmax.f32 %v3998, 0.0
      %v4047 = vmax.f32 %v3999, 0.0
      %v4048 = vmax.f32 %v4000, 0.0
      %v4049 = vmax.f32 %v4001, 0.0
      %v4050 = vmax.f32 %v4002, 0.0
      %v4051 = vmax.f32 %v4003, 0.0
      %v4052 = vmax.f32 %v4004, 0.0
      %v4053 = vmax.f32 %v4005, 0.0
      %v4054 = vmax.f32 %v4006, 0.0
      %v4055 = vmax.f32 %v4007, 0.0
      %v4056 = vmax.f32 %v4008, 0.0
      %v4057 = vmax.f32 %v4009, 0.0
      %v4058 = vmax.f32 %v4010, 0.0
      %v4059 = vmax.f32 %v4011, 0.0
      %v4060 = vmax.f32 %v4012, 0.0
      %v4061 = vmax.f32 %v4013, 0.0
      %v4062 = vmax.f32 %v4014, 0.0
      %v4063 = vmax.f32 %v4015, 0.0
      %v4064 = vmax.f32 %v4016, 0.0
      %v4065 = vmax.f32 %v4017, 0.0
      %v4066 = vmax.f32 %v4018, 0.0
      %v4067 = vmax.f32 %v4019, 0.0
      %v4068 = vmax.f32 %v4020, 0.0
      %v4069 = vmax.f32 %v4021, 0.0
      %v4070 = vmax.f32 %v4022, 0.0
      %v4071 = vmax.f32 %v4023, 0.0
      %v4072 = vmax.f32 %v4024, 0.0
      %v4073 = vmax.f32 %v4025, 0.0
      %v4074 = vmax.f32 %v4026, 0.0
      %v4075 = vmax.f32 %v4027, 0.0
      %v4076 = vmax.f32 %v4028, 0.0
      %v4077 = vmin.f32 %v4029, 6.0
      %v4078 = vmin.f32 %v4030, 6.0
      %v4079 = vmin.f32 %v4031, 6.0
      %v4080 = vmin.f32 %v4032, 6.0
      %v4081 = vmin.f32 %v4033, 6.0
      %v4082 = vmin.f32 %v4034, 6.0
      %v4083 = vmin.f32 %v4035, 6.0
      %v4084 = vmin.f32 %v4036, 6.0
      %v4085 = vmin.f32 %v4037, 6.0
      %v4086 = vmin.f32 %v4038, 6.0
      %v4087 = vmin.f32 %v4039, 6.0
      %v4088 = vmin.f32 %v4040, 6.0
      %v4089 = vmin.f32 %v4041, 6.0
      %v4090 = vmin.f32 %v4042, 6.0
      %v4091 = vmin.f32 %v4043, 6.0
      %v4092 = vmin.f32 %v4044, 6.0
      %v4093 = vmin.f32 %v4045, 6.0
      %v4094 = vmin.f32 %v4046, 6.0
      %v4095 = vmin.f32 %v4047, 6.0
      %v4096 = vmin.f32 %v4048, 6.0
      %v4097 = vmin.f32 %v4049, 6.0
      %v4098 = vmin.f32 %v4050, 6.0
      %v4099 = vmin.f32 %v4051, 6.0
      %v4100 = vmin.f32 %v4052, 6.0
      %v4101 = vmin.f32 %v4053, 6.0
      %v4102 = vmin.f32 %v4054, 6.0
      %v4103 = vmin.f32 %v4055, 6.0
      %v4104 = vmin.f32 %v4056, 6.0
      %v4105 = vmin.f32 %v4057, 6.0
      %v4106 = vmin.f32 %v4058, 6.0
      %v4107 = vmin.f32 %v4059, 6.0
      %v4108 = vmin.f32 %v4060, 6.0
      %v4109 = vmin.f32 %v4061, 6.0
      %v4110 = vmin.f32 %v4062, 6.0
      %v4111 = vmin.f32 %v4063, 6.0
      %v4112 = vmin.f32 %v4064, 6.0
      %v4113 = vmin.f32 %v4065, 6.0
      %v4114 = vmin.f32 %v4066, 6.0
      %v4115 = vmin.f32 %v4067, 6.0
      %v4116 = vmin.f32 %v4068, 6.0
      %v4117 = vmin.f32 %v4069, 6.0
      %v4118 = vmin.f32 %v4070, 6.0
      %v4119 = vmin.f32 %v4071, 6.0
      %v4120 = vmin.f32 %v4072, 6.0
      %v4121 = vmin.f32 %v4073, 6.0
      %v4122 = vmin.f32 %v4074, 6.0
      %v4123 = vmin.f32 %v4075, 6.0
      %v4124 = vmin.f32 %v4076, 6.0
      %vm4173 = vcmask 1040384
      %v4174 = vrot.slane %v4077, 7
      %v4175 = vrot.slane %v4078, 7
      %v4176 = vsel %vm4173, %v4174, %v4175
      %v4177 = vrot.slane %v4079, 7
      %v4178 = vsel %vm4173, %v4175, %v4177
      %v4179 = vrot.slane %v4080, 7
      %v4180 = vrot.slane %v4081, 7
      %v4181 = vsel %vm4173, %v4179, %v4180
      %v4182 = vrot.slane %v4082, 7
      %v4183 = vsel %vm4173, %v4180, %v4182
      %v4184 = vrot.slane %v4083, 7
      %v4185 = vrot.slane %v4084, 7
      %v4186 = vsel %vm4173, %v4184, %v4185
      %v4187 = vrot.slane %v4085, 7
      %v4188 = vsel %vm4173, %v4185, %v4187
      %v4189 = vrot.slane %v4086, 7
      %v4190 = vrot.slane %v4087, 7
      %v4191 = vsel %vm4173, %v4189, %v4190
      %v4192 = vrot.slane %v4088, 7
      %v4193 = vsel %vm4173, %v4190, %v4192
      %v4194 = vrot.slane %v4089, 7
      %v4195 = vrot.slane %v4090, 7
      %v4196 = vsel %vm4173, %v4194, %v4195
      %v4197 = vrot.slane %v4091, 7
      %v4198 = vsel %vm4173, %v4195, %v4197
      %v4199 = vrot.slane %v4092, 7
      %v4200 = vrot.slane %v4093, 7
      %v4201 = vsel %vm4173, %v4199, %v4200
      %v4202 = vrot.slane %v4094, 7
      %v4203 = vsel %vm4173, %v4200, %v4202
      %v4204 = vrot.slane %v4095, 7
      %v4205 = vrot.slane %v4096, 7
      %v4206 = vsel %vm4173, %v4204, %v4205
      %v4207 = vrot.slane %v4097, 7
      %v4208 = vsel %vm4173, %v4205, %v4207
      %v4209 = vrot.slane %v4098, 7
      %v4210 = vrot.slane %v4099, 7
      %v4211 = vsel %vm4173, %v4209, %v4210
      %v4212 = vrot.slane %v4100, 7
      %v4213 = vsel %vm4173, %v4210, %v4212
      %v4214 = vrot.slane %v4101, 7
      %v4215 = vrot.slane %v4102, 7
      %v4216 = vsel %vm4173, %v4214, %v4215
      %v4217 = vrot.slane %v4103, 7
      %v4218 = vsel %vm4173, %v4215, %v4217
      %v4219 = vrot.slane %v4104, 7
      %v4220 = vrot.slane %v4105, 7
      %v4221 = vsel %vm4173, %v4219, %v4220
      %v4222 = vrot.slane %v4106, 7
      %v4223 = vsel %vm4173, %v4220, %v4222
      %v4224 = vrot.slane %v4107, 7
      %v4225 = vrot.slane %v4108, 7
      %v4226 = vsel %vm4173, %v4224, %v4225
      %v4227 = vrot.slane %v4109, 7
      %v4228 = vsel %vm4173, %v4225, %v4227
      %v4229 = vrot.slane %v4110, 7
      %v4230 = vrot.slane %v4111, 7
      %v4231 = vsel %vm4173, %v4229, %v4230
      %v4232 = vrot.slane %v4112, 7
      %v4233 = vsel %vm4173, %v4230, %v4232
      %v4234 = vrot.slane %v4113, 7
      %v4235 = vrot.slane %v4114, 7
      %v4236 = vsel %vm4173, %v4234, %v4235
      %v4237 = vrot.slane %v4115, 7
      %v4238 = vsel %vm4173, %v4235, %v4237
      %v4239 = vrot.slane %v4116, 7
      %v4240 = vrot.slane %v4117, 7
      %v4241 = vsel %vm4173, %v4239, %v4240
      %v4242 = vrot.slane %v4118, 7
      %v4243 = vsel %vm4173, %v4240, %v4242
      %v4244 = vrot.slane %v4119, 7
      %v4245 = vrot.slane %v4120, 7
      %v4246 = vsel %vm4173, %v4244, %v4245
      %v4247 = vrot.slane %v4121, 7
      %v4248 = vsel %vm4173, %v4245, %v4247
      %v4249 = vrot.slane %v4122, 7
      %v4250 = vrot.slane %v4123, 7
      %v4251 = vsel %vm4173, %v4249, %v4250
      %v4252 = vrot.slane %v4124, 7
      %v4253 = vsel %vm4173, %v4250, %v4252
      %v4286 = vpack.c.bf16 %v4178, %v4176
      %v4287 = vpack.c.bf16 %v4183, %v4181
      %v4288 = vpack.c.bf16 %v4188, %v4186
      %v4289 = vpack.c.bf16 %v4193, %v4191
      %v4290 = vpack.c.bf16 %v4198, %v4196
      %v4291 = vpack.c.bf16 %v4203, %v4201
      %v4292 = vpack.c.bf16 %v4208, %v4206
      %v4293 = vpack.c.bf16 %v4213, %v4211
      %v4294 = vpack.c.bf16 %v4218, %v4216
      %v4295 = vpack.c.bf16 %v4223, %v4221
      %v4296 = vpack.c.bf16 %v4228, %v4226
      %v4297 = vpack.c.bf16 %v4233, %v4231
      %v4298 = vpack.c.bf16 %v4238, %v4236
      %v4299 = vpack.c.bf16 %v4243, %v4241
      %v4300 = vpack.c.bf16 %v4248, %v4246
      %v4301 = vpack.c.bf16 %v4253, %v4251
      %v4302 = vld [vmem:[%s5] sm:$0xf]
      %v4303 = vld [vmem:[%s5 + $0x4] sm:$0xf]
      %v4304 = vld [vmem:[%s5 + $0x8] sm:$0xf]
      %v4305 = vld [vmem:[%s5 + $0xc] sm:$0xf]
      %v4306 = vld [vmem:[%s5 + $0x10] sm:$0xf]
      %v4307 = vld [vmem:[%s5 + $0x14] sm:$0xf]
      %v4308 = vld [vmem:[%s5 + $0x18] sm:$0xf]
      %v4309 = vld [vmem:[%s5 + $0x1c] sm:$0xf]
      %v4310 = vld [vmem:[%s5 + $0x20] sm:$0xf]
      %v4311 = vld [vmem:[%s5 + $0x24] sm:$0xf]
      %v4312 = vld [vmem:[%s5 + $0x28] sm:$0xf]
      %v4313 = vld [vmem:[%s5 + $0x2c] sm:$0xf]
      %v4314 = vld [vmem:[%s5 + $0x30] sm:$0xf]
      %v4315 = vld [vmem:[%s5 + $0x34] sm:$0xf]
      %v4316 = vld [vmem:[%s5 + $0x38] sm:$0xf]
      %v4317 = vld [vmem:[%s5 + $0x3c] sm:$0xf]
      %v4319 = vlaneseq
      %v4320 = vshrl.u32 %v4319, 7
      %v4321 = vsub.s32 0, %v4320
      %v4322 = vrot.slane %v1150, %v4321
      %v4340 = vunpack.c.l.b16 %v4302
      %v4341 = vunpack.c.l.b16 %v4303
      %v4342 = vunpack.c.l.b16 %v4304
      %v4343 = vunpack.c.l.b16 %v4305
      %v4344 = vunpack.c.l.b16 %v4306
      %v4345 = vunpack.c.l.b16 %v4307
      %v4346 = vunpack.c.l.b16 %v4308
      %v4347 = vunpack.c.l.b16 %v4309
      %v4348 = vunpack.c.l.b16 %v4310
      %v4349 = vunpack.c.l.b16 %v4311
      %v4350 = vunpack.c.l.b16 %v4312
      %v4351 = vunpack.c.l.b16 %v4313
      %v4352 = vunpack.c.l.b16 %v4314
      %v4353 = vunpack.c.l.b16 %v4315
      %v4354 = vunpack.c.l.b16 %v4316
      %v4355 = vunpack.c.l.b16 %v4317
      %v4356 = vpack.c.b16 %v4341, %v4340
      %v4357 = vpack.c.b16 %v4343, %v4342
      %v4358 = vpack.c.b16 %v4345, %v4344
      %v4359 = vpack.c.b16 %v4347, %v4346
      %v4360 = vpack.c.b16 %v4349, %v4348
      %v4361 = vpack.c.b16 %v4351, %v4350
      %v4362 = vpack.c.b16 %v4353, %v4352
      %v4363 = vpack.c.b16 %v4355, %v4354
      %4372 = vmatprep.subr.bf16.mxu0 0
      %4373 = vmatpush1.bf16.msra.mxu0 %v4356
      %4374 = vmatprep.subr.bf16.mxu0 0
      %4375 = vmatpush1.bf16.msra.mxu0 %v4357
      %4376 = vmatprep.subr.bf16.mxu0 0
      %4377 = vmatpush1.bf16.msra.mxu0 %v4358
      %4378 = vmatprep.subr.bf16.mxu0 0
      %4379 = vmatpush1.bf16.msra.mxu0 %v4359
      %4380 = vmatprep.subr.bf16.mxu0 0
      %4381 = vmatpush1.bf16.msra.mxu0 %v4360
      %4382 = vmatprep.subr.bf16.mxu0 0
      %4383 = vmatpush1.bf16.msra.mxu0 %v4361
      %4384 = vmatprep.subr.bf16.mxu0 0
      %4385 = vmatpush1.bf16.msra.mxu0 %v4362
      %4386 = vmatprep.subr.bf16.mxu0 0
      %4387 = vmatpush1.bf16.msra.mxu0 %v4363
      %4388 = vmatprep.subr.bf16.mxu0 0
      %4389 = vmatpush1.bf16.msra.mxu0 0
      %4390 = vmatprep.subr.bf16.mxu0 0
      %4391 = vmatpush1.bf16.msra.mxu0 0
      %4392 = vmatprep.subr.bf16.mxu0 0
      %4393 = vmatpush1.bf16.msra.mxu0 0
      %4394 = vmatprep.subr.bf16.mxu0 0
      %4395 = vmatpush1.bf16.msra.mxu0 0
      %4396 = vmatprep.subr.bf16.mxu0 0
      %4397 = vmatpush1.bf16.msra.mxu0 0
      %4398 = vmatprep.subr.bf16.mxu0 0
      %4399 = vmatpush1.bf16.msra.mxu0 0
      %4400 = vmatprep.subr.bf16.mxu0 0
      %4401 = vmatpush1.bf16.msra.mxu0 0
      %4402 = vmatprep.subr.bf16.mxu0 0
      %4403 = vmatpush1.bf16.msra.mxu0 0
      %4404 = vmatprep.mubr.bf16.mxu0 0
      %4405 = vmatmul.mubr.bf16.gmra.mrb[0].mxu0 %v4286
      %v4406 = vpop.f32.mrb[0].mxu0
      %v4407 = vadd.f32 %v4322, %v4406
      %v4408 = vpop.f32.mrb[0].mxu0
      %v4409 = vpop.f32.mrb[0].mxu0
      %v4410 = vadd.f32 %v4322, %v4409
      %v4411 = vpop.f32.mrb[0].mxu0
      %4412 = vmatprep.mubr.bf16.mxu0 0
      %4413 = vmatmul.mubr.bf16.gmra.mrb[0].mxu0 %v4287
      %v4414 = vpop.f32.mrb[0].mxu0
      %v4415 = vadd.f32 %v4322, %v4414
      %v4416 = vpop.f32.mrb[0].mxu0
      %v4417 = vpop.f32.mrb[0].mxu0
      %v4418 = vadd.f32 %v4322, %v4417
      %v4419 = vpop.f32.mrb[0].mxu0
      %4420 = vmatprep.mubr.bf16.mxu0 0
      %4421 = vmatmul.mubr.bf16.gmra.mrb[0].mxu0 %v4288
      %v4422 = vpop.f32.mrb[0].mxu0
      %v4423 = vadd.f32 %v4322, %v4422
      %v4424 = vpop.f32.mrb[0].mxu0
      %v4425 = vpop.f32.mrb[0].mxu0
      %v4426 = vadd.f32 %v4322, %v4425
      %v4427 = vpop.f32.mrb[0].mxu0
      %4428 = vmatprep.mubr.bf16.mxu0 0
      %4429 = vmatmul.mubr.bf16.gmra.mrb[0].mxu0 %v4289
      %v4430 = vpop.f32.mrb[0].mxu0
      %v4431 = vadd.f32 %v4322, %v4430
      %v4432 = vpop.f32.mrb[0].mxu0
      %v4433 = vpop.f32.mrb[0].mxu0
      %v4434 = vadd.f32 %v4322, %v4433
      %v4435 = vpop.f32.mrb[0].mxu0
      %4436 = vmatprep.mubr.bf16.mxu0 0
      %4437 = vmatmul.mubr.bf16.gmra.mrb[0].mxu0 %v4290
      %v4438 = vpop.f32.mrb[0].mxu0
      %v4439 = vadd.f32 %v4322, %v4438
      %v4440 = vpop.f32.mrb[0].mxu0
      %v4441 = vpop.f32.mrb[0].mxu0
      %v4442 = vadd.f32 %v4322, %v4441
      %v4443 = vpop.f32.mrb[0].mxu0
      %4444 = vmatprep.mubr.bf16.mxu0 0
      %4445 = vmatmul.mubr.bf16.gmra.mrb[0].mxu0 %v4291
      %v4446 = vpop.f32.mrb[0].mxu0
      %v4447 = vadd.f32 %v4322, %v4446
      %v4448 = vpop.f32.mrb[0].mxu0
      %v4449 = vpop.f32.mrb[0].mxu0
      %v4450 = vadd.f32 %v4322, %v4449
      %v4451 = vpop.f32.mrb[0].mxu0
      %4452 = vmatprep.mubr.bf16.mxu0 0
      %4453 = vmatmul.mubr.bf16.gmra.mrb[0].mxu0 %v4292
      %v4454 = vpop.f32.mrb[0].mxu0
      %v4455 = vadd.f32 %v4322, %v4454
      %v4456 = vpop.f32.mrb[0].mxu0
      %v4457 = vpop.f32.mrb[0].mxu0
      %v4458 = vadd.f32 %v4322, %v4457
      %v4459 = vpop.f32.mrb[0].mxu0
      %4460 = vmatprep.mubr.bf16.mxu0 0
      %4461 = vmatmul.mubr.bf16.gmra.mrb[0].mxu0 %v4293
      %v4462 = vpop.f32.mrb[0].mxu0
      %v4463 = vadd.f32 %v4322, %v4462
      %v4464 = vpop.f32.mrb[0].mxu0
      %v4465 = vpop.f32.mrb[0].mxu0
      %v4466 = vadd.f32 %v4322, %v4465
      %v4467 = vpop.f32.mrb[0].mxu0
      %4468 = vmatprep.mubr.bf16.mxu0 0
      %4469 = vmatmul.mubr.bf16.gmra.mrb[0].mxu0 %v4294
      %v4470 = vpop.f32.mrb[0].mxu0
      %v4471 = vadd.f32 %v4322, %v4470
      %v4472 = vpop.f32.mrb[0].mxu0
      %v4473 = vpop.f32.mrb[0].mxu0
      %v4474 = vadd.f32 %v4322, %v4473
      %v4475 = vpop.f32.mrb[0].mxu0
      %4476 = vmatprep.mubr.bf16.mxu0 0
      %4477 = vmatmul.mubr.bf16.gmra.mrb[0].mxu0 %v4295
      %v4478 = vpop.f32.mrb[0].mxu0
      %v4479 = vadd.f32 %v4322, %v4478
      %v4480 = vpop.f32.mrb[0].mxu0
      %v4481 = vpop.f32.mrb[0].mxu0
      %v4482 = vadd.f32 %v4322, %v4481
      %v4483 = vpop.f32.mrb[0].mxu0
      %4484 = vmatprep.mubr.bf16.mxu0 0
      %4485 = vmatmul.mubr.bf16.gmra.mrb[0].mxu0 %v4296
      %v4486 = vpop.f32.mrb[0].mxu0
      %v4487 = vadd.f32 %v4322, %v4486
      %v4488 = vpop.f32.mrb[0].mxu0
      %v4489 = vpop.f32.mrb[0].mxu0
      %v4490 = vadd.f32 %v4322, %v4489
      %v4491 = vpop.f32.mrb[0].mxu0
      %4492 = vmatprep.mubr.bf16.mxu0 0
      %4493 = vmatmul.mubr.bf16.gmra.mrb[0].mxu0 %v4297
      %v4494 = vpop.f32.mrb[0].mxu0
      %v4495 = vadd.f32 %v4322, %v4494
      %v4496 = vpop.f32.mrb[0].mxu0
      %v4497 = vpop.f32.mrb[0].mxu0
      %v4498 = vadd.f32 %v4322, %v4497
      %v4499 = vpop.f32.mrb[0].mxu0
      %4500 = vmatprep.mubr.bf16.mxu0 0
      %4501 = vmatmul.mubr.bf16.gmra.mrb[0].mxu0 %v4298
      %v4502 = vpop.f32.mrb[0].mxu0
      %v4503 = vadd.f32 %v4322, %v4502
      %v4504 = vpop.f32.mrb[0].mxu0
      %v4505 = vpop.f32.mrb[0].mxu0
      %v4506 = vadd.f32 %v4322, %v4505
      %v4507 = vpop.f32.mrb[0].mxu0
      %4508 = vmatprep.mubr.bf16.mxu0 0
      %4509 = vmatmul.mubr.bf16.gmra.mrb[0].mxu0 %v4299
      %v4510 = vpop.f32.mrb[0].mxu0
      %v4511 = vadd.f32 %v4322, %v4510
      %v4512 = vpop.f32.mrb[0].mxu0
      %v4513 = vpop.f32.mrb[0].mxu0
      %v4514 = vadd.f32 %v4322, %v4513
      %v4515 = vpop.f32.mrb[0].mxu0
      %4516 = vmatprep.mubr.bf16.mxu0 0
      %4517 = vmatmul.mubr.bf16.gmra.mrb[0].mxu0 %v4300
      %v4518 = vpop.f32.mrb[0].mxu0
      %v4519 = vadd.f32 %v4322, %v4518
      %v4520 = vpop.f32.mrb[0].mxu0
      %v4521 = vpop.f32.mrb[0].mxu0
      %v4522 = vadd.f32 %v4322, %v4521
      %v4523 = vpop.f32.mrb[0].mxu0
      %4524 = vmatprep.mubr.bf16.mxu0 0
      %4525 = vmatmul.mubr.bf16.gmra.mrb[0].mxu0 %v4301
      %v4526 = vpop.f32.mrb[0].mxu0
      %v4527 = vadd.f32 %v4322, %v4526
      %v4528 = vpop.f32.mrb[0].mxu0
      %v4529 = vpop.f32.mrb[0].mxu0
      %v4530 = vadd.f32 %v4322, %v4529
      %v4531 = vpop.f32.mrb[0].mxu0
      %4532 = vdwg.mxu0
      %v4533 = vld [vmem:[%s308] sm:$0xf]
      %v4534 = vld [vmem:[%s308 + $0x4] sm:$0xf]
      %v4535 = vld [vmem:[%s308 + $0x8] sm:$0xf]
      %v4536 = vld [vmem:[%s308 + $0xc] sm:$0xf]
      %v4537 = vld [vmem:[%s308 + $0x10] sm:$0xf]
      %v4538 = vld [vmem:[%s308 + $0x14] sm:$0xf]
      %v4539 = vld [vmem:[%s308 + $0x18] sm:$0xf]
      %v4540 = vld [vmem:[%s308 + $0x1c] sm:$0xf]
      %v4541 = vld [vmem:[%s308 + $0x20] sm:$0xf]
      %v4542 = vld [vmem:[%s308 + $0x24] sm:$0xf]
      %v4543 = vld [vmem:[%s308 + $0x28] sm:$0xf]
      %v4544 = vld [vmem:[%s308 + $0x2c] sm:$0xf]
      %v4545 = vld [vmem:[%s308 + $0x30] sm:$0xf]
      %v4546 = vld [vmem:[%s308 + $0x34] sm:$0xf]
      %v4547 = vld [vmem:[%s308 + $0x38] sm:$0xf]
      %v4548 = vld [vmem:[%s308 + $0x3c] sm:$0xf]
      %v4549 = vld [vmem:[%s308 + $0x40] sm:$0xf]
      %v4550 = vld [vmem:[%s308 + $0x44] sm:$0xf]
      %v4551 = vld [vmem:[%s308 + $0x48] sm:$0xf]
      %v4552 = vld [vmem:[%s308 + $0x4c] sm:$0xf]
      %v4553 = vld [vmem:[%s308 + $0x50] sm:$0xf]
      %v4554 = vld [vmem:[%s308 + $0x54] sm:$0xf]
      %v4555 = vld [vmem:[%s308 + $0x58] sm:$0xf]
      %v4556 = vld [vmem:[%s308 + $0x5c] sm:$0xf]
      %v4557 = vld [vmem:[%s308 + $0x60] sm:$0xf]
      %v4558 = vld [vmem:[%s308 + $0x64] sm:$0xf]
      %v4559 = vld [vmem:[%s308 + $0x68] sm:$0xf]
      %v4560 = vld [vmem:[%s308 + $0x6c] sm:$0xf]
      %v4561 = vld [vmem:[%s308 + $0x70] sm:$0xf]
      %v4562 = vld [vmem:[%s308 + $0x74] sm:$0xf]
      %v4563 = vld [vmem:[%s308 + $0x78] sm:$0xf]
      %v4564 = vld [vmem:[%s308 + $0x7c] sm:$0xf]
      %v4565 = vunpack.c.l.bf16 %v4533
      %v4566 = vunpack.c.l.bf16 %v4534
      %v4567 = vunpack.c.l.bf16 %v4535
      %v4568 = vunpack.c.l.bf16 %v4536
      %v4569 = vunpack.c.l.bf16 %v4537
      %v4570 = vunpack.c.l.bf16 %v4538
      %v4571 = vunpack.c.l.bf16 %v4539
      %v4572 = vunpack.c.l.bf16 %v4540
      %v4573 = vunpack.c.l.bf16 %v4541
      %v4574 = vunpack.c.l.bf16 %v4542
      %v4575 = vunpack.c.l.bf16 %v4543
      %v4576 = vunpack.c.l.bf16 %v4544
      %v4577 = vunpack.c.l.bf16 %v4545
      %v4578 = vunpack.c.l.bf16 %v4546
      %v4579 = vunpack.c.l.bf16 %v4547
      %v4580 = vunpack.c.l.bf16 %v4548
      %v4581 = vunpack.c.l.bf16 %v4549
      %v4582 = vunpack.c.l.bf16 %v4550
      %v4583 = vunpack.c.l.bf16 %v4551
      %v4584 = vunpack.c.l.bf16 %v4552
      %v4585 = vunpack.c.l.bf16 %v4553
      %v4586 = vunpack.c.l.bf16 %v4554
      %v4587 = vunpack.c.l.bf16 %v4555
      %v4588 = vunpack.c.l.bf16 %v4556
      %v4589 = vunpack.c.l.bf16 %v4557
      %v4590 = vunpack.c.l.bf16 %v4558
      %v4591 = vunpack.c.l.bf16 %v4559
      %v4592 = vunpack.c.l.bf16 %v4560
      %v4593 = vunpack.c.l.bf16 %v4561
      %v4594 = vunpack.c.l.bf16 %v4562
      %v4595 = vunpack.c.l.bf16 %v4563
      %v4596 = vunpack.c.l.bf16 %v4564
      %v4597 = vadd.f32 %v4407, %v4565
      %v4598 = vadd.f32 %v4410, %v4566
      %v4599 = vadd.f32 %v4415, %v4567
      %v4600 = vadd.f32 %v4418, %v4568
      %v4601 = vadd.f32 %v4423, %v4569
      %v4602 = vadd.f32 %v4426, %v4570
      %v4603 = vadd.f32 %v4431, %v4571
      %v4604 = vadd.f32 %v4434, %v4572
      %v4605 = vadd.f32 %v4439, %v4573
      %v4606 = vadd.f32 %v4442, %v4574
      %v4607 = vadd.f32 %v4447, %v4575
      %v4608 = vadd.f32 %v4450, %v4576
      %v4609 = vadd.f32 %v4455, %v4577
      %v4610 = vadd.f32 %v4458, %v4578
      %v4611 = vadd.f32 %v4463, %v4579
      %v4612 = vadd.f32 %v4466, %v4580
      %v4613 = vadd.f32 %v4471, %v4581
      %v4614 = vadd.f32 %v4474, %v4582
      %v4615 = vadd.f32 %v4479, %v4583
      %v4616 = vadd.f32 %v4482, %v4584
      %v4617 = vadd.f32 %v4487, %v4585
      %v4618 = vadd.f32 %v4490, %v4586
      %v4619 = vadd.f32 %v4495, %v4587
      %v4620 = vadd.f32 %v4498, %v4588
      %v4621 = vadd.f32 %v4503, %v4589
      %v4622 = vadd.f32 %v4506, %v4590
      %v4623 = vadd.f32 %v4511, %v4591
      %v4624 = vadd.f32 %v4514, %v4592
      %v4625 = vadd.f32 %v4519, %v4593
      %v4626 = vadd.f32 %v4522, %v4594
      %v4627 = vadd.f32 %v4527, %v4595
      %v4628 = vadd.f32 %v4530, %v4596
      %4629 = vst [vmem:[%s302] sm:$0xff] %v4597
      %4630 = vst [vmem:[%s302 + $0x8] sm:$0xff] %v4598
      %4631 = vst [vmem:[%s302 + $0x10] sm:$0xff] %v4599
      %4632 = vst [vmem:[%s302 + $0x18] sm:$0xff] %v4600
      %4633 = vst [vmem:[%s302 + $0x20] sm:$0xff] %v4601
      %4634 = vst [vmem:[%s302 + $0x28] sm:$0xff] %v4602
      %4635 = vst [vmem:[%s302 + $0x30] sm:$0xff] %v4603
      %4636 = vst [vmem:[%s302 + $0x38] sm:$0xff] %v4604
      %4637 = vst [vmem:[%s302 + $0x40] sm:$0xff] %v4605
      %4638 = vst [vmem:[%s302 + $0x48] sm:$0xff] %v4606
      %4639 = vst [vmem:[%s302 + $0x50] sm:$0xff] %v4607
      %4640 = vst [vmem:[%s302 + $0x58] sm:$0xff] %v4608
      %4641 = vst [vmem:[%s302 + $0x60] sm:$0xff] %v4609
      %4642 = vst [vmem:[%s302 + $0x68] sm:$0xff] %v4610
      %4643 = vst [vmem:[%s302 + $0x70] sm:$0xff] %v4611
      %4644 = vst [vmem:[%s302 + $0x78] sm:$0xff] %v4612
      %4645 = vst [vmem:[%s302 + $0x80] sm:$0xff] %v4613
      %4646 = vst [vmem:[%s302 + $0x88] sm:$0xff] %v4614
      %4647 = vst [vmem:[%s302 + $0x90] sm:$0xff] %v4615
      %4648 = vst [vmem:[%s302 + $0x98] sm:$0xff] %v4616
      %4649 = vst [vmem:[%s302 + $0xa0] sm:$0xff] %v4617
      %4650 = vst [vmem:[%s302 + $0xa8] sm:$0xff] %v4618
      %4651 = vst [vmem:[%s302 + $0xb0] sm:$0xff] %v4619
      %4652 = vst [vmem:[%s302 + $0xb8] sm:$0xff] %v4620
      %4653 = vst [vmem:[%s302 + $0xc0] sm:$0xff] %v4621
      %4654 = vst [vmem:[%s302 + $0xc8] sm:$0xff] %v4622
      %4655 = vst [vmem:[%s302 + $0xd0] sm:$0xff] %v4623
      %4656 = vst [vmem:[%s302 + $0xd8] sm:$0xff] %v4624
      %4657 = vst [vmem:[%s302 + $0xe0] sm:$0xff] %v4625
      %4658 = vst [vmem:[%s302 + $0xe8] sm:$0xff] %v4626
      %4659 = vst [vmem:[%s302 + $0xf0] sm:$0xff] %v4627
      %4660 = vst [vmem:[%s302 + $0xf8] sm:$0xff] %v4628
      %s4661 = smul.u32 16, %s23
      %p4662 = scmp.lt.s32.totalorder %s22, 1
      %s4663 = scalar_select %p4662, %s22, 1
      %p4664 = scmp.lt.s32.totalorder %s4661, 15
      %s4665 = scalar_select %p4664, %s4661, 15
      %s4666 = smul.addr %s4665, 2
      %s4667 = smul.addr %s4663, 32
      %s4668 = sadd.s32 %s4666, %s4667
      %s4669 = smul.addr %s4668, 8
      %s4670 = scalar_lea.vmem %s7, %s4669
      // Predicated region
      $region53: #{inverted_residual_forward.1} parent=47 // pred_check
        %p4671 = pneg %p202
      $region54: #{inverted_residual_forward.1} parent=47 // pred_check_branch
        %4673 = sbr.rel (%p4671) target = $region56
      $region55: #{inverted_residual_forward.1} parent=47 // pred_region
        %s4674 = smul.u32 16, %s23
      $region56: #{inverted_residual_forward.1} parent=47 // pred_fallthru
        _
    $region48: #{inverted_residual_forward.1} parent=5 // pred_fallthru
      _
    %p4675 = scmp.le.s32.totalorder 2, %s13
    // Predicated region
    $region57: #{inverted_residual_forward.1} parent=5 // pred_check
      %p4676 = pneg %p4675
    $region58: #{inverted_residual_forward.1} parent=5 // pred_check_branch
      %4678 = sbr.rel (%p4676) target = $region60
    $region59: #{inverted_residual_forward.1} parent=5 // pred_region
      %s4679 = ssub.s32 %s13, 2
      // Predicated region
      $region61: #{inverted_residual_forward.1} parent=59 // pred_check
        %p4680 = pneg %p208
      $region62: #{inverted_residual_forward.1} parent=59 // pred_check_branch
        %4682 = sbr.rel (%p4680) target = $region64
      $region63: #{inverted_residual_forward.1} parent=59 // pred_region
        %s4683 = smul.u32 16, %s25
        %p4684 = scmp.lt.s32.totalorder %s24, 1
        %s4685 = scalar_select %p4684, %s24, 1
        %p4686 = scmp.lt.s32.totalorder %s4683, 15
        %s4687 = scalar_select %p4686, %s4683, 15
        %s4688 = smul.addr %s4687, 2
        %s4689 = smul.addr %s4685, 32
        %s4690 = sadd.s32 %s4688, %s4689
        %s4691 = smul.addr %s4690, 8
        %s4692 = scalar_lea.vmem %s7, %s4691
      $region64: #{inverted_residual_forward.1} parent=59 // pred_fallthru
        _
    $region60: #{inverted_residual_forward.1} parent=5 // pred_fallthru
      _
  $region6: #{inverted_residual_forward.1} parent=0 // loop_footer
    %s17 = sadd.s32 1, %s13
  $region7: #{inverted_residual_forward.1} parent=0 // loop_footer_branch
    %12 = sbr.rel target = $region3
  $region8: #{inverted_residual_forward.1} parent=0 // loop_exit
    _

</llo_original>
